<compile_context>
chip_gen: v7x
topology: tpu7x:2x2x1
jax: 0.10.0
libtpu: 0.0.40
codegen_flags: <defaults>
</compile_context>

<pallas_src>
import math
import functools

import jax
import jax.numpy as jnp
from jax import lax
from jax.experimental import pallas as pl
from jax.experimental.pallas import tpu as pltpu


# ---------------------------------------------------------------------------
# Kernel: one (batch, query-tile) slice per grid step, all heads inside.
# ---------------------------------------------------------------------------
def _mha_kernel(q_ref, k_ref, v_ref, wqkv_ref, bqkv_ref, wo_ref, bo_ref,
                o_ref, k_scr, v_scr, concat_scr,
                *, heads, d_k, scale, compute_dtype):
    cdt = compute_dtype
    f32 = jnp.float32
    approx_recip = jnp.dtype(cdt) != jnp.dtype(jnp.float32)
    qi = pl.program_id(1)

    # K/V projections are shared by every query tile of this batch element:
    # compute them once (qi == 0) into VMEM scratch that persists across the
    # query-tile grid axis ("arbitrary" axis => same core walks all qi).
    @pl.when(qi == 0)
    def _():
        kp = jnp.dot(k_ref[0], wqkv_ref[1], preferred_element_type=f32) + bqkv_ref[1]
        vp = jnp.dot(v_ref[0], wqkv_ref[2], preferred_element_type=f32) + bqkv_ref[2]
        k_scr[...] = kp.astype(cdt)
        v_scr[...] = vp.astype(cdt)

    # Query projection for this tile; fold 1/sqrt(d_k) into q once (TQ*D muls
    # instead of TQ*S per head) and cast the whole tile to compute dtype once.
    qp = jnp.dot(q_ref[0], wqkv_ref[0], preferred_element_type=f32) + bqkv_ref[0]
    qp = (qp * scale).astype(cdt)

    # Per-head attention.  Each head writes its lane slice of the persistent
    # concat scratch, so the (TQ, S) score/prob tiles die at the end of the
    # head (no head_outs list, no (TQ, D) concatenate relayout).
    for h in range(heads):                        # heads is small; static unroll
        sl = slice(h * d_k, (h + 1) * d_k)        # static lane slice, no transpose
        qh = qp[:, sl]                            # (TQ, d_k)
        kh = k_scr[:, sl]                         # (S,  d_k)
        vh = v_scr[:, sl]

        # QK^T without materializing a transposed copy of K.
        s = lax.dot_general(qh, kh, (((1,), (1,)), ((), ())),
                            preferred_element_type=f32)          # (TQ, S) f32

        m = jnp.max(s, axis=-1, keepdims=True)
        p = jnp.exp(s - m)
        l = jnp.sum(p, axis=-1, keepdims=True)
        # Exact reciprocal for f32 parity; EUP approx (free slot) for bf16.
        inv_l = pl.reciprocal(l, approx=approx_recip)

        # Normalize after p@V: TQ*d_k multiplies instead of TQ*S.
        oh = jnp.dot(p.astype(cdt), vh, preferred_element_type=f32) * inv_l
        concat_scr[:, sl] = oh.astype(cdt)

    # TODO(synk): batch heads through one lax.dot_general (batch dim = head)
    #             to fill the 256-wide MXU on v6e/v7x when d_k < 128.
    out = jnp.dot(concat_scr[...], wo_ref[...],
                  preferred_element_type=f32) + bo_ref[...]
    o_ref[0] = out.astype(o_ref.dtype)


def _vmem_limit_bytes(seq, tq, d_model, compute_dtype):
    """Rough VMEM budget for blocks + scratch + in-body temporaries."""
    itm = jnp.dtype(compute_dtype).itemsize
    f32b = 4
    est = 0
    est += 2 * tq * d_model * itm                  # q block (double-buffered)
    est += 2 * 2 * seq * d_model * itm             # k, v blocks
    est += 2 * tq * d_model * f32b                 # out block
    est += 4 * d_model * d_model * itm             # weights (single-buffered)
    est += 4 * d_model * f32b                      # biases
    est += (2 * seq + tq) * d_model * itm          # K/V + concat scratch
    est += (tq + 2 * seq) * d_model * f32b         # f32 projection temporaries
    est += tq * seq * (2 * f32b + itm)             # score / prob tiles
    return int(min(100 * 1024 * 1024, max(32 * 1024 * 1024, 1.5 * est)))


# ---------------------------------------------------------------------------
# Wrapper: single fused pallas_call over a (batch, query-tile) grid.
# ---------------------------------------------------------------------------
def multi_head_attention(q, k, v, params, heads, *,
                         compute_dtype=jnp.bfloat16, out_dtype=jnp.float32,
                         q_tile=256):
    bs, seq, d_model = q.shape
    d_k = d_model // heads
    scale = 1.0 / math.sqrt(d_k)

    # Query-tile size: block dims must be divisible by 8 or equal the full dim.
    tq = seq if seq <= q_tile else q_tile
    if tq % 8 != 0:
        tq = seq
    nq = pl.cdiv(seq, tq)

    # Stack the three projection weights/biases so they travel as one ref.
    wqkv = jnp.stack([params["wq"], params["wk"], params["wv"]]).astype(compute_dtype)
    bqkv = jnp.stack([params["bq"], params["bk"], params["bv"]])[:, None, :].astype(jnp.float32)
    wo = params["wo"].astype(compute_dtype)
    bo = params["bo"].reshape(1, d_model).astype(jnp.float32)

    # Mixed precision: activations/weights in compute dtype; biases and all
    # accumulation stay f32.
    q = q.astype(compute_dtype)
    k = k.astype(compute_dtype)
    v = v.astype(compute_dtype)
    # TODO(synk): when q is k is v (self-attention) the three identical input
    #             DMAs could be deduplicated into one (biggest win on v5e).

    kernel = functools.partial(_mha_kernel, heads=heads, d_k=d_k, scale=scale,
                               compute_dtype=compute_dtype)

    itm = jnp.dtype(compute_dtype).itemsize
    cost = pl.CostEstimate(
        flops=8 * bs * seq * d_model * d_model + 4 * bs * seq * seq * d_model,
        transcendentals=bs * heads * seq * seq,
        bytes_accessed=(3 * bs * seq * d_model * itm
                        + bs * seq * d_model * jnp.dtype(out_dtype).itemsize
                        + 4 * d_model * d_model * itm),
    )

    def build(single_buffer_weights):
        # Constant-index weight/bias blocks: single-buffer (no prefetch needed,
        # their index_map returns the same block every grid step).
        w_mode = dict(pipeline_mode=pl.Buffered(1)) if single_buffer_weights else {}
        in_specs = [
            pl.BlockSpec((1, tq, d_model), lambda b, i: (b, i, 0)),        # q tile
            pl.BlockSpec((1, seq, d_model), lambda b, i: (b, 0, 0)),       # k (full)
            pl.BlockSpec((1, seq, d_model), lambda b, i: (b, 0, 0)),       # v (full)
            pl.BlockSpec((3, d_model, d_model), lambda b, i: (0, 0, 0), **w_mode),
            pl.BlockSpec((3, 1, d_model), lambda b, i: (0, 0, 0), **w_mode),
            pl.BlockSpec((d_model, d_model), lambda b, i: (0, 0), **w_mode),
            pl.BlockSpec((1, d_model), lambda b, i: (0, 0), **w_mode),
        ]
        return pl.pallas_call(
            kernel,
            out_shape=jax.ShapeDtypeStruct((bs, seq, d_model), out_dtype),
            grid=(bs, nq),
            in_specs=in_specs,
            out_specs=pl.BlockSpec((1, tq, d_model), lambda b, i: (b, i, 0)),
            scratch_shapes=[
                pltpu.VMEM((seq, d_model), compute_dtype),    # K projection
                pltpu.VMEM((seq, d_model), compute_dtype),    # V projection
                pltpu.VMEM((tq, d_model), compute_dtype),     # head concat
            ],
            compiler_params=pltpu.CompilerParams(
                dimension_semantics=("parallel", "arbitrary"),
                vmem_limit_bytes=_vmem_limit_bytes(seq, tq, d_model, compute_dtype),
            ),
            cost_estimate=cost,
        )

    args = (q, k, v, wqkv, bqkv, wo, bo)
    try:
        return build(True)(*args)
    except Exception:
        # Fallback for toolchains that reject Buffered(1): identical kernel,
        # default (double-buffered) weight blocks.
        return build(False)(*args)


# ---------------------------------------------------------------------------
# Pure-JAX reference (matches the PyTorch module with mask=None, eval mode)
# ---------------------------------------------------------------------------
def reference(q, k, v, params, heads):
    bs, seq, d_model = q.shape
    d_k = d_model // heads

    def proj(x, w, b):
        return x @ w + b

    qp = proj(q, params["wq"], params["bq"]).reshape(bs, seq, heads, d_k).transpose(0, 2, 1, 3)
    kp = proj(k, params["wk"], params["bk"]).reshape(bs, seq, heads, d_k).transpose(0, 2, 1, 3)
    vp = proj(v, params["wv"], params["bv"]).reshape(bs, seq, heads, d_k).transpose(0, 2, 1, 3)
    s = jnp.einsum("bhqd,bhkd->bhqk", qp, kp) / math.sqrt(d_k)
    p = jax.nn.softmax(s, axis=-1)
    o = jnp.einsum("bhqk,bhkd->bhqd", p, vp)
    concat = o.transpose(0, 2, 1, 3).reshape(bs, seq, d_model)
    return concat @ params["wo"] + params["bo"]


if __name__ == "__main__":
    bs, seq, d_model, heads = 2, 8, 32, 4

    key = jax.random.PRNGKey(0)
    keys = jax.random.split(key, 12)
    bound = 1.0 / math.sqrt(d_model)

    def uni(kk, shape):
        return jax.random.uniform(kk, shape, jnp.float32, -bound, bound)

    params = {
        "wq": uni(keys[0], (d_model, d_model)), "bq": uni(keys[1], (d_model,)),
        "wk": uni(keys[2], (d_model, d_model)), "bk": uni(keys[3], (d_model,)),
        "wv": uni(keys[4], (d_model, d_model)), "bv": uni(keys[5], (d_model,)),
        "wo": uni(keys[6], (d_model, d_model)), "bo": uni(keys[7], (d_model,)),
    }

    q = jax.random.normal(keys[8], (bs, seq, d_model), jnp.float32)
    k = jax.random.normal(keys[9], (bs, seq, d_model), jnp.float32)
    v = jax.random.normal(keys[10], (bs, seq, d_model), jnp.float32)

    ref = reference(q, k, v, params, heads)

    # bf16 MXU path (default, recommended on v5e/v6e/v7x), f32 accumulation.
    out_bf16 = jax.block_until_ready(
        multi_head_attention(q, k, v, params, heads))
    assert out_bf16.shape == (bs, seq, d_model)
    assert jnp.allclose(out_bf16, ref, atol=5e-2, rtol=5e-2), (
        "bf16 mismatch: " + str(float(jnp.max(jnp.abs(out_bf16 - ref)))))

    # f32 compute path (exact reciprocal; tolerance covers accumulation order).
    out_f32 = jax.block_until_ready(
        multi_head_attention(q, k, v, params, heads, compute_dtype=jnp.float32))
    assert jnp.allclose(out_f32, ref, atol=1e-2, rtol=1e-2), (
        "f32 mismatch: " + str(float(jnp.max(jnp.abs(out_f32 - ref)))))

    print("KERNEL_OK")
</pallas_src>

<mosaic_0001>
module attributes {stable_mosaic.version = 11 : i64} {
  func.func @_mha_kernel(%arg0: i32, %arg1: i32, %arg2: memref<1x8x32xbf16, #tpu.memory_space<vmem>>, %arg3: memref<1x8x32xbf16, #tpu.memory_space<vmem>>, %arg4: memref<1x8x32xbf16, #tpu.memory_space<vmem>>, %arg5: memref<3x32x32xbf16, #tpu.memory_space<vmem>>, %arg6: memref<3x1x32xf32, #tpu.memory_space<vmem>>, %arg7: memref<32x32xbf16, #tpu.memory_space<vmem>>, %arg8: memref<1x32xf32, #tpu.memory_space<vmem>>, %arg9: memref<1x8x32xf32, #tpu.memory_space<vmem>>, %arg10: memref<8x32xbf16, #tpu.memory_space<vmem>>, %arg11: memref<8x32xbf16, #tpu.memory_space<vmem>>, %arg12: memref<8x32xbf16, #tpu.memory_space<vmem>>) attributes {dimension_semantics = [#tpu.dimension_semantics<parallel>, #tpu.dimension_semantics<arbitrary>], iteration_bounds = array<i64: 2, 1>, scalar_prefetch = 0 : i64, scratch_operands = 3 : i64, tpu.core_type = #tpu.core_type<tc>, window_params = [{transform_indices = @transform_0, window_bounds = array<i64: 1, 8, 32>}, {transform_indices = @transform_1, window_bounds = array<i64: 1, 8, 32>}, {transform_indices = @transform_2, window_bounds = array<i64: 1, 8, 32>}, {pipeline_mode = #tpu.pipeline_mode<synchronous>, transform_indices = @transform_3, window_bounds = array<i64: 3, 32, 32>}, {pipeline_mode = #tpu.pipeline_mode<synchronous>, transform_indices = @transform_4, window_bounds = array<i64: 3, 1, 32>}, {pipeline_mode = #tpu.pipeline_mode<synchronous>, transform_indices = @transform_5, window_bounds = array<i64: 32, 32>}, {pipeline_mode = #tpu.pipeline_mode<synchronous>, transform_indices = @transform_6, window_bounds = array<i64: 1, 32>}, {transform_indices = @transform_7, window_bounds = array<i64: 1, 8, 32>}]} {
    %c0_i32 = arith.constant 0 : i32
    %0 = arith.cmpi eq, %arg1, %c0_i32 : i32
    %1 = arith.extui %0 : i1 to i32
    %c0_i32_0 = arith.constant 0 : i32
    %2 = arith.cmpi ne, %1, %c0_i32_0 : i32
    scf.if %2 {
      %c0_57 = arith.constant 0 : index
      %c0_58 = arith.constant 0 : index
      %c0_59 = arith.constant 0 : index
      %96 = vector.load %arg3[%c0_57, %c0_58, %c0_59] : memref<1x8x32xbf16, #tpu.memory_space<vmem>>, vector<1x8x32xbf16>
      %97 = vector.shape_cast %96 : vector<1x8x32xbf16> to vector<8x32xbf16>
      %c1 = arith.constant 1 : index
      %c0_60 = arith.constant 0 : index
      %c0_61 = arith.constant 0 : index
      %98 = vector.load %arg5[%c1, %c0_60, %c0_61] : memref<3x32x32xbf16, #tpu.memory_space<vmem>>, vector<1x32x32xbf16>
      %99 = vector.shape_cast %98 : vector<1x32x32xbf16> to vector<32x32xbf16>
      %cst_62 = arith.constant dense<0.000000e+00> : vector<8x32xf32>
      %100 = tpu.matmul %97, %99, %cst_62 {dimension_numbers = #tpu.dot_dimension_numbers<[1], [0], [0], [1], [0, 0, 1, 1], [], []>} : vector<8x32xbf16>, vector<32x32xbf16>, vector<8x32xf32> -> vector<8x32xf32>
      %c1_63 = arith.constant 1 : index
      %c0_64 = arith.constant 0 : index
      %c0_65 = arith.constant 0 : index
      %101 = vector.load %arg6[%c1_63, %c0_64, %c0_65] : memref<3x1x32xf32, #tpu.memory_space<vmem>>, vector<1x1x32xf32>
      %102 = vector.shape_cast %101 : vector<1x1x32xf32> to vector<1x32xf32>
      %103 = vector.broadcast %102 : vector<1x32xf32> to vector<8x32xf32>
      %104 = arith.addf %100, %103 : vector<8x32xf32>
      %c0_66 = arith.constant 0 : index
      %c0_67 = arith.constant 0 : index
      %c0_68 = arith.constant 0 : index
      %105 = vector.load %arg4[%c0_66, %c0_67, %c0_68] : memref<1x8x32xbf16, #tpu.memory_space<vmem>>, vector<1x8x32xbf16>
      %106 = vector.shape_cast %105 : vector<1x8x32xbf16> to vector<8x32xbf16>
      %c2 = arith.constant 2 : index
      %c0_69 = arith.constant 0 : index
      %c0_70 = arith.constant 0 : index
      %107 = vector.load %arg5[%c2, %c0_69, %c0_70] : memref<3x32x32xbf16, #tpu.memory_space<vmem>>, vector<1x32x32xbf16>
      %108 = vector.shape_cast %107 : vector<1x32x32xbf16> to vector<32x32xbf16>
      %cst_71 = arith.constant dense<0.000000e+00> : vector<8x32xf32>
      %109 = tpu.matmul %106, %108, %cst_71 {dimension_numbers = #tpu.dot_dimension_numbers<[1], [0], [0], [1], [0, 0, 1, 1], [], []>} : vector<8x32xbf16>, vector<32x32xbf16>, vector<8x32xf32> -> vector<8x32xf32>
      %c2_72 = arith.constant 2 : index
      %c0_73 = arith.constant 0 : index
      %c0_74 = arith.constant 0 : index
      %110 = vector.load %arg6[%c2_72, %c0_73, %c0_74] : memref<3x1x32xf32, #tpu.memory_space<vmem>>, vector<1x1x32xf32>
      %111 = vector.shape_cast %110 : vector<1x1x32xf32> to vector<1x32xf32>
      %112 = vector.broadcast %111 : vector<1x32xf32> to vector<8x32xf32>
      %113 = arith.addf %109, %112 : vector<8x32xf32>
      %114 = arith.truncf %104 : vector<8x32xf32> to vector<8x32xbf16>
      %c0_75 = arith.constant 0 : index
      %c0_76 = arith.constant 0 : index
      %115 = vector.load %arg10[%c0_75, %c0_76] : memref<8x32xbf16, #tpu.memory_space<vmem>>, vector<8x32xbf16>
      tpu.vector_store %arg10[%c0_75, %c0_76], %114 {strides = array<i32>} : memref<8x32xbf16, #tpu.memory_space<vmem>>, vector<8x32xbf16>,
      %116 = arith.truncf %113 : vector<8x32xf32> to vector<8x32xbf16>
      %c0_77 = arith.constant 0 : index
      %c0_78 = arith.constant 0 : index
      %117 = vector.load %arg11[%c0_77, %c0_78] : memref<8x32xbf16, #tpu.memory_space<vmem>>, vector<8x32xbf16>
      tpu.vector_store %arg11[%c0_77, %c0_78], %116 {strides = array<i32>} : memref<8x32xbf16, #tpu.memory_space<vmem>>, vector<8x32xbf16>,
    } else {
    }
    %c0 = arith.constant 0 : index
    %c0_1 = arith.constant 0 : index
    %c0_2 = arith.constant 0 : index
    %3 = vector.load %arg2[%c0, %c0_1, %c0_2] : memref<1x8x32xbf16, #tpu.memory_space<vmem>>, vector<1x8x32xbf16>
    %4 = vector.shape_cast %3 : vector<1x8x32xbf16> to vector<8x32xbf16>
    %c0_3 = arith.constant 0 : index
    %c0_4 = arith.constant 0 : index
    %c0_5 = arith.constant 0 : index
    %5 = vector.load %arg5[%c0_3, %c0_4, %c0_5] : memref<3x32x32xbf16, #tpu.memory_space<vmem>>, vector<1x32x32xbf16>
    %6 = vector.shape_cast %5 : vector<1x32x32xbf16> to vector<32x32xbf16>
    %cst = arith.constant dense<0.000000e+00> : vector<8x32xf32>
    %7 = tpu.matmul %4, %6, %cst {dimension_numbers = #tpu.dot_dimension_numbers<[1], [0], [0], [1], [0, 0, 1, 1], [], []>} : vector<8x32xbf16>, vector<32x32xbf16>, vector<8x32xf32> -> vector<8x32xf32>
    %c0_6 = arith.constant 0 : index
    %c0_7 = arith.constant 0 : index
    %c0_8 = arith.constant 0 : index
    %8 = vector.load %arg6[%c0_6, %c0_7, %c0_8] : memref<3x1x32xf32, #tpu.memory_space<vmem>>, vector<1x1x32xf32>
    %9 = vector.shape_cast %8 : vector<1x1x32xf32> to vector<1x32xf32>
    %10 = vector.broadcast %9 : vector<1x32xf32> to vector<8x32xf32>
    %11 = arith.addf %7, %10 : vector<8x32xf32>
    %cst_9 = arith.constant 0.353553385 : f32
    %12 = vector.broadcast %cst_9 : f32 to vector<8x32xf32>
    %13 = arith.mulf %11, %12 : vector<8x32xf32>
    %14 = arith.truncf %13 : vector<8x32xf32> to vector<8x32xbf16>
    %15 = vector.extract_strided_slice %14 {offsets = [0, 0], sizes = [8, 8], strides = [1, 1]} : vector<8x32xbf16> to vector<8x8xbf16>
    %c0_10 = arith.constant 0 : index
    %c0_11 = arith.constant 0 : index
    %16 = vector.load %arg10[%c0_10, %c0_11] : memref<8x32xbf16, #tpu.memory_space<vmem>>, vector<8x8xbf16>
    %c0_12 = arith.constant 0 : index
    %c0_13 = arith.constant 0 : index
    %17 = vector.load %arg11[%c0_12, %c0_13] : memref<8x32xbf16, #tpu.memory_space<vmem>>, vector<8x8xbf16>
    %cst_14 = arith.constant dense<0.000000e+00> : vector<8x8xf32>
    %18 = tpu.matmul %15, %16, %cst_14 {dimension_numbers = #tpu.dot_dimension_numbers<[1], [1], [0], [0], [0, 0, 1, 0], [], []>} : vector<8x8xbf16>, vector<8x8xbf16>, vector<8x8xf32> -> vector<8x8xf32>
    %cst_15 = arith.constant dense<0xFF800000> : vector<8xf32>
    %19 = vector.multi_reduction <maximumf>, %18, %cst_15 [1] : vector<8x8xf32> to vector<8xf32>
    %20 = vector.shape_cast %19 : vector<8xf32> to vector<8x1xf32>
    %21 = vector.broadcast %20 : vector<8x1xf32> to vector<8x8xf32>
    %22 = arith.subf %18, %21 : vector<8x8xf32>
    %23 = math.exp %22 : vector<8x8xf32>
    %cst_16 = arith.constant dense<0.000000e+00> : vector<8xf32>
    %24 = vector.multi_reduction <add>, %23, %cst_16 [1] : vector<8x8xf32> to vector<8xf32>
    %25 = vector.shape_cast %24 : vector<8xf32> to vector<8x1xf32>
    %26 = tpu.reciprocal %25 {approx = true} : vector<8x1xf32> -> vector<8x1xf32>
    %27 = arith.truncf %23 : vector<8x8xf32> to vector<8x8xbf16>
    %cst_17 = arith.constant dense<0.000000e+00> : vector<8x8xf32>
    %28 = tpu.matmul %27, %17, %cst_17 {dimension_numbers = #tpu.dot_dimension_numbers<[1], [0], [0], [1], [0, 0, 1, 1], [], []>} : vector<8x8xbf16>, vector<8x8xbf16>, vector<8x8xf32> -> vector<8x8xf32>
    %29 = vector.broadcast %26 : vector<8x1xf32> to vector<8x8xf32>
    %30 = arith.mulf %28, %29 : vector<8x8xf32>
    %31 = arith.truncf %30 : vector<8x8xf32> to vector<8x8xbf16>
    %c0_18 = arith.constant 0 : index
    %c0_19 = arith.constant 0 : index
    %32 = vector.load %arg12[%c0_18, %c0_19] : memref<8x32xbf16, #tpu.memory_space<vmem>>, vector<8x8xbf16>
    tpu.vector_store %arg12[%c0_18, %c0_19], %31 {strides = array<i32>} : memref<8x32xbf16, #tpu.memory_space<vmem>>, vector<8x8xbf16>,
    %33 = vector.extract_strided_slice %14 {offsets = [0, 8], sizes = [8, 8], strides = [1, 1]} : vector<8x32xbf16> to vector<8x8xbf16>
    %c0_20 = arith.constant 0 : index
    %c8 = arith.constant 8 : index
    %34 = vector.load %arg10[%c0_20, %c8] : memref<8x32xbf16, #tpu.memory_space<vmem>>, vector<8x8xbf16>
    %c0_21 = arith.constant 0 : index
    %c8_22 = arith.constant 8 : index
    %35 = vector.load %arg11[%c0_21, %c8_22] : memref<8x32xbf16, #tpu.memory_space<vmem>>, vector<8x8xbf16>
    %cst_23 = arith.constant dense<0.000000e+00> : vector<8x8xf32>
    %36 = tpu.matmul %33, %34, %cst_23 {dimension_numbers = #tpu.dot_dimension_numbers<[1], [1], [0], [0], [0, 0, 1, 0], [], []>} : vector<8x8xbf16>, vector<8x8xbf16>, vector<8x8xf32> -> vector<8x8xf32>
    %cst_24 = arith.constant dense<0xFF800000> : vector<8xf32>
    %37 = vector.multi_reduction <maximumf>, %36, %cst_24 [1] : vector<8x8xf32> to vector<8xf32>
    %38 = vector.shape_cast %37 : vector<8xf32> to vector<8x1xf32>
    %39 = vector.broadcast %38 : vector<8x1xf32> to vector<8x8xf32>
    %40 = arith.subf %36, %39 : vector<8x8xf32>
    %41 = math.exp %40 : vector<8x8xf32>
    %cst_25 = arith.constant dense<0.000000e+00> : vector<8xf32>
    %42 = vector.multi_reduction <add>, %41, %cst_25 [1] : vector<8x8xf32> to vector<8xf32>
    %43 = vector.shape_cast %42 : vector<8xf32> to vector<8x1xf32>
    %44 = tpu.reciprocal %43 {approx = true} : vector<8x1xf32> -> vector<8x1xf32>
    %45 = arith.truncf %41 : vector<8x8xf32> to vector<8x8xbf16>
    %cst_26 = arith.constant dense<0.000000e+00> : vector<8x8xf32>
    %46 = tpu.matmul %45, %35, %cst_26 {dimension_numbers = #tpu.dot_dimension_numbers<[1], [0], [0], [1], [0, 0, 1, 1], [], []>} : vector<8x8xbf16>, vector<8x8xbf16>, vector<8x8xf32> -> vector<8x8xf32>
    %47 = vector.broadcast %44 : vector<8x1xf32> to vector<8x8xf32>
    %48 = arith.mulf %46, %47 : vector<8x8xf32>
    %49 = arith.truncf %48 : vector<8x8xf32> to vector<8x8xbf16>
    %c0_27 = arith.constant 0 : index
    %c8_28 = arith.constant 8 : index
    %50 = vector.load %arg12[%c0_27, %c8_28] : memref<8x32xbf16, #tpu.memory_space<vmem>>, vector<8x8xbf16>
    tpu.vector_store %arg12[%c0_27, %c8_28], %49 {strides = array<i32>} : memref<8x32xbf16, #tpu.memory_space<vmem>>, vector<8x8xbf16>,
    %51 = vector.extract_strided_slice %14 {offsets = [0, 16], sizes = [8, 8], strides = [1, 1]} : vector<8x32xbf16> to vector<8x8xbf16>
    %c0_29 = arith.constant 0 : index
    %c16 = arith.constant 16 : index
    %52 = vector.load %arg10[%c0_29, %c16] : memref<8x32xbf16, #tpu.memory_space<vmem>>, vector<8x8xbf16>
    %c0_30 = arith.constant 0 : index
    %c16_31 = arith.constant 16 : index
    %53 = vector.load %arg11[%c0_30, %c16_31] : memref<8x32xbf16, #tpu.memory_space<vmem>>, vector<8x8xbf16>
    %cst_32 = arith.constant dense<0.000000e+00> : vector<8x8xf32>
    %54 = tpu.matmul %51, %52, %cst_32 {dimension_numbers = #tpu.dot_dimension_numbers<[1], [1], [0], [0], [0, 0, 1, 0], [], []>} : vector<8x8xbf16>, vector<8x8xbf16>, vector<8x8xf32> -> vector<8x8xf32>
    %cst_33 = arith.constant dense<0xFF800000> : vector<8xf32>
    %55 = vector.multi_reduction <maximumf>, %54, %cst_33 [1] : vector<8x8xf32> to vector<8xf32>
    %56 = vector.shape_cast %55 : vector<8xf32> to vector<8x1xf32>
    %57 = vector.broadcast %56 : vector<8x1xf32> to vector<8x8xf32>
    %58 = arith.subf %54, %57 : vector<8x8xf32>
    %59 = math.exp %58 : vector<8x8xf32>
    %cst_34 = arith.constant dense<0.000000e+00> : vector<8xf32>
    %60 = vector.multi_reduction <add>, %59, %cst_34 [1] : vector<8x8xf32> to vector<8xf32>
    %61 = vector.shape_cast %60 : vector<8xf32> to vector<8x1xf32>
    %62 = tpu.reciprocal %61 {approx = true} : vector<8x1xf32> -> vector<8x1xf32>
    %63 = arith.truncf %59 : vector<8x8xf32> to vector<8x8xbf16>
    %cst_35 = arith.constant dense<0.000000e+00> : vector<8x8xf32>
    %64 = tpu.matmul %63, %53, %cst_35 {dimension_numbers = #tpu.dot_dimension_numbers<[1], [0], [0], [1], [0, 0, 1, 1], [], []>} : vector<8x8xbf16>, vector<8x8xbf16>, vector<8x8xf32> -> vector<8x8xf32>
    %65 = vector.broadcast %62 : vector<8x1xf32> to vector<8x8xf32>
    %66 = arith.mulf %64, %65 : vector<8x8xf32>
    %67 = arith.truncf %66 : vector<8x8xf32> to vector<8x8xbf16>
    %c0_36 = arith.constant 0 : index
    %c16_37 = arith.constant 16 : index
    %68 = vector.load %arg12[%c0_36, %c16_37] : memref<8x32xbf16, #tpu.memory_space<vmem>>, vector<8x8xbf16>
    tpu.vector_store %arg12[%c0_36, %c16_37], %67 {strides = array<i32>} : memref<8x32xbf16, #tpu.memory_space<vmem>>, vector<8x8xbf16>,
    %69 = vector.extract_strided_slice %14 {offsets = [0, 24], sizes = [8, 8], strides = [1, 1]} : vector<8x32xbf16> to vector<8x8xbf16>
    %c0_38 = arith.constant 0 : index
    %c24 = arith.constant 24 : index
    %70 = vector.load %arg10[%c0_38, %c24] : memref<8x32xbf16, #tpu.memory_space<vmem>>, vector<8x8xbf16>
    %c0_39 = arith.constant 0 : index
    %c24_40 = arith.constant 24 : index
    %71 = vector.load %arg11[%c0_39, %c24_40] : memref<8x32xbf16, #tpu.memory_space<vmem>>, vector<8x8xbf16>
    %cst_41 = arith.constant dense<0.000000e+00> : vector<8x8xf32>
    %72 = tpu.matmul %69, %70, %cst_41 {dimension_numbers = #tpu.dot_dimension_numbers<[1], [1], [0], [0], [0, 0, 1, 0], [], []>} : vector<8x8xbf16>, vector<8x8xbf16>, vector<8x8xf32> -> vector<8x8xf32>
    %cst_42 = arith.constant dense<0xFF800000> : vector<8xf32>
    %73 = vector.multi_reduction <maximumf>, %72, %cst_42 [1] : vector<8x8xf32> to vector<8xf32>
    %74 = vector.shape_cast %73 : vector<8xf32> to vector<8x1xf32>
    %75 = vector.broadcast %74 : vector<8x1xf32> to vector<8x8xf32>
    %76 = arith.subf %72, %75 : vector<8x8xf32>
    %77 = math.exp %76 : vector<8x8xf32>
    %cst_43 = arith.constant dense<0.000000e+00> : vector<8xf32>
    %78 = vector.multi_reduction <add>, %77, %cst_43 [1] : vector<8x8xf32> to vector<8xf32>
    %79 = vector.shape_cast %78 : vector<8xf32> to vector<8x1xf32>
    %80 = tpu.reciprocal %79 {approx = true} : vector<8x1xf32> -> vector<8x1xf32>
    %81 = arith.truncf %77 : vector<8x8xf32> to vector<8x8xbf16>
    %cst_44 = arith.constant dense<0.000000e+00> : vector<8x8xf32>
    %82 = tpu.matmul %81, %71, %cst_44 {dimension_numbers = #tpu.dot_dimension_numbers<[1], [0], [0], [1], [0, 0, 1, 1], [], []>} : vector<8x8xbf16>, vector<8x8xbf16>, vector<8x8xf32> -> vector<8x8xf32>
    %83 = vector.broadcast %80 : vector<8x1xf32> to vector<8x8xf32>
    %84 = arith.mulf %82, %83 : vector<8x8xf32>
    %85 = arith.truncf %84 : vector<8x8xf32> to vector<8x8xbf16>
    %c0_45 = arith.constant 0 : index
    %c24_46 = arith.constant 24 : index
    %86 = vector.load %arg12[%c0_45, %c24_46] : memref<8x32xbf16, #tpu.memory_space<vmem>>, vector<8x8xbf16>
    tpu.vector_store %arg12[%c0_45, %c24_46], %85 {strides = array<i32>} : memref<8x32xbf16, #tpu.memory_space<vmem>>, vector<8x8xbf16>,
    %c0_47 = arith.constant 0 : index
    %c0_48 = arith.constant 0 : index
    %87 = vector.load %arg12[%c0_47, %c0_48] : memref<8x32xbf16, #tpu.memory_space<vmem>>, vector<8x32xbf16>
    %c0_49 = arith.constant 0 : index
    %c0_50 = arith.constant 0 : index
    %88 = vector.load %arg7[%c0_49, %c0_50] : memref<32x32xbf16, #tpu.memory_space<vmem>>, vector<32x32xbf16>
    %cst_51 = arith.constant dense<0.000000e+00> : vector<8x32xf32>
    %89 = tpu.matmul %87, %88, %cst_51 {dimension_numbers = #tpu.dot_dimension_numbers<[1], [0], [0], [1], [0, 0, 1, 1], [], []>} : vector<8x32xbf16>, vector<32x32xbf16>, vector<8x32xf32> -> vector<8x32xf32>
    %c0_52 = arith.constant 0 : index
    %c0_53 = arith.constant 0 : index
    %90 = vector.load %arg8[%c0_52, %c0_53] : memref<1x32xf32, #tpu.memory_space<vmem>>, vector<1x32xf32>
    %91 = vector.broadcast %90 : vector<1x32xf32> to vector<8x32xf32>
    %92 = arith.addf %89, %91 : vector<8x32xf32>
    %c0_54 = arith.constant 0 : index
    %c0_55 = arith.constant 0 : index
    %c0_56 = arith.constant 0 : index
    %93 = vector.load %arg9[%c0_54, %c0_55, %c0_56] : memref<1x8x32xf32, #tpu.memory_space<vmem>>, vector<1x8x32xf32>
    %94 = vector.shape_cast %93 : vector<1x8x32xf32> to vector<8x32xf32>
    %95 = vector.shape_cast %92 : vector<8x32xf32> to vector<1x8x32xf32>
    tpu.vector_store %arg9[%c0_54, %c0_55, %c0_56], %95 {strides = array<i32>} : memref<1x8x32xf32, #tpu.memory_space<vmem>>, vector<1x8x32xf32>,
    return
  }
  func.func @transform_0(%arg0: i32, %arg1: i32) -> (i32, i32, i32) {
    %c0_i32 = arith.constant 0 : i32
    %c0_i32_0 = arith.constant 0 : i32
    return %arg0, %arg1, %c0_i32 : i32, i32, i32
  }
  func.func @transform_1(%arg0: i32, %arg1: i32) -> (i32, i32, i32) {
    %c0_i32 = arith.constant 0 : i32
    %c0_i32_0 = arith.constant 0 : i32
    %c0_i32_1 = arith.constant 0 : i32
    return %arg0, %c0_i32, %c0_i32_0 : i32, i32, i32
  }
  func.func @transform_2(%arg0: i32, %arg1: i32) -> (i32, i32, i32) {
    %c0_i32 = arith.constant 0 : i32
    %c0_i32_0 = arith.constant 0 : i32
    %c0_i32_1 = arith.constant 0 : i32
    return %arg0, %c0_i32, %c0_i32_0 : i32, i32, i32
  }
  func.func @transform_3(%arg0: i32, %arg1: i32) -> (i32, i32, i32) {
    %c0_i32 = arith.constant 0 : i32
    %c0_i32_0 = arith.constant 0 : i32
    %c0_i32_1 = arith.constant 0 : i32
    %c0_i32_2 = arith.constant 0 : i32
    return %c0_i32, %c0_i32_0, %c0_i32_1 : i32, i32, i32
  }
  func.func @transform_4(%arg0: i32, %arg1: i32) -> (i32, i32, i32) {
    %c0_i32 = arith.constant 0 : i32
    %c0_i32_0 = arith.constant 0 : i32
    %c0_i32_1 = arith.constant 0 : i32
    %c0_i32_2 = arith.constant 0 : i32
    return %c0_i32, %c0_i32_0, %c0_i32_1 : i32, i32, i32
  }
  func.func @transform_5(%arg0: i32, %arg1: i32) -> (i32, i32) {
    %c0_i32 = arith.constant 0 : i32
    %c0_i32_0 = arith.constant 0 : i32
    %c0_i32_1 = arith.constant 0 : i32
    return %c0_i32, %c0_i32_0 : i32, i32
  }
  func.func @transform_6(%arg0: i32, %arg1: i32) -> (i32, i32) {
    %c0_i32 = arith.constant 0 : i32
    %c0_i32_0 = arith.constant 0 : i32
    %c0_i32_1 = arith.constant 0 : i32
    return %c0_i32, %c0_i32_0 : i32, i32
  }
  func.func @transform_7(%arg0: i32, %arg1: i32) -> (i32, i32, i32) {
    %c0_i32 = arith.constant 0 : i32
    %c0_i32_0 = arith.constant 0 : i32
    return %arg0, %arg1, %c0_i32 : i32, i32, i32
  }
}

module attributes {stable_mosaic.version = 11 : i64} {
  func.func @_mha_kernel(%arg0: i32, %arg1: i32, %arg2: memref<1x8x32xbf16, #tpu.memory_space<vmem>>, %arg3: memref<1x8x32xbf16, #tpu.memory_space<vmem>>, %arg4: memref<1x8x32xbf16, #tpu.memory_space<vmem>>, %arg5: memref<3x32x32xbf16, #tpu.memory_space<vmem>>, %arg6: memref<3x1x32xf32, #tpu.memory_space<vmem>>, %arg7: memref<32x32xbf16, #tpu.memory_space<vmem>>, %arg8: memref<1x32xf32, #tpu.memory_space<vmem>>, %arg9: memref<1x8x32xf32, #tpu.memory_space<vmem>>, %arg10: memref<8x32xbf16, #tpu.memory_space<vmem>>, %arg11: memref<8x32xbf16, #tpu.memory_space<vmem>>, %arg12: memref<8x32xbf16, #tpu.memory_space<vmem>>) attributes {dimension_semantics = [#tpu.dimension_semantics<parallel>, #tpu.dimension_semantics<arbitrary>], iteration_bounds = array<i64: 2, 1>, scalar_prefetch = 0 : i64, scratch_operands = 3 : i64, tpu.core_type = #tpu.core_type<tc>, window_params = [{transform_indices = @transform_0, window_bounds = array<i64: 1, 8, 32>}, {transform_indices = @transform_1, window_bounds = array<i64: 1, 8, 32>}, {transform_indices = @transform_2, window_bounds = array<i64: 1, 8, 32>}, {pipeline_mode = #tpu.pipeline_mode<synchronous>, transform_indices = @transform_3, window_bounds = array<i64: 3, 32, 32>}, {pipeline_mode = #tpu.pipeline_mode<synchronous>, transform_indices = @transform_4, window_bounds = array<i64: 3, 1, 32>}, {pipeline_mode = #tpu.pipeline_mode<synchronous>, transform_indices = @transform_5, window_bounds = array<i64: 32, 32>}, {pipeline_mode = #tpu.pipeline_mode<synchronous>, transform_indices = @transform_6, window_bounds = array<i64: 1, 32>}, {transform_indices = @transform_7, window_bounds = array<i64: 1, 8, 32>}]} {
    %c0_i32 = arith.constant 0 : i32
    %0 = arith.cmpi eq, %arg1, %c0_i32 : i32
    %1 = arith.extui %0 : i1 to i32
    %c0_i32_0 = arith.constant 0 : i32
    %2 = arith.cmpi ne, %1, %c0_i32_0 : i32
    scf.if %2 {
      %c0_57 = arith.constant 0 : index
      %c0_58 = arith.constant 0 : index
      %c0_59 = arith.constant 0 : index
      %96 = vector.load %arg3[%c0_57, %c0_58, %c0_59] : memref<1x8x32xbf16, #tpu.memory_space<vmem>>, vector<1x8x32xbf16>
      %97 = vector.shape_cast %96 : vector<1x8x32xbf16> to vector<8x32xbf16>
      %c1 = arith.constant 1 : index
      %c0_60 = arith.constant 0 : index
      %c0_61 = arith.constant 0 : index
      %98 = vector.load %arg5[%c1, %c0_60, %c0_61] : memref<3x32x32xbf16, #tpu.memory_space<vmem>>, vector<1x32x32xbf16>
      %99 = vector.shape_cast %98 : vector<1x32x32xbf16> to vector<32x32xbf16>
      %cst_62 = arith.constant dense<0.000000e+00> : vector<8x32xf32>
      %100 = tpu.matmul %97, %99, %cst_62 {dimension_numbers = #tpu.dot_dimension_numbers<[1], [0], [0], [1], [0, 0, 1, 1], [], []>} : vector<8x32xbf16>, vector<32x32xbf16>, vector<8x32xf32> -> vector<8x32xf32>
      %c1_63 = arith.constant 1 : index
      %c0_64 = arith.constant 0 : index
      %c0_65 = arith.constant 0 : index
      %101 = vector.load %arg6[%c1_63, %c0_64, %c0_65] : memref<3x1x32xf32, #tpu.memory_space<vmem>>, vector<1x1x32xf32>
      %102 = vector.shape_cast %101 : vector<1x1x32xf32> to vector<1x32xf32>
      %103 = vector.broadcast %102 : vector<1x32xf32> to vector<8x32xf32>
      %104 = arith.addf %100, %103 : vector<8x32xf32>
      %c0_66 = arith.constant 0 : index
      %c0_67 = arith.constant 0 : index
      %c0_68 = arith.constant 0 : index
      %105 = vector.load %arg4[%c0_66, %c0_67, %c0_68] : memref<1x8x32xbf16, #tpu.memory_space<vmem>>, vector<1x8x32xbf16>
      %106 = vector.shape_cast %105 : vector<1x8x32xbf16> to vector<8x32xbf16>
      %c2 = arith.constant 2 : index
      %c0_69 = arith.constant 0 : index
      %c0_70 = arith.constant 0 : index
      %107 = vector.load %arg5[%c2, %c0_69, %c0_70] : memref<3x32x32xbf16, #tpu.memory_space<vmem>>, vector<1x32x32xbf16>
      %108 = vector.shape_cast %107 : vector<1x32x32xbf16> to vector<32x32xbf16>
      %cst_71 = arith.constant dense<0.000000e+00> : vector<8x32xf32>
      %109 = tpu.matmul %106, %108, %cst_71 {dimension_numbers = #tpu.dot_dimension_numbers<[1], [0], [0], [1], [0, 0, 1, 1], [], []>} : vector<8x32xbf16>, vector<32x32xbf16>, vector<8x32xf32> -> vector<8x32xf32>
      %c2_72 = arith.constant 2 : index
      %c0_73 = arith.constant 0 : index
      %c0_74 = arith.constant 0 : index
      %110 = vector.load %arg6[%c2_72, %c0_73, %c0_74] : memref<3x1x32xf32, #tpu.memory_space<vmem>>, vector<1x1x32xf32>
      %111 = vector.shape_cast %110 : vector<1x1x32xf32> to vector<1x32xf32>
      %112 = vector.broadcast %111 : vector<1x32xf32> to vector<8x32xf32>
      %113 = arith.addf %109, %112 : vector<8x32xf32>
      %114 = arith.truncf %104 : vector<8x32xf32> to vector<8x32xbf16>
      %c0_75 = arith.constant 0 : index
      %c0_76 = arith.constant 0 : index
      %115 = vector.load %arg10[%c0_75, %c0_76] : memref<8x32xbf16, #tpu.memory_space<vmem>>, vector<8x32xbf16>
      tpu.vector_store %arg10[%c0_75, %c0_76], %114 {strides = array<i32>} : memref<8x32xbf16, #tpu.memory_space<vmem>>, vector<8x32xbf16>,
      %116 = arith.truncf %113 : vector<8x32xf32> to vector<8x32xbf16>
      %c0_77 = arith.constant 0 : index
      %c0_78 = arith.constant 0 : index
      %117 = vector.load %arg11[%c0_77, %c0_78] : memref<8x32xbf16, #tpu.memory_space<vmem>>, vector<8x32xbf16>
      tpu.vector_store %arg11[%c0_77, %c0_78], %116 {strides = array<i32>} : memref<8x32xbf16, #tpu.memory_space<vmem>>, vector<8x32xbf16>,
    } else {
    }
    %c0 = arith.constant 0 : index
    %c0_1 = arith.constant 0 : index
    %c0_2 = arith.constant 0 : index
    %3 = vector.load %arg2[%c0, %c0_1, %c0_2] : memref<1x8x32xbf16, #tpu.memory_space<vmem>>, vector<1x8x32xbf16>
    %4 = vector.shape_cast %3 : vector<1x8x32xbf16> to vector<8x32xbf16>
    %c0_3 = arith.constant 0 : index
    %c0_4 = arith.constant 0 : index
    %c0_5 = arith.constant 0 : index
    %5 = vector.load %arg5[%c0_3, %c0_4, %c0_5] : memref<3x32x32xbf16, #tpu.memory_space<vmem>>, vector<1x32x32xbf16>
    %6 = vector.shape_cast %5 : vector<1x32x32xbf16> to vector<32x32xbf16>
    %cst = arith.constant dense<0.000000e+00> : vector<8x32xf32>
    %7 = tpu.matmul %4, %6, %cst {dimension_numbers = #tpu.dot_dimension_numbers<[1], [0], [0], [1], [0, 0, 1, 1], [], []>} : vector<8x32xbf16>, vector<32x32xbf16>, vector<8x32xf32> -> vector<8x32xf32>
    %c0_6 = arith.constant 0 : index
    %c0_7 = arith.constant 0 : index
    %c0_8 = arith.constant 0 : index
    %8 = vector.load %arg6[%c0_6, %c0_7, %c0_8] : memref<3x1x32xf32, #tpu.memory_space<vmem>>, vector<1x1x32xf32>
    %9 = vector.shape_cast %8 : vector<1x1x32xf32> to vector<1x32xf32>
    %10 = vector.broadcast %9 : vector<1x32xf32> to vector<8x32xf32>
    %11 = arith.addf %7, %10 : vector<8x32xf32>
    %cst_9 = arith.constant 0.353553385 : f32
    %12 = vector.broadcast %cst_9 : f32 to vector<8x32xf32>
    %13 = arith.mulf %11, %12 : vector<8x32xf32>
    %14 = arith.truncf %13 : vector<8x32xf32> to vector<8x32xbf16>
    %15 = vector.extract_strided_slice %14 {offsets = [0, 0], sizes = [8, 8], strides = [1, 1]} : vector<8x32xbf16> to vector<8x8xbf16>
    %c0_10 = arith.constant 0 : index
    %c0_11 = arith.constant 0 : index
    %16 = vector.load %arg10[%c0_10, %c0_11] : memref<8x32xbf16, #tpu.memory_space<vmem>>, vector<8x8xbf16>
    %c0_12 = arith.constant 0 : index
    %c0_13 = arith.constant 0 : index
    %17 = vector.load %arg11[%c0_12, %c0_13] : memref<8x32xbf16, #tpu.memory_space<vmem>>, vector<8x8xbf16>
    %cst_14 = arith.constant dense<0.000000e+00> : vector<8x8xf32>
    %18 = tpu.matmul %15, %16, %cst_14 {dimension_numbers = #tpu.dot_dimension_numbers<[1], [1], [0], [0], [0, 0, 1, 0], [], []>} : vector<8x8xbf16>, vector<8x8xbf16>, vector<8x8xf32> -> vector<8x8xf32>
    %cst_15 = arith.constant dense<0xFF800000> : vector<8xf32>
    %19 = vector.multi_reduction <maximumf>, %18, %cst_15 [1] : vector<8x8xf32> to vector<8xf32>
    %20 = vector.shape_cast %19 : vector<8xf32> to vector<8x1xf32>
    %21 = vector.broadcast %20 : vector<8x1xf32> to vector<8x8xf32>
    %22 = arith.subf %18, %21 : vector<8x8xf32>
    %23 = math.exp %22 : vector<8x8xf32>
    %cst_16 = arith.constant dense<0.000000e+00> : vector<8xf32>
    %24 = vector.multi_reduction <add>, %23, %cst_16 [1] : vector<8x8xf32> to vector<8xf32>
    %25 = vector.shape_cast %24 : vector<8xf32> to vector<8x1xf32>
    %26 = tpu.reciprocal %25 {approx = true} : vector<8x1xf32> -> vector<8x1xf32>
    %27 = arith.truncf %23 : vector<8x8xf32> to vector<8x8xbf16>
    %cst_17 = arith.constant dense<0.000000e+00> : vector<8x8xf32>
    %28 = tpu.matmul %27, %17, %cst_17 {dimension_numbers = #tpu.dot_dimension_numbers<[1], [0], [0], [1], [0, 0, 1, 1], [], []>} : vector<8x8xbf16>, vector<8x8xbf16>, vector<8x8xf32> -> vector<8x8xf32>
    %29 = vector.broadcast %26 : vector<8x1xf32> to vector<8x8xf32>
    %30 = arith.mulf %28, %29 : vector<8x8xf32>
    %31 = arith.truncf %30 : vector<8x8xf32> to vector<8x8xbf16>
    %c0_18 = arith.constant 0 : index
    %c0_19 = arith.constant 0 : index
    %32 = vector.load %arg12[%c0_18, %c0_19] : memref<8x32xbf16, #tpu.memory_space<vmem>>, vector<8x8xbf16>
    tpu.vector_store %arg12[%c0_18, %c0_19], %31 {strides = array<i32>} : memref<8x32xbf16, #tpu.memory_space<vmem>>, vector<8x8xbf16>,
    %33 = vector.extract_strided_slice %14 {offsets = [0, 8], sizes = [8, 8], strides = [1, 1]} : vector<8x32xbf16> to vector<8x8xbf16>
    %c0_20 = arith.constant 0 : index
    %c8 = arith.constant 8 : index
    %34 = vector.load %arg10[%c0_20, %c8] : memref<8x32xbf16, #tpu.memory_space<vmem>>, vector<8x8xbf16>
    %c0_21 = arith.constant 0 : index
    %c8_22 = arith.constant 8 : index
    %35 = vector.load %arg11[%c0_21, %c8_22] : memref<8x32xbf16, #tpu.memory_space<vmem>>, vector<8x8xbf16>
    %cst_23 = arith.constant dense<0.000000e+00> : vector<8x8xf32>
    %36 = tpu.matmul %33, %34, %cst_23 {dimension_numbers = #tpu.dot_dimension_numbers<[1], [1], [0], [0], [0, 0, 1, 0], [], []>} : vector<8x8xbf16>, vector<8x8xbf16>, vector<8x8xf32> -> vector<8x8xf32>
    %cst_24 = arith.constant dense<0xFF800000> : vector<8xf32>
    %37 = vector.multi_reduction <maximumf>, %36, %cst_24 [1] : vector<8x8xf32> to vector<8xf32>
    %38 = vector.shape_cast %37 : vector<8xf32> to vector<8x1xf32>
    %39 = vector.broadcast %38 : vector<8x1xf32> to vector<8x8xf32>
    %40 = arith.subf %36, %39 : vector<8x8xf32>
    %41 = math.exp %40 : vector<8x8xf32>
    %cst_25 = arith.constant dense<0.000000e+00> : vector<8xf32>
    %42 = vector.multi_reduction <add>, %41, %cst_25 [1] : vector<8x8xf32> to vector<8xf32>
    %43 = vector.shape_cast %42 : vector<8xf32> to vector<8x1xf32>
    %44 = tpu.reciprocal %43 {approx = true} : vector<8x1xf32> -> vector<8x1xf32>
    %45 = arith.truncf %41 : vector<8x8xf32> to vector<8x8xbf16>
    %cst_26 = arith.constant dense<0.000000e+00> : vector<8x8xf32>
    %46 = tpu.matmul %45, %35, %cst_26 {dimension_numbers = #tpu.dot_dimension_numbers<[1], [0], [0], [1], [0, 0, 1, 1], [], []>} : vector<8x8xbf16>, vector<8x8xbf16>, vector<8x8xf32> -> vector<8x8xf32>
    %47 = vector.broadcast %44 : vector<8x1xf32> to vector<8x8xf32>
    %48 = arith.mulf %46, %47 : vector<8x8xf32>
    %49 = arith.truncf %48 : vector<8x8xf32> to vector<8x8xbf16>
    %c0_27 = arith.constant 0 : index
    %c8_28 = arith.constant 8 : index
    %50 = vector.load %arg12[%c0_27, %c8_28] : memref<8x32xbf16, #tpu.memory_space<vmem>>, vector<8x8xbf16>
    tpu.vector_store %arg12[%c0_27, %c8_28], %49 {strides = array<i32>} : memref<8x32xbf16, #tpu.memory_space<vmem>>, vector<8x8xbf16>,
    %51 = vector.extract_strided_slice %14 {offsets = [0, 16], sizes = [8, 8], strides = [1, 1]} : vector<8x32xbf16> to vector<8x8xbf16>
    %c0_29 = arith.constant 0 : index
    %c16 = arith.constant 16 : index
    %52 = vector.load %arg10[%c0_29, %c16] : memref<8x32xbf16, #tpu.memory_space<vmem>>, vector<8x8xbf16>
    %c0_30 = arith.constant 0 : index
    %c16_31 = arith.constant 16 : index
    %53 = vector.load %arg11[%c0_30, %c16_31] : memref<8x32xbf16, #tpu.memory_space<vmem>>, vector<8x8xbf16>
    %cst_32 = arith.constant dense<0.000000e+00> : vector<8x8xf32>
    %54 = tpu.matmul %51, %52, %cst_32 {dimension_numbers = #tpu.dot_dimension_numbers<[1], [1], [0], [0], [0, 0, 1, 0], [], []>} : vector<8x8xbf16>, vector<8x8xbf16>, vector<8x8xf32> -> vector<8x8xf32>
    %cst_33 = arith.constant dense<0xFF800000> : vector<8xf32>
    %55 = vector.multi_reduction <maximumf>, %54, %cst_33 [1] : vector<8x8xf32> to vector<8xf32>
    %56 = vector.shape_cast %55 : vector<8xf32> to vector<8x1xf32>
    %57 = vector.broadcast %56 : vector<8x1xf32> to vector<8x8xf32>
    %58 = arith.subf %54, %57 : vector<8x8xf32>
    %59 = math.exp %58 : vector<8x8xf32>
    %cst_34 = arith.constant dense<0.000000e+00> : vector<8xf32>
    %60 = vector.multi_reduction <add>, %59, %cst_34 [1] : vector<8x8xf32> to vector<8xf32>
    %61 = vector.shape_cast %60 : vector<8xf32> to vector<8x1xf32>
    %62 = tpu.reciprocal %61 {approx = true} : vector<8x1xf32> -> vector<8x1xf32>
    %63 = arith.truncf %59 : vector<8x8xf32> to vector<8x8xbf16>
    %cst_35 = arith.constant dense<0.000000e+00> : vector<8x8xf32>
    %64 = tpu.matmul %63, %53, %cst_35 {dimension_numbers = #tpu.dot_dimension_numbers<[1], [0], [0], [1], [0, 0, 1, 1], [], []>} : vector<8x8xbf16>, vector<8x8xbf16>, vector<8x8xf32> -> vector<8x8xf32>
    %65 = vector.broadcast %62 : vector<8x1xf32> to vector<8x8xf32>
    %66 = arith.mulf %64, %65 : vector<8x8xf32>
    %67 = arith.truncf %66 : vector<8x8xf32> to vector<8x8xbf16>
    %c0_36 = arith.constant 0 : index
    %c16_37 = arith.constant 16 : index
    %68 = vector.load %arg12[%c0_36, %c16_37] : memref<8x32xbf16, #tpu.memory_space<vmem>>, vector<8x8xbf16>
    tpu.vector_store %arg12[%c0_36, %c16_37], %67 {strides = array<i32>} : memref<8x32xbf16, #tpu.memory_space<vmem>>, vector<8x8xbf16>,
    %69 = vector.extract_strided_slice %14 {offsets = [0, 24], sizes = [8, 8], strides = [1, 1]} : vector<8x32xbf16> to vector<8x8xbf16>
    %c0_38 = arith.constant 0 : index
    %c24 = arith.constant 24 : index
    %70 = vector.load %arg10[%c0_38, %c24] : memref<8x32xbf16, #tpu.memory_space<vmem>>, vector<8x8xbf16>
    %c0_39 = arith.constant 0 : index
    %c24_40 = arith.constant 24 : index
    %71 = vector.load %arg11[%c0_39, %c24_40] : memref<8x32xbf16, #tpu.memory_space<vmem>>, vector<8x8xbf16>
    %cst_41 = arith.constant dense<0.000000e+00> : vector<8x8xf32>
    %72 = tpu.matmul %69, %70, %cst_41 {dimension_numbers = #tpu.dot_dimension_numbers<[1], [1], [0], [0], [0, 0, 1, 0], [], []>} : vector<8x8xbf16>, vector<8x8xbf16>, vector<8x8xf32> -> vector<8x8xf32>
    %cst_42 = arith.constant dense<0xFF800000> : vector<8xf32>
    %73 = vector.multi_reduction <maximumf>, %72, %cst_42 [1] : vector<8x8xf32> to vector<8xf32>
    %74 = vector.shape_cast %73 : vector<8xf32> to vector<8x1xf32>
    %75 = vector.broadcast %74 : vector<8x1xf32> to vector<8x8xf32>
    %76 = arith.subf %72, %75 : vector<8x8xf32>
    %77 = math.exp %76 : vector<8x8xf32>
    %cst_43 = arith.constant dense<0.000000e+00> : vector<8xf32>
    %78 = vector.multi_reduction <add>, %77, %cst_43 [1] : vector<8x8xf32> to vector<8xf32>
    %79 = vector.shape_cast %78 : vector<8xf32> to vector<8x1xf32>
    %80 = tpu.reciprocal %79 {approx = true} : vector<8x1xf32> -> vector<8x1xf32>
    %81 = arith.truncf %77 : vector<8x8xf32> to vector<8x8xbf16>
    %cst_44 = arith.constant dense<0.000000e+00> : vector<8x8xf32>
    %82 = tpu.matmul %81, %71, %cst_44 {dimension_numbers = #tpu.dot_dimension_numbers<[1], [0], [0], [1], [0, 0, 1, 1], [], []>} : vector<8x8xbf16>, vector<8x8xbf16>, vector<8x8xf32> -> vector<8x8xf32>
    %83 = vector.broadcast %80 : vector<8x1xf32> to vector<8x8xf32>
    %84 = arith.mulf %82, %83 : vector<8x8xf32>
    %85 = arith.truncf %84 : vector<8x8xf32> to vector<8x8xbf16>
    %c0_45 = arith.constant 0 : index
    %c24_46 = arith.constant 24 : index
    %86 = vector.load %arg12[%c0_45, %c24_46] : memref<8x32xbf16, #tpu.memory_space<vmem>>, vector<8x8xbf16>
    tpu.vector_store %arg12[%c0_45, %c24_46], %85 {strides = array<i32>} : memref<8x32xbf16, #tpu.memory_space<vmem>>, vector<8x8xbf16>,
    %c0_47 = arith.constant 0 : index
    %c0_48 = arith.constant 0 : index
    %87 = vector.load %arg12[%c0_47, %c0_48] : memref<8x32xbf16, #tpu.memory_space<vmem>>, vector<8x32xbf16>
    %c0_49 = arith.constant 0 : index
    %c0_50 = arith.constant 0 : index
    %88 = vector.load %arg7[%c0_49, %c0_50] : memref<32x32xbf16, #tpu.memory_space<vmem>>, vector<32x32xbf16>
    %cst_51 = arith.constant dense<0.000000e+00> : vector<8x32xf32>
    %89 = tpu.matmul %87, %88, %cst_51 {dimension_numbers = #tpu.dot_dimension_numbers<[1], [0], [0], [1], [0, 0, 1, 1], [], []>} : vector<8x32xbf16>, vector<32x32xbf16>, vector<8x32xf32> -> vector<8x32xf32>
    %c0_52 = arith.constant 0 : index
    %c0_53 = arith.constant 0 : index
    %90 = vector.load %arg8[%c0_52, %c0_53] : memref<1x32xf32, #tpu.memory_space<vmem>>, vector<1x32xf32>
    %91 = vector.broadcast %90 : vector<1x32xf32> to vector<8x32xf32>
    %92 = arith.addf %89, %91 : vector<8x32xf32>
    %c0_54 = arith.constant 0 : index
    %c0_55 = arith.constant 0 : index
    %c0_56 = arith.constant 0 : index
    %93 = vector.load %arg9[%c0_54, %c0_55, %c0_56] : memref<1x8x32xf32, #tpu.memory_space<vmem>>, vector<1x8x32xf32>
    %94 = vector.shape_cast %93 : vector<1x8x32xf32> to vector<8x32xf32>
    %95 = vector.shape_cast %92 : vector<8x32xf32> to vector<1x8x32xf32>
    tpu.vector_store %arg9[%c0_54, %c0_55, %c0_56], %95 {strides = array<i32>} : memref<1x8x32xf32, #tpu.memory_space<vmem>>, vector<1x8x32xf32>,
    return
  }
  func.func @transform_0(%arg0: i32, %arg1: i32) -> (i32, i32, i32) {
    %c0_i32 = arith.constant 0 : i32
    %c0_i32_0 = arith.constant 0 : i32
    return %arg0, %arg1, %c0_i32 : i32, i32, i32
  }
  func.func @transform_1(%arg0: i32, %arg1: i32) -> (i32, i32, i32) {
    %c0_i32 = arith.constant 0 : i32
    %c0_i32_0 = arith.constant 0 : i32
    %c0_i32_1 = arith.constant 0 : i32
    return %arg0, %c0_i32, %c0_i32_0 : i32, i32, i32
  }
  func.func @transform_2(%arg0: i32, %arg1: i32) -> (i32, i32, i32) {
    %c0_i32 = arith.constant 0 : i32
    %c0_i32_0 = arith.constant 0 : i32
    %c0_i32_1 = arith.constant 0 : i32
    return %arg0, %c0_i32, %c0_i32_0 : i32, i32, i32
  }
  func.func @transform_3(%arg0: i32, %arg1: i32) -> (i32, i32, i32) {
    %c0_i32 = arith.constant 0 : i32
    %c0_i32_0 = arith.constant 0 : i32
    %c0_i32_1 = arith.constant 0 : i32
    %c0_i32_2 = arith.constant 0 : i32
    return %c0_i32, %c0_i32_0, %c0_i32_1 : i32, i32, i32
  }
  func.func @transform_4(%arg0: i32, %arg1: i32) -> (i32, i32, i32) {
    %c0_i32 = arith.constant 0 : i32
    %c0_i32_0 = arith.constant 0 : i32
    %c0_i32_1 = arith.constant 0 : i32
    %c0_i32_2 = arith.constant 0 : i32
    return %c0_i32, %c0_i32_0, %c0_i32_1 : i32, i32, i32
  }
  func.func @transform_5(%arg0: i32, %arg1: i32) -> (i32, i32) {
    %c0_i32 = arith.constant 0 : i32
    %c0_i32_0 = arith.constant 0 : i32
    %c0_i32_1 = arith.constant 0 : i32
    return %c0_i32, %c0_i32_0 : i32, i32
  }
  func.func @transform_6(%arg0: i32, %arg1: i32) -> (i32, i32) {
    %c0_i32 = arith.constant 0 : i32
    %c0_i32_0 = arith.constant 0 : i32
    %c0_i32_1 = arith.constant 0 : i32
    return %c0_i32, %c0_i32_0 : i32, i32
  }
  func.func @transform_7(%arg0: i32, %arg1: i32) -> (i32, i32, i32) {
    %c0_i32 = arith.constant 0 : i32
    %c0_i32_0 = arith.constant 0 : i32
    return %arg0, %arg1, %c0_i32 : i32, i32, i32
  }
}

</mosaic_0001>

<llo_original>
// kernel: tpu_custom_call.1
$region0: #{tpu_custom_call.1}
  #allocation0 [shape = 'u32[]', space=smem, size = 0x4, offset = 0x4, fixed_abs, tag = 'smem constant byte address 0x4 - core index']
  #allocation1 [shape = 'u32[144,128]{1,0:T(1,128)}', space=vmem, size = 0x12000, scoped, tag = 'internal scratch']
  #allocation2 [shape = 'bf16[8,32]{1,0:T(8,128)(2,1)}', space=vmem, size = 0x800, scoped, tag = 'scratch operand']
  #allocation3 [shape = 'bf16[8,32]{1,0:T(8,128)(2,1)}', space=vmem, size = 0x800, scoped, tag = 'scratch operand']
  #allocation4 [shape = 'bf16[8,32]{1,0:T(8,128)(2,1)}', space=vmem, size = 0x800, scoped, tag = 'scratch operand']
  %s0 = inlined_call_operand.hbm [shape: bf16[2,8,32], index: 0, kind: input, shape index: {}]
  %s1 = inlined_call_operand.hbm [shape: bf16[2,8,32], index: 1, kind: input, shape index: {}]
  %s2 = inlined_call_operand.hbm [shape: bf16[2,8,32], index: 2, kind: input, shape index: {}]
  %s3 = inlined_call_operand.hbm [shape: bf16[3,32,32], index: 3, kind: input, shape index: {}]
  %s4 = inlined_call_operand.hbm [shape: f32[3,1,32], index: 4, kind: input, shape index: {}]
  %s5 = inlined_call_operand.vmem [shape: bf16[32,32], index: 5, kind: input, shape index: {}]
  %s6 = inlined_call_operand.vmem [shape: f32[1,32], index: 6, kind: input, shape index: {}]
  %s7 = inlined_call_operand.hbm [shape: f32[2,8,32], index: 7, kind: output, shape index: {}]
  %s8 = sld [smem:[#allocation0]]
  $region85: #{tpu_custom_call.1} parent=0
    _
  %s10 = ssub.s32 1, %s8
  %s11 = scalar_select 0, %s10, %s8
  $region1: #{tpu_custom_call.1} parent=0
    #allocation5 [shape = 'u8[4096]{0}', space=vmem, size = 0x1000, scoped, tag = 'input window, operand 0']
    #allocation6 [shape = 's32[2]{0}', space=sflag, size = 0x8, scoped, tag = 'scoped memory for tpu_custom_call.1']
    #allocation7 [shape = 's32[2]{0}', space=sflag, size = 0x8, scoped, tag = 'scoped memory for tpu_custom_call.1']
    #allocation8 [shape = 'u8[4096]{0}', space=vmem, size = 0x1000, scoped, tag = 'input window, operand 1']
    #allocation9 [shape = 's32[2]{0}', space=sflag, size = 0x8, scoped, tag = 'scoped memory for tpu_custom_call.1']
    #allocation10 [shape = 'u8[4096]{0}', space=vmem, size = 0x1000, scoped, tag = 'input window, operand 2']
    #allocation11 [shape = 'u8[24576]{0}', space=vmem, size = 0x6000, scoped, tag = 'input window, operand 3, single buffered']
    #allocation12 [shape = 's32[1]{0}', space=sflag, size = 0x4, scoped, tag = 'scoped memory for tpu_custom_call.1']
    #allocation13 [shape = 'u8[1536]{0}', space=vmem, size = 0x800, scoped, tag = 'input window, operand 4, single buffered']
    #allocation14 [shape = 'u8[8192]{0}', space=vmem, size = 0x2000, scoped, tag = 'output window, operand 0']
    %12 = vsyncpa [#allocation6], 0
    %s13 = scalar_lea.sflag [#allocation6], 1
    %14 = vsyncpa %s13, 0
    %15 = vsyncpa [#allocation9], 0
    %s16 = scalar_lea.sflag [#allocation9], 1
    %17 = vsyncpa %s16, 0
    %18 = vsyncpa [#allocation12], 0
    %19 = vsyncpa [#allocation7], 0
    %s20 = scalar_lea.sflag [#allocation7], 1
    %21 = vsyncpa %s20, 0
    loop: start=0, step=1, limit=4
    $region2: #{tpu_custom_call.1} parent=1 // loop_pre_header
      _
    $region3: #{tpu_custom_call.1} parent=1 // loop_header
      %s23 = sphi 0, %s27
      %p24 = scmp.ge.s32.totalorder %s23, 4
      %s30 = sphi 0, %s42
      %s31 = sphi 0, %s38
      %s32 = sphi 0, %s30
      %s33 = sphi 0, %s31
      %s34 = sphi 0, %s32
      %s35 = sphi 0, %s33
      %s47 = sphi 0, %s49
      %s50 = sphi 0, %s47
      %s51 = sphi 0, %s50
      %s67 = sphi 0, %s51
      %s73 = sphi 0, %s75
      %s76 = sphi 0, %s73
      %s77 = sphi 0, %s76
      %s93 = sphi 0, %s77
      %s99 = sphi 0, %s101
      %s102 = sphi 0, %s99
      %s103 = sphi 0, %s102
      %s119 = sphi 0, %s103
      %s123 = sphi 0, %s123
      %s125 = sphi 0, %s123
      %s126 = sphi 0, %s125
      %s140 = sphi 0, %s126
      %s144 = sphi 0, %s144
      %s146 = sphi 0, %s144
      %s147 = sphi 0, %s146
      %s161 = sphi 0, %s147
      %s165 = sphi 0, %s165
      %s167 = sphi 0, %s165
      %s168 = sphi 0, %s167
      %s182 = sphi 0, %s168
      %s186 = sphi 0, %s186
      %s188 = sphi 0, %s186
      %s189 = sphi 0, %s188
      %s203 = sphi 0, %s189
      %s211 = sphi 0, %s213
      %s214 = sphi 0, %s211
      %s215 = sphi 0, %s214
      %s231 = sphi 0, %s215
    $region4: #{tpu_custom_call.1} parent=1 // loop_header_branch
      %26 = sbr.rel (%p24) target = $region8
    $region5: #{tpu_custom_call.1} parent=1 // loop_body
      %s28 = ssub.s32 %s23, 1
      %s29 = ssub.s32 %s23, 2
      %s36 = sadd.s32 1, %s31
      %p37 = scmp.ge.s32.totalorder %s36, 1
      %s38 = scalar_select %p37, 0, %s36
      %s39 = sadd.s32 1, %s30
      %s40 = scalar_select %p37, %s39, %s30
      %p41 = scmp.ge.s32.totalorder %s40, 2
      %s42 = scalar_select %p41, 0, %s40
      %s43 = ssub.s32 %s30, %s42
      %s44 = ssub.s32 %s31, %s38
      %s45 = sor.u32 %s43, %s44
      %p46 = scmp.eq.s32.totalorder %s45, 0
      %s48 = sadd.s32 %s47, 1
      %s49 = scalar_select %p46, %s47, %s48
      %p52 = pneg %p46
      %p53 = scmp.eq.s32.totalorder %s23, 1
      %p54 = por %p52, %p53
      %p55 = scmp.ne.s32.totalorder %s47, %s50
      %p56 = scmp.eq.s32.totalorder %s23, 0
      %p57 = por %p55, %p56
      %p58 = scmp.ne.s32.totalorder %s47, %s50
      %p59 = scmp.eq.s32.totalorder %s28, 1
      %p60 = por %p58, %p59
      %p61 = scmp.ne.s32.totalorder %s50, %s51
      %p62 = scmp.eq.s32.totalorder %s28, 0
      %p63 = por %p61, %p62
      %p64 = scmp.ne.s32.totalorder %s50, %s51
      %p65 = scmp.eq.s32.totalorder %s29, 1
      %p66 = por %p64, %p65
      %p68 = scmp.ne.s32.totalorder %s51, %s67
      %p69 = scmp.eq.s32.totalorder %s29, 0
      %p70 = por %p68, %p69
      %s71 = ssub.s32 %s30, %s42
      %p72 = scmp.eq.s32.totalorder %s71, 0
      %s74 = sadd.s32 %s73, 1
      %s75 = scalar_select %p72, %s73, %s74
      %p78 = pneg %p72
      %p79 = scmp.eq.s32.totalorder %s23, 1
      %p80 = por %p78, %p79
      %p81 = scmp.ne.s32.totalorder %s73, %s76
      %p82 = scmp.eq.s32.totalorder %s23, 0
      %p83 = por %p81, %p82
      %p84 = scmp.ne.s32.totalorder %s73, %s76
      %p85 = scmp.eq.s32.totalorder %s28, 1
      %p86 = por %p84, %p85
      %p87 = scmp.ne.s32.totalorder %s76, %s77
      %p88 = scmp.eq.s32.totalorder %s28, 0
      %p89 = por %p87, %p88
      %p90 = scmp.ne.s32.totalorder %s76, %s77
      %p91 = scmp.eq.s32.totalorder %s29, 1
      %p92 = por %p90, %p91
      %p94 = scmp.ne.s32.totalorder %s77, %s93
      %p95 = scmp.eq.s32.totalorder %s29, 0
      %p96 = por %p94, %p95
      %s97 = ssub.s32 %s30, %s42
      %p98 = scmp.eq.s32.totalorder %s97, 0
      %s100 = sadd.s32 %s99, 1
      %s101 = scalar_select %p98, %s99, %s100
      %p104 = pneg %p98
      %p105 = scmp.eq.s32.totalorder %s23, 1
      %p106 = por %p104, %p105
      %p107 = scmp.ne.s32.totalorder %s99, %s102
      %p108 = scmp.eq.s32.totalorder %s23, 0
      %p109 = por %p107, %p108
      %p110 = scmp.ne.s32.totalorder %s99, %s102
      %p111 = scmp.eq.s32.totalorder %s28, 1
      %p112 = por %p110, %p111
      %p113 = scmp.ne.s32.totalorder %s102, %s103
      %p114 = scmp.eq.s32.totalorder %s28, 0
      %p115 = por %p113, %p114
      %p116 = scmp.ne.s32.totalorder %s102, %s103
      %p117 = scmp.eq.s32.totalorder %s29, 1
      %p118 = por %p116, %p117
      %p120 = scmp.ne.s32.totalorder %s103, %s119
      %p121 = scmp.eq.s32.totalorder %s29, 0
      %p122 = por %p120, %p121
      %s124 = sadd.s32 %s123, 1
      %p127 = scmp.eq.s32.totalorder %s23, 1
      %p128 = scmp.ne.s32.totalorder %s123, %s125
      %p129 = scmp.eq.s32.totalorder %s23, 0
      %p130 = por %p128, %p129
      %p131 = scmp.ne.s32.totalorder %s123, %s125
      %p132 = scmp.eq.s32.totalorder %s28, 1
      %p133 = por %p131, %p132
      %p134 = scmp.ne.s32.totalorder %s125, %s126
      %p135 = scmp.eq.s32.totalorder %s28, 0
      %p136 = por %p134, %p135
      %p137 = scmp.ne.s32.totalorder %s125, %s126
      %p138 = scmp.eq.s32.totalorder %s29, 1
      %p139 = por %p137, %p138
      %p141 = scmp.ne.s32.totalorder %s126, %s140
      %p142 = scmp.eq.s32.totalorder %s29, 0
      %p143 = por %p141, %p142
      %s145 = sadd.s32 %s144, 1
      %p148 = scmp.eq.s32.totalorder %s23, 1
      %p149 = scmp.ne.s32.totalorder %s144, %s146
      %p150 = scmp.eq.s32.totalorder %s23, 0
      %p151 = por %p149, %p150
      %p152 = scmp.ne.s32.totalorder %s144, %s146
      %p153 = scmp.eq.s32.totalorder %s28, 1
      %p154 = por %p152, %p153
      %p155 = scmp.ne.s32.totalorder %s146, %s147
      %p156 = scmp.eq.s32.totalorder %s28, 0
      %p157 = por %p155, %p156
      %p158 = scmp.ne.s32.totalorder %s146, %s147
      %p159 = scmp.eq.s32.totalorder %s29, 1
      %p160 = por %p158, %p159
      %p162 = scmp.ne.s32.totalorder %s147, %s161
      %p163 = scmp.eq.s32.totalorder %s29, 0
      %p164 = por %p162, %p163
      %s166 = sadd.s32 %s165, 1
      %p169 = scmp.eq.s32.totalorder %s23, 1
      %p170 = scmp.ne.s32.totalorder %s165, %s167
      %p171 = scmp.eq.s32.totalorder %s23, 0
      %p172 = por %p170, %p171
      %p173 = scmp.ne.s32.totalorder %s165, %s167
      %p174 = scmp.eq.s32.totalorder %s28, 1
      %p175 = por %p173, %p174
      %p176 = scmp.ne.s32.totalorder %s167, %s168
      %p177 = scmp.eq.s32.totalorder %s28, 0
      %p178 = por %p176, %p177
      %p179 = scmp.ne.s32.totalorder %s167, %s168
      %p180 = scmp.eq.s32.totalorder %s29, 1
      %p181 = por %p179, %p180
      %p183 = scmp.ne.s32.totalorder %s168, %s182
      %p184 = scmp.eq.s32.totalorder %s29, 0
      %p185 = por %p183, %p184
      %s187 = sadd.s32 %s186, 1
      %p190 = scmp.eq.s32.totalorder %s23, 1
      %p191 = scmp.ne.s32.totalorder %s186, %s188
      %p192 = scmp.eq.s32.totalorder %s23, 0
      %p193 = por %p191, %p192
      %p194 = scmp.ne.s32.totalorder %s186, %s188
      %p195 = scmp.eq.s32.totalorder %s28, 1
      %p196 = por %p194, %p195
      %p197 = scmp.ne.s32.totalorder %s188, %s189
      %p198 = scmp.eq.s32.totalorder %s28, 0
      %p199 = por %p197, %p198
      %p200 = scmp.ne.s32.totalorder %s188, %s189
      %p201 = scmp.eq.s32.totalorder %s29, 1
      %p202 = por %p200, %p201
      %p204 = scmp.ne.s32.totalorder %s189, %s203
      %p205 = scmp.eq.s32.totalorder %s29, 0
      %p206 = por %p204, %p205
      %s207 = ssub.s32 %s30, %s42
      %s208 = ssub.s32 %s31, %s38
      %s209 = sor.u32 %s207, %s208
      %p210 = scmp.eq.s32.totalorder %s209, 0
      %s212 = sadd.s32 %s211, 1
      %s213 = scalar_select %p210, %s211, %s212
      %p216 = pneg %p210
      %p217 = scmp.eq.s32.totalorder %s23, 1
      %p218 = por %p216, %p217
      %p219 = scmp.ne.s32.totalorder %s211, %s214
      %p220 = scmp.eq.s32.totalorder %s23, 0
      %p221 = por %p219, %p220
      %p222 = scmp.ne.s32.totalorder %s211, %s214
      %p223 = scmp.eq.s32.totalorder %s28, 1
      %p224 = por %p222, %p223
      %p225 = scmp.ne.s32.totalorder %s214, %s215
      %p226 = scmp.eq.s32.totalorder %s28, 0
      %p227 = por %p225, %p226
      %p228 = scmp.ne.s32.totalorder %s214, %s215
      %p229 = scmp.eq.s32.totalorder %s29, 1
      %p230 = por %p228, %p229
      %p232 = scmp.ne.s32.totalorder %s215, %s231
      %p233 = scmp.eq.s32.totalorder %s29, 0
      %p234 = por %p232, %p233
      %p235 = scmp.le.s32.totalorder 1, %s23
      %p236 = scmp.lt.s32.totalorder %s23, 3
      %p237 = pnand %p235, %p236
      %p238 = pneg %p237
      // Predicated region
      $region9: #{tpu_custom_call.1} parent=5 // pred_check
        _
      $region10: #{tpu_custom_call.1} parent=5 // pred_check_branch
        %240 = sbr.rel (%p237) target = $region12
      $region11: #{tpu_custom_call.1} parent=5 // pred_region
        %s241 = ssub.s32 %s23, 1
        // Predicated region
        $region13: #{tpu_custom_call.1} parent=11 // pred_check
          %p242 = pneg %p136
        $region14: #{tpu_custom_call.1} parent=11 // pred_check_branch
          %244 = sbr.rel (%p242) target = $region16
        $region15: #{tpu_custom_call.1} parent=11 // pred_region
          %s246 = ssub.s32 768, 768
          %247 = vsyncadd [#allocation12], %s246
          %s248 = sshll.u32 [#allocation11], 4
          %s249 = int_to_ptr.vmem [resolvable:$true] %s248
          %254 = dma.hbm_to_vmem [thread:$0]  %s3, 768, %s249, [#allocation12], 64, 64, 4
        $region16: #{tpu_custom_call.1} parent=11 // pred_fallthru
          _
        // Predicated region
        $region17: #{tpu_custom_call.1} parent=11 // pred_check
          %p255 = pneg %p157
        $region18: #{tpu_custom_call.1} parent=11 // pred_check_branch
          %257 = sbr.rel (%p255) target = $region20
        $region19: #{tpu_custom_call.1} parent=11 // pred_region
          %s259 = ssub.s32 48, 48
          %260 = vsyncadd [#allocation12], %s259
          %s261 = sshll.u32 [#allocation13], 4
          %s262 = int_to_ptr.vmem [resolvable:$true] %s261
          %267 = dma.hbm_to_vmem [thread:$0]  %s4, 48, %s262, [#allocation12], 16, 16, 1
        $region20: #{tpu_custom_call.1} parent=11 // pred_fallthru
          _
        // Predicated region
        $region21: #{tpu_custom_call.1} parent=11 // pred_check
          %p268 = pneg %p178
        $region22: #{tpu_custom_call.1} parent=11 // pred_check_branch
          %270 = sbr.rel (%p268) target = $region24
        $region23: #{tpu_custom_call.1} parent=11 // pred_region
          _
        $region24: #{tpu_custom_call.1} parent=11 // pred_fallthru
          _
        // Predicated region
        $region25: #{tpu_custom_call.1} parent=11 // pred_check
          %p271 = pneg %p199
        $region26: #{tpu_custom_call.1} parent=11 // pred_check_branch
          %273 = sbr.rel (%p271) target = $region28
        $region27: #{tpu_custom_call.1} parent=11 // pred_region
          _
        $region28: #{tpu_custom_call.1} parent=11 // pred_fallthru
          _
      $region12: #{tpu_custom_call.1} parent=5 // pred_fallthru
        _
      %p274 = scmp.lt.s32.totalorder %s23, 2
      // Predicated region
      $region29: #{tpu_custom_call.1} parent=5 // pred_check
        %p275 = pneg %p274
      $region30: #{tpu_custom_call.1} parent=5 // pred_check_branch
        %277 = sbr.rel (%p275) target = $region32
      $region31: #{tpu_custom_call.1} parent=5 // pred_region
        // Predicated region
        $region33: #{tpu_custom_call.1} parent=31 // pred_check
          %p278 = pneg %p57
        $region34: #{tpu_custom_call.1} parent=31 // pred_check_branch
          %280 = sbr.rel (%p278) target = $region36
        $region35: #{tpu_custom_call.1} parent=31 // pred_region
          %s281 = sand.u32 %s47, 1
          %s282 = scalar_lea.sflag [#allocation6], %s281
          %s283 = sand.u32 %s47, 1
          %s284 = smul.addr %s283, 4
          %s285 = scalar_lea.vmem [#allocation5], %s284
          %s287 = ssub.s32 64, 64
          %288 = vsyncadd %s282, %s287
          %s289 = sadd.s32 %s31, %s30
          %s290 = smul.addr %s289, 64
          %s291 = scalar_lea.hbm %s0, %s290
          %s293 = sshll.u32 %s285, 4
          %s294 = int_to_ptr.vmem [resolvable:$true] %s293
          %296 = dma.hbm_to_vmem [thread:$0]  %s291, 64, %s294, %s282
        $region36: #{tpu_custom_call.1} parent=31 // pred_fallthru
          _
        // Predicated region
        $region37: #{tpu_custom_call.1} parent=31 // pred_check
          %p297 = pneg %p83
        $region38: #{tpu_custom_call.1} parent=31 // pred_check_branch
          %299 = sbr.rel (%p297) target = $region40
        $region39: #{tpu_custom_call.1} parent=31 // pred_region
          %s300 = sand.u32 %s23, 1
          %s301 = scalar_lea.sflag [#allocation9], %s300
          %s302 = sand.u32 %s73, 1
          %s303 = smul.addr %s302, 4
          %s304 = scalar_lea.vmem [#allocation8], %s303
          %s306 = ssub.s32 64, 64
          %307 = vsyncadd %s301, %s306
          %s308 = smul.addr %s30, 64
          %s309 = scalar_lea.hbm %s1, %s308
          %s311 = sshll.u32 %s304, 4
          %s312 = int_to_ptr.vmem [resolvable:$true] %s311
          %314 = dma.hbm_to_vmem [thread:$0]  %s309, 64, %s312, %s301
        $region40: #{tpu_custom_call.1} parent=31 // pred_fallthru
          _
        // Predicated region
        $region41: #{tpu_custom_call.1} parent=31 // pred_check
          %p315 = pneg %p109
        $region42: #{tpu_custom_call.1} parent=31 // pred_check_branch
          %317 = sbr.rel (%p315) target = $region44
        $region43: #{tpu_custom_call.1} parent=31 // pred_region
          %s318 = sand.u32 %s23, 1
          %s319 = scalar_lea.sflag [#allocation9], %s318
          %s320 = sand.u32 %s99, 1
          %s321 = smul.addr %s320, 4
          %s322 = scalar_lea.vmem [#allocation10], %s321
          %s324 = ssub.s32 64, 64
          %325 = vsyncadd %s319, %s324
          %s326 = smul.addr %s30, 64
          %s327 = scalar_lea.hbm %s2, %s326
          %s329 = sshll.u32 %s322, 4
          %s330 = int_to_ptr.vmem [resolvable:$true] %s329
          %332 = dma.hbm_to_vmem [thread:$0]  %s327, 64, %s330, %s319
        $region44: #{tpu_custom_call.1} parent=31 // pred_fallthru
          _
      $region32: #{tpu_custom_call.1} parent=5 // pred_fallthru
        _
      %p333 = scmp.le.s32.totalorder 1, %s23
      %p334 = scmp.lt.s32.totalorder %s23, 3
      %p335 = pnand %p333, %p334
      %p336 = pneg %p335
      // Predicated region
      $region45: #{tpu_custom_call.1} parent=5 // pred_check
        _
      $region46: #{tpu_custom_call.1} parent=5 // pred_check_branch
        %338 = sbr.rel (%p335) target = $region48
      $region47: #{tpu_custom_call.1} parent=5 // pred_region
        %s339 = ssub.s32 %s23, 1
        %s340 = sand.u32 %s50, 1
        %s341 = scalar_lea.sflag [#allocation6], %s340
        %s342 = sand.u32 %s50, 1
        %s343 = smul.addr %s342, 4
        %s344 = scalar_lea.vmem [#allocation5], %s343
        // Predicated region
        $region49: #{tpu_custom_call.1} parent=47 // pred_check
          %p345 = pneg %p63
        $region50: #{tpu_custom_call.1} parent=47 // pred_check_branch
          %347 = sbr.rel (%p345) target = $region52
        $region51: #{tpu_custom_call.1} parent=47 // pred_region
          %348 = dma.done %s341, 64
        $region52: #{tpu_custom_call.1} parent=47 // pred_fallthru
          _
        %s349 = sand.u32 %s28, 1
        %s350 = scalar_lea.sflag [#allocation9], %s349
        %s351 = sand.u32 %s76, 1
        %s352 = smul.addr %s351, 4
        %s353 = scalar_lea.vmem [#allocation8], %s352
        // Predicated region
        $region53: #{tpu_custom_call.1} parent=47 // pred_check
          %p354 = pneg %p89
        $region54: #{tpu_custom_call.1} parent=47 // pred_check_branch
          %356 = sbr.rel (%p354) target = $region56
        $region55: #{tpu_custom_call.1} parent=47 // pred_region
          %357 = dma.done %s350, 64
        $region56: #{tpu_custom_call.1} parent=47 // pred_fallthru
          _
        %s358 = sand.u32 %s28, 1
        %s359 = scalar_lea.sflag [#allocation9], %s358
        %s360 = sand.u32 %s102, 1
        %s361 = smul.addr %s360, 4
        %s362 = scalar_lea.vmem [#allocation10], %s361
        // Predicated region
        $region57: #{tpu_custom_call.1} parent=47 // pred_check
          %p363 = pneg %p115
        $region58: #{tpu_custom_call.1} parent=47 // pred_check_branch
          %365 = sbr.rel (%p363) target = $region60
        $region59: #{tpu_custom_call.1} parent=47 // pred_region
          %366 = dma.done %s359, 64
        $region60: #{tpu_custom_call.1} parent=47 // pred_fallthru
          _
        // Predicated region
        $region61: #{tpu_custom_call.1} parent=47 // pred_check
          %p367 = pneg %p136
        $region62: #{tpu_custom_call.1} parent=47 // pred_check_branch
          %369 = sbr.rel (%p367) target = $region64
        $region63: #{tpu_custom_call.1} parent=47 // pred_region
          %370 = dma.done [#allocation12], 768
        $region64: #{tpu_custom_call.1} parent=47 // pred_fallthru
          _
        // Predicated region
        $region65: #{tpu_custom_call.1} parent=47 // pred_check
          %p371 = pneg %p157
        $region66: #{tpu_custom_call.1} parent=47 // pred_check_branch
          %373 = sbr.rel (%p371) target = $region68
        $region67: #{tpu_custom_call.1} parent=47 // pred_region
          %374 = dma.done [#allocation12], 48
        $region68: #{tpu_custom_call.1} parent=47 // pred_fallthru
          _
        %s375 = sand.u32 %s50, 1
        %s376 = scalar_lea.sflag [#allocation6], %s375
        %s377 = sand.u32 %s50, 1
        %s378 = smul.addr %s377, 4
        %s379 = scalar_lea.vmem [#allocation5], %s378
        %p380 = pneg %p63
        %p381 = pneg %p60
        %s382 = sand.u32 %s28, 1
        %s383 = scalar_lea.sflag [#allocation9], %s382
        %s384 = sand.u32 %s76, 1
        %s385 = smul.addr %s384, 4
        %s386 = scalar_lea.vmem [#allocation8], %s385
        %p387 = pneg %p89
        %p388 = pneg %p86
        %s389 = sand.u32 %s28, 1
        %s390 = scalar_lea.sflag [#allocation9], %s389
        %s391 = sand.u32 %s102, 1
        %s392 = smul.addr %s391, 4
        %s393 = scalar_lea.vmem [#allocation10], %s392
        %p394 = pneg %p115
        %p395 = pneg %p112
        %p396 = pneg %p136
        %p397 = pneg %p133
        %p398 = pneg %p157
        %p399 = pneg %p154
        %p400 = pneg %p178
        %p401 = pneg %p175
        %p402 = pneg %p199
        %p403 = pneg %p196
        %p404 = pneg %p227
        %p405 = pneg %p224
        %s406 = sand.u32 %s214, 1
        %s407 = scalar_lea.sflag [#allocation7], %s406
        %s408 = sand.u32 %s214, 1
        %s409 = smul.addr %s408, 8
        %s410 = scalar_lea.vmem [#allocation14], %s409
        %p412 = scmp.eq.s32.totalorder %s33, 0
        // Predicated region
        $region69: #{tpu_custom_call.1} parent=47 // pred_check
          %p413 = pneg %p412
        $region70: #{tpu_custom_call.1} parent=47 // pred_check_branch
          %415 = sbr.rel (%p413) target = $region72
        $region71: #{tpu_custom_call.1} parent=47 // pred_region
          %v416 = vld [vmem:[%s353] sm:$0xf]
          %s417 = scalar_lea.vmem [#allocation11], 16
          %v418 = vld [vmem:[%s417] sm:$0xf]
          %v419 = vld [vmem:[%s417 + $0x4] sm:$0xf]
          %v420 = vld [vmem:[%s417 + $0x8] sm:$0xf]
          %v421 = vld [vmem:[%s417 + $0xc] sm:$0xf]
          %s422 = scalar_lea.vmem [#allocation13], 1
          %v423 = vld [vmem:[%s422] sm:$0x1]
          %v425 = vlaneseq
          %v426 = vshrl.u32 %v425, 7
          %v427 = vsub.s32 0, %v426
          %v428 = vrot.slane %v423, %v427
          %v434 = vunpack.c.l.b16 %v418
          %v435 = vunpack.c.l.b16 %v419
          %v436 = vunpack.c.l.b16 %v420
          %v437 = vunpack.c.l.b16 %v421
          %v438 = vpack.c.b16 %v435, %v434
          %v439 = vpack.c.b16 %v437, %v436
          %vm442 = vcmask 261120
          %v444 = vsel %vm442, %v416, 0
          %446 = vmatprep.subr.bf16.mxu0 0
          %447 = vmatpush1.bf16.msra.mxu0 %v438
          %448 = vmatprep.subr.bf16.mxu0 0
          %449 = vmatpush1.bf16.msra.mxu0 %v439
          %450 = vmatprep.subr.bf16.mxu0 0
          %451 = vmatpush1.bf16.msra.mxu0 0
          %452 = vmatprep.subr.bf16.mxu0 0
          %453 = vmatpush1.bf16.msra.mxu0 0
          %454 = vmatprep.subr.bf16.mxu0 0
          %455 = vmatpush1.bf16.msra.mxu0 0
          %456 = vmatprep.subr.bf16.mxu0 0
          %457 = vmatpush1.bf16.msra.mxu0 0
          %458 = vmatprep.subr.bf16.mxu0 0
          %459 = vmatpush1.bf16.msra.mxu0 0
          %460 = vmatprep.subr.bf16.mxu0 0
          %461 = vmatpush1.bf16.msra.mxu0 0
          %462 = vmatprep.subr.bf16.mxu0 0
          %463 = vmatpush1.bf16.msra.mxu0 0
          %464 = vmatprep.subr.bf16.mxu0 0
          %465 = vmatpush1.bf16.msra.mxu0 0
          %466 = vmatprep.subr.bf16.mxu0 0
          %467 = vmatpush1.bf16.msra.mxu0 0
          %468 = vmatprep.subr.bf16.mxu0 0
          %469 = vmatpush1.bf16.msra.mxu0 0
          %470 = vmatprep.subr.bf16.mxu0 0
          %471 = vmatpush1.bf16.msra.mxu0 0
          %472 = vmatprep.subr.bf16.mxu0 0
          %473 = vmatpush1.bf16.msra.mxu0 0
          %474 = vmatprep.subr.bf16.mxu0 0
          %475 = vmatpush1.bf16.msra.mxu0 0
          %476 = vmatprep.subr.bf16.mxu0 0
          %477 = vmatpush1.bf16.msra.mxu0 0
          %478 = vmatprep.mubr.bf16.mxu0 0
          %479 = vmatmul.mubr.bf16.gmra.mrb[0].mxu0 %v444
          %v480 = vpop.f32.mrb[0].mxu0
          %v481 = vadd.f32 %v428, %v480
          %v482 = vpop.f32.mrb[0].mxu0
          %v483 = vpop.f32.mrb[0].mxu0
          %v484 = vpop.f32.mrb[0].mxu0
          %485 = vdwg.mxu0
          %v486 = vld [vmem:[%s362] sm:$0xf]
          %s487 = scalar_lea.vmem [#allocation11], 32
          %v488 = vld [vmem:[%s487] sm:$0xf]
          %v489 = vld [vmem:[%s487 + $0x4] sm:$0xf]
          %v490 = vld [vmem:[%s487 + $0x8] sm:$0xf]
          %v491 = vld [vmem:[%s487 + $0xc] sm:$0xf]
          %s492 = scalar_lea.vmem [#allocation13], 2
          %v493 = vld [vmem:[%s492] sm:$0x1]
          %v495 = vlaneseq
          %v496 = vshrl.u32 %v495, 7
          %v497 = vsub.s32 0, %v496
          %v498 = vrot.slane %v493, %v497
          %v504 = vunpack.c.l.b16 %v488
          %v505 = vunpack.c.l.b16 %v489
          %v506 = vunpack.c.l.b16 %v490
          %v507 = vunpack.c.l.b16 %v491
          %v508 = vpack.c.b16 %v505, %v504
          %v509 = vpack.c.b16 %v507, %v506
          %v513 = vsel %vm442, %v486, 0
          %515 = vmatprep.subr.bf16.mxu0 0
          %516 = vmatpush1.bf16.msra.mxu0 %v508
          %517 = vmatprep.subr.bf16.mxu0 0
          %518 = vmatpush1.bf16.msra.mxu0 %v509
          %519 = vmatprep.subr.bf16.mxu0 0
          %520 = vmatpush1.bf16.msra.mxu0 0
          %521 = vmatprep.subr.bf16.mxu0 0
          %522 = vmatpush1.bf16.msra.mxu0 0
          %523 = vmatprep.subr.bf16.mxu0 0
          %524 = vmatpush1.bf16.msra.mxu0 0
          %525 = vmatprep.subr.bf16.mxu0 0
          %526 = vmatpush1.bf16.msra.mxu0 0
          %527 = vmatprep.subr.bf16.mxu0 0
          %528 = vmatpush1.bf16.msra.mxu0 0
          %529 = vmatprep.subr.bf16.mxu0 0
          %530 = vmatpush1.bf16.msra.mxu0 0
          %531 = vmatprep.subr.bf16.mxu0 0
          %532 = vmatpush1.bf16.msra.mxu0 0
          %533 = vmatprep.subr.bf16.mxu0 0
          %534 = vmatpush1.bf16.msra.mxu0 0
          %535 = vmatprep.subr.bf16.mxu0 0
          %536 = vmatpush1.bf16.msra.mxu0 0
          %537 = vmatprep.subr.bf16.mxu0 0
          %538 = vmatpush1.bf16.msra.mxu0 0
          %539 = vmatprep.subr.bf16.mxu0 0
          %540 = vmatpush1.bf16.msra.mxu0 0
          %541 = vmatprep.subr.bf16.mxu0 0
          %542 = vmatpush1.bf16.msra.mxu0 0
          %543 = vmatprep.subr.bf16.mxu0 0
          %544 = vmatpush1.bf16.msra.mxu0 0
          %545 = vmatprep.subr.bf16.mxu0 0
          %546 = vmatpush1.bf16.msra.mxu0 0
          %547 = vmatprep.mubr.bf16.mxu0 0
          %548 = vmatmul.mubr.bf16.gmra.mrb[0].mxu0 %v513
          %v549 = vpop.f32.mrb[0].mxu0
          %v550 = vadd.f32 %v498, %v549
          %v551 = vpop.f32.mrb[0].mxu0
          %v552 = vpop.f32.mrb[0].mxu0
          %v553 = vpop.f32.mrb[0].mxu0
          %554 = vdwg.mxu0
          %v555 = vpack.c.bf16 %v481, %v481
          %vm556 = vcmask 257024
          %557 = vst.msk [vmem:[#allocation2] sm:$0xf] %vm556, %v555
          %v558 = vpack.c.bf16 %v550, %v550
          %559 = vst.msk [vmem:[#allocation3] sm:$0xf] %vm556, %v558
        $region72: #{tpu_custom_call.1} parent=47 // pred_fallthru
          _
        %v560 = vld [vmem:[%s344] sm:$0xf]
        %v561 = vld [vmem:[#allocation11] sm:$0xf]
        %v562 = vld [vmem:[#allocation11 + $0x4] sm:$0xf]
        %v563 = vld [vmem:[#allocation11 + $0x8] sm:$0xf]
        %v564 = vld [vmem:[#allocation11 + $0xc] sm:$0xf]
        %v565 = vld [vmem:[#allocation13] sm:$0x1]
        %v567 = vlaneseq
        %v568 = vshrl.u32 %v567, 7
        %v569 = vsub.s32 0, %v568
        %v570 = vrot.slane %v565, %v569
        %v576 = vunpack.c.l.b16 %v561
        %v577 = vunpack.c.l.b16 %v562
        %v578 = vunpack.c.l.b16 %v563
        %v579 = vunpack.c.l.b16 %v564
        %v580 = vpack.c.b16 %v577, %v576
        %v581 = vpack.c.b16 %v579, %v578
        %vm584 = vcmask 261120
        %v586 = vsel %vm584, %v560, 0
        %588 = vmatprep.subr.bf16.mxu0 0
        %589 = vmatpush1.bf16.msra.mxu0 %v580
        %590 = vmatprep.subr.bf16.mxu0 0
        %591 = vmatpush1.bf16.msra.mxu0 %v581
        %592 = vmatprep.subr.bf16.mxu0 0
        %593 = vmatpush1.bf16.msra.mxu0 0
        %594 = vmatprep.subr.bf16.mxu0 0
        %595 = vmatpush1.bf16.msra.mxu0 0
        %596 = vmatprep.subr.bf16.mxu0 0
        %597 = vmatpush1.bf16.msra.mxu0 0
        %598 = vmatprep.subr.bf16.mxu0 0
        %599 = vmatpush1.bf16.msra.mxu0 0
        %600 = vmatprep.subr.bf16.mxu0 0
        %601 = vmatpush1.bf16.msra.mxu0 0
        %602 = vmatprep.subr.bf16.mxu0 0
        %603 = vmatpush1.bf16.msra.mxu0 0
        %604 = vmatprep.subr.bf16.mxu0 0
        %605 = vmatpush1.bf16.msra.mxu0 0
        %606 = vmatprep.subr.bf16.mxu0 0
        %607 = vmatpush1.bf16.msra.mxu0 0
        %608 = vmatprep.subr.bf16.mxu0 0
        %609 = vmatpush1.bf16.msra.mxu0 0
        %610 = vmatprep.subr.bf16.mxu0 0
        %611 = vmatpush1.bf16.msra.mxu0 0
        %612 = vmatprep.subr.bf16.mxu0 0
        %613 = vmatpush1.bf16.msra.mxu0 0
        %614 = vmatprep.subr.bf16.mxu0 0
        %615 = vmatpush1.bf16.msra.mxu0 0
        %616 = vmatprep.subr.bf16.mxu0 0
        %617 = vmatpush1.bf16.msra.mxu0 0
        %618 = vmatprep.subr.bf16.mxu0 0
        %619 = vmatpush1.bf16.msra.mxu0 0
        %620 = vmatprep.mubr.bf16.mxu0 0
        %621 = vmatmul.mubr.bf16.gmra.mrb[0].mxu0 %v586
        %v622 = vpop.f32.mrb[0].mxu0
        %v623 = vadd.f32 %v570, %v622
        %v624 = vpop.f32.mrb[0].mxu0
        %v625 = vpop.f32.mrb[0].mxu0
        %v626 = vpop.f32.mrb[0].mxu0
        %627 = vdwg.mxu0
        %v628 = vmul.f32 %v623, 0.35355338
        %v629 = vpack.c.bf16 %v628, %v628
        %v630 = vld [vmem:[#allocation2] sm:$0xf]
        %v631 = vld [vmem:[#allocation3] sm:$0xf]
        %vm632 = vcmask 64512
        %v634 = vsel %vm632, %v629, 0
        %v637 = vsel %vm632, %v630, 0
        %639 = vmatprep.subr.bf16.mxu0 0
        %640 = vmatpush1.bf16.xpose.msra.mxu0 %v637
        %641 = vmatprep.subr.bf16.mxu0 0
        %642 = vmatpush1.bf16.xpose.msra.mxu0 0
        %643 = vmatprep.subr.bf16.mxu0 0
        %644 = vmatpush1.bf16.xpose.msra.mxu0 0
        %645 = vmatprep.subr.bf16.mxu0 0
        %646 = vmatpush1.bf16.xpose.msra.mxu0 0
        %647 = vmatprep.subr.bf16.mxu0 0
        %648 = vmatpush1.bf16.xpose.msra.mxu0 0
        %649 = vmatprep.subr.bf16.mxu0 0
        %650 = vmatpush1.bf16.xpose.msra.mxu0 0
        %651 = vmatprep.subr.bf16.mxu0 0
        %652 = vmatpush1.bf16.xpose.msra.mxu0 0
        %653 = vmatprep.subr.bf16.mxu0 0
        %654 = vmatpush1.bf16.xpose.msra.mxu0 0
        %655 = vmatprep.subr.bf16.mxu0 0
        %656 = vmatpush1.bf16.xpose.msra.mxu0 0
        %657 = vmatprep.subr.bf16.mxu0 0
        %658 = vmatpush1.bf16.xpose.msra.mxu0 0
        %659 = vmatprep.subr.bf16.mxu0 0
        %660 = vmatpush1.bf16.xpose.msra.mxu0 0
        %661 = vmatprep.subr.bf16.mxu0 0
        %662 = vmatpush1.bf16.xpose.msra.mxu0 0
        %663 = vmatprep.subr.bf16.mxu0 0
        %664 = vmatpush1.bf16.xpose.msra.mxu0 0
        %665 = vmatprep.subr.bf16.mxu0 0
        %666 = vmatpush1.bf16.xpose.msra.mxu0 0
        %667 = vmatprep.subr.bf16.mxu0 0
        %668 = vmatpush1.bf16.xpose.msra.mxu0 0
        %669 = vmatprep.subr.bf16.mxu0 0
        %670 = vmatpush1.bf16.xpose.msra.mxu0 0
        %671 = vmatprep.mubr.bf16.mxu0 0
        %672 = vmatmul.mubr.bf16.gmra.mrb[0].mxu0 %v634
        %v673 = vpop.f32.mrb[0].mxu0
        %v674 = vadd.f32 0.0, %v673
        %v675 = vpop.f32.mrb[0].mxu0
        %v676 = vpop.f32.mrb[0].mxu0
        %v677 = vpop.f32.mrb[0].mxu0
        %678 = vdwg.mxu0
        %v679 = vsel %vm632, %v674, -inf
        %680 = vmax.xlane.f32.xlu0 %v679
        %v681 = vpop.xlane.xlu0 %680
        %v682 = vsub.f32 %v674, %v681
        %v683 = vmul.f32 %v682, 1.442695
        %v684 = vpow.pop %v683
        %v685 = vsel %vm632, %v684, 0.0
        %686 = vadd.xlane.f32.xlu0 %v685
        %v687 = vpop.xlane.xlu0 %686
        %v688 = vrcp.pop %v687
        %v689 = vpack.c.bf16 %v684, %v684
        %v691 = vsel %vm632, %v689, 0
        %vm693 = vcmask 1043456
        %v695 = vsel %vm693, %v631, 0
        %697 = vmatprep.subr.bf16.mxu0 0
        %698 = vmatpush1.bf16.msra.mxu0 %v695
        %699 = vmatprep.subr.bf16.mxu0 0
        %700 = vmatpush1.bf16.msra.mxu0 0
        %701 = vmatprep.subr.bf16.mxu0 0
        %702 = vmatpush1.bf16.msra.mxu0 0
        %703 = vmatprep.subr.bf16.mxu0 0
        %704 = vmatpush1.bf16.msra.mxu0 0
        %705 = vmatprep.subr.bf16.mxu0 0
        %706 = vmatpush1.bf16.msra.mxu0 0
        %707 = vmatprep.subr.bf16.mxu0 0
        %708 = vmatpush1.bf16.msra.mxu0 0
        %709 = vmatprep.subr.bf16.mxu0 0
        %710 = vmatpush1.bf16.msra.mxu0 0
        %711 = vmatprep.subr.bf16.mxu0 0
        %712 = vmatpush1.bf16.msra.mxu0 0
        %713 = vmatprep.subr.bf16.mxu0 0
        %714 = vmatpush1.bf16.msra.mxu0 0
        %715 = vmatprep.subr.bf16.mxu0 0
        %716 = vmatpush1.bf16.msra.mxu0 0
        %717 = vmatprep.subr.bf16.mxu0 0
        %718 = vmatpush1.bf16.msra.mxu0 0
        %719 = vmatprep.subr.bf16.mxu0 0
        %720 = vmatpush1.bf16.msra.mxu0 0
        %721 = vmatprep.subr.bf16.mxu0 0
        %722 = vmatpush1.bf16.msra.mxu0 0
        %723 = vmatprep.subr.bf16.mxu0 0
        %724 = vmatpush1.bf16.msra.mxu0 0
        %725 = vmatprep.subr.bf16.mxu0 0
        %726 = vmatpush1.bf16.msra.mxu0 0
        %727 = vmatprep.subr.bf16.mxu0 0
        %728 = vmatpush1.bf16.msra.mxu0 0
        %729 = vmatprep.mubr.bf16.mxu0 0
        %730 = vmatmul.mubr.bf16.gmra.mrb[0].mxu0 %v691
        %v731 = vpop.f32.mrb[0].mxu0
        %v732 = vadd.f32 0.0, %v731
        %v733 = vpop.f32.mrb[0].mxu0
        %v734 = vpop.f32.mrb[0].mxu0
        %v735 = vpop.f32.mrb[0].mxu0
        %736 = vdwg.mxu0
        %v737 = vmul.f32 %v732, %v688
        %v738 = vpack.c.bf16 %v737, %v737
        %vm739 = vcmask 60416
        %740 = vst.msk [vmem:[#allocation4] sm:$0xf] %vm739, %v738
        %v741 = vld [vmem:[#allocation2] sm:$0xf]
        %v742 = vld [vmem:[#allocation3] sm:$0xf]
        %744 = vrot.lane.b32.xlu0 %v629, 120
        %v745 = vpop.permute.xlu0 %744
        %v747 = vunpack.c.l.b16 %v741
        %v748 = vpack.c.b16 %v747, %v747
        %749 = vrot.lane.b32.xlu0 %v748, 120
        %v750 = vpop.permute.xlu0 %749
        %v752 = vsel %vm632, %v745, 0
        %v755 = vsel %vm632, %v750, 0
        %757 = vmatprep.subr.bf16.mxu0 0
        %758 = vmatpush1.bf16.xpose.msra.mxu0 %v755
        %759 = vmatprep.subr.bf16.mxu0 0
        %760 = vmatpush1.bf16.xpose.msra.mxu0 0
        %761 = vmatprep.subr.bf16.mxu0 0
        %762 = vmatpush1.bf16.xpose.msra.mxu0 0
        %763 = vmatprep.subr.bf16.mxu0 0
        %764 = vmatpush1.bf16.xpose.msra.mxu0 0
        %765 = vmatprep.subr.bf16.mxu0 0
        %766 = vmatpush1.bf16.xpose.msra.mxu0 0
        %767 = vmatprep.subr.bf16.mxu0 0
        %768 = vmatpush1.bf16.xpose.msra.mxu0 0
        %769 = vmatprep.subr.bf16.mxu0 0
        %770 = vmatpush1.bf16.xpose.msra.mxu0 0
        %771 = vmatprep.subr.bf16.mxu0 0
        %772 = vmatpush1.bf16.xpose.msra.mxu0 0
        %773 = vmatprep.subr.bf16.mxu0 0
        %774 = vmatpush1.bf16.xpose.msra.mxu0 0
        %775 = vmatprep.subr.bf16.mxu0 0
        %776 = vmatpush1.bf16.xpose.msra.mxu0 0
        %777 = vmatprep.subr.bf16.mxu0 0
        %778 = vmatpush1.bf16.xpose.msra.mxu0 0
        %779 = vmatprep.subr.bf16.mxu0 0
        %780 = vmatpush1.bf16.xpose.msra.mxu0 0
        %781 = vmatprep.subr.bf16.mxu0 0
        %782 = vmatpush1.bf16.xpose.msra.mxu0 0
        %783 = vmatprep.subr.bf16.mxu0 0
        %784 = vmatpush1.bf16.xpose.msra.mxu0 0
        %785 = vmatprep.subr.bf16.mxu0 0
        %786 = vmatpush1.bf16.xpose.msra.mxu0 0
        %787 = vmatprep.subr.bf16.mxu0 0
        %788 = vmatpush1.bf16.xpose.msra.mxu0 0
        %789 = vmatprep.mubr.bf16.mxu0 0
        %790 = vmatmul.mubr.bf16.gmra.mrb[0].mxu0 %v752
        %v791 = vpop.f32.mrb[0].mxu0
        %v792 = vadd.f32 0.0, %v791
        %v793 = vpop.f32.mrb[0].mxu0
        %v794 = vpop.f32.mrb[0].mxu0
        %v795 = vpop.f32.mrb[0].mxu0
        %796 = vdwg.mxu0
        %v797 = vsel %vm632, %v792, -inf
        %798 = vmax.xlane.f32.xlu0 %v797
        %v799 = vpop.xlane.xlu0 %798
        %v800 = vsub.f32 %v792, %v799
        %v801 = vmul.f32 %v800, 1.442695
        %v802 = vpow.pop %v801
        %v803 = vsel %vm632, %v802, 0.0
        %804 = vadd.xlane.f32.xlu0 %v803
        %v805 = vpop.xlane.xlu0 %804
        %v806 = vrcp.pop %v805
        %v807 = vpack.c.bf16 %v802, %v802
        %v809 = vunpack.c.l.b16 %v742
        %v810 = vpack.c.b16 %v809, %v809
        %811 = vrot.lane.b32.xlu0 %v810, 120
        %v812 = vpop.permute.xlu0 %811
        %v814 = vsel %vm632, %v807, 0
        %v817 = vsel %vm693, %v812, 0
        %819 = vmatprep.subr.bf16.mxu0 0
        %820 = vmatpush1.bf16.msra.mxu0 %v817
        %821 = vmatprep.subr.bf16.mxu0 0
        %822 = vmatpush1.bf16.msra.mxu0 0
        %823 = vmatprep.subr.bf16.mxu0 0
        %824 = vmatpush1.bf16.msra.mxu0 0
        %825 = vmatprep.subr.bf16.mxu0 0
        %826 = vmatpush1.bf16.msra.mxu0 0
        %827 = vmatprep.subr.bf16.mxu0 0
        %828 = vmatpush1.bf16.msra.mxu0 0
        %829 = vmatprep.subr.bf16.mxu0 0
        %830 = vmatpush1.bf16.msra.mxu0 0
        %831 = vmatprep.subr.bf16.mxu0 0
        %832 = vmatpush1.bf16.msra.mxu0 0
        %833 = vmatprep.subr.bf16.mxu0 0
        %834 = vmatpush1.bf16.msra.mxu0 0
        %835 = vmatprep.subr.bf16.mxu0 0
        %836 = vmatpush1.bf16.msra.mxu0 0
        %837 = vmatprep.subr.bf16.mxu0 0
        %838 = vmatpush1.bf16.msra.mxu0 0
        %839 = vmatprep.subr.bf16.mxu0 0
        %840 = vmatpush1.bf16.msra.mxu0 0
        %841 = vmatprep.subr.bf16.mxu0 0
        %842 = vmatpush1.bf16.msra.mxu0 0
        %843 = vmatprep.subr.bf16.mxu0 0
        %844 = vmatpush1.bf16.msra.mxu0 0
        %845 = vmatprep.subr.bf16.mxu0 0
        %846 = vmatpush1.bf16.msra.mxu0 0
        %847 = vmatprep.subr.bf16.mxu0 0
        %848 = vmatpush1.bf16.msra.mxu0 0
        %849 = vmatprep.subr.bf16.mxu0 0
        %850 = vmatpush1.bf16.msra.mxu0 0
        %851 = vmatprep.mubr.bf16.mxu0 0
        %852 = vmatmul.mubr.bf16.gmra.mrb[0].mxu0 %v814
        %v853 = vpop.f32.mrb[0].mxu0
        %v854 = vadd.f32 0.0, %v853
        %v855 = vpop.f32.mrb[0].mxu0
        %v856 = vpop.f32.mrb[0].mxu0
        %v857 = vpop.f32.mrb[0].mxu0
        %858 = vdwg.mxu0
        %v859 = vmul.f32 %v854, %v806
        %v860 = vpack.c.bf16 %v859, %v859
        %v862 = vunpack.c.l.b16 %v860
        %v863 = vpack.c.b16 %v862, %v862
        %864 = vrot.lane.b32.xlu0 %v863, 8
        %v865 = vpop.permute.xlu0 %864
        %vm867 = vcmask 126016
        %868 = vst.msk [vmem:[#allocation4] sm:$0xf] %vm867, %v865
        %v869 = vld [vmem:[#allocation2] sm:$0xf]
        %v870 = vld [vmem:[#allocation3] sm:$0xf]
        %871 = vrot.lane.b32.xlu0 %v629, 112
        %v872 = vpop.permute.xlu0 %871
        %v874 = vunpack.c.l.b16 %v869
        %v875 = vpack.c.b16 %v874, %v874
        %876 = vrot.lane.b32.xlu0 %v875, 112
        %v877 = vpop.permute.xlu0 %876
        %v879 = vsel %vm632, %v872, 0
        %v882 = vsel %vm632, %v877, 0
        %884 = vmatprep.subr.bf16.mxu0 0
        %885 = vmatpush1.bf16.xpose.msra.mxu0 %v882
        %886 = vmatprep.subr.bf16.mxu0 0
        %887 = vmatpush1.bf16.xpose.msra.mxu0 0
        %888 = vmatprep.subr.bf16.mxu0 0
        %889 = vmatpush1.bf16.xpose.msra.mxu0 0
        %890 = vmatprep.subr.bf16.mxu0 0
        %891 = vmatpush1.bf16.xpose.msra.mxu0 0
        %892 = vmatprep.subr.bf16.mxu0 0
        %893 = vmatpush1.bf16.xpose.msra.mxu0 0
        %894 = vmatprep.subr.bf16.mxu0 0
        %895 = vmatpush1.bf16.xpose.msra.mxu0 0
        %896 = vmatprep.subr.bf16.mxu0 0
        %897 = vmatpush1.bf16.xpose.msra.mxu0 0
        %898 = vmatprep.subr.bf16.mxu0 0
        %899 = vmatpush1.bf16.xpose.msra.mxu0 0
        %900 = vmatprep.subr.bf16.mxu0 0
        %901 = vmatpush1.bf16.xpose.msra.mxu0 0
        %902 = vmatprep.subr.bf16.mxu0 0
        %903 = vmatpush1.bf16.xpose.msra.mxu0 0
        %904 = vmatprep.subr.bf16.mxu0 0
        %905 = vmatpush1.bf16.xpose.msra.mxu0 0
        %906 = vmatprep.subr.bf16.mxu0 0
        %907 = vmatpush1.bf16.xpose.msra.mxu0 0
        %908 = vmatprep.subr.bf16.mxu0 0
        %909 = vmatpush1.bf16.xpose.msra.mxu0 0
        %910 = vmatprep.subr.bf16.mxu0 0
        %911 = vmatpush1.bf16.xpose.msra.mxu0 0
        %912 = vmatprep.subr.bf16.mxu0 0
        %913 = vmatpush1.bf16.xpose.msra.mxu0 0
        %914 = vmatprep.subr.bf16.mxu0 0
        %915 = vmatpush1.bf16.xpose.msra.mxu0 0
        %916 = vmatprep.mubr.bf16.mxu0 0
        %917 = vmatmul.mubr.bf16.gmra.mrb[0].mxu0 %v879
        %v918 = vpop.f32.mrb[0].mxu0
        %v919 = vadd.f32 0.0, %v918
        %v920 = vpop.f32.mrb[0].mxu0
        %v921 = vpop.f32.mrb[0].mxu0
        %v922 = vpop.f32.mrb[0].mxu0
        %923 = vdwg.mxu0
        %v924 = vsel %vm632, %v919, -inf
        %925 = vmax.xlane.f32.xlu0 %v924
        %v926 = vpop.xlane.xlu0 %925
        %v927 = vsub.f32 %v919, %v926
        %v928 = vmul.f32 %v927, 1.442695
        %v929 = vpow.pop %v928
        %v930 = vsel %vm632, %v929, 0.0
        %931 = vadd.xlane.f32.xlu0 %v930
        %v932 = vpop.xlane.xlu0 %931
        %v933 = vrcp.pop %v932
        %v934 = vpack.c.bf16 %v929, %v929
        %v936 = vunpack.c.l.b16 %v870
        %v937 = vpack.c.b16 %v936, %v936
        %938 = vrot.lane.b32.xlu0 %v937, 112
        %v939 = vpop.permute.xlu0 %938
        %v941 = vsel %vm632, %v934, 0
        %v944 = vsel %vm693, %v939, 0
        %946 = vmatprep.subr.bf16.mxu0 0
        %947 = vmatpush1.bf16.msra.mxu0 %v944
        %948 = vmatprep.subr.bf16.mxu0 0
        %949 = vmatpush1.bf16.msra.mxu0 0
        %950 = vmatprep.subr.bf16.mxu0 0
        %951 = vmatpush1.bf16.msra.mxu0 0
        %952 = vmatprep.subr.bf16.mxu0 0
        %953 = vmatpush1.bf16.msra.mxu0 0
        %954 = vmatprep.subr.bf16.mxu0 0
        %955 = vmatpush1.bf16.msra.mxu0 0
        %956 = vmatprep.subr.bf16.mxu0 0
        %957 = vmatpush1.bf16.msra.mxu0 0
        %958 = vmatprep.subr.bf16.mxu0 0
        %959 = vmatpush1.bf16.msra.mxu0 0
        %960 = vmatprep.subr.bf16.mxu0 0
        %961 = vmatpush1.bf16.msra.mxu0 0
        %962 = vmatprep.subr.bf16.mxu0 0
        %963 = vmatpush1.bf16.msra.mxu0 0
        %964 = vmatprep.subr.bf16.mxu0 0
        %965 = vmatpush1.bf16.msra.mxu0 0
        %966 = vmatprep.subr.bf16.mxu0 0
        %967 = vmatpush1.bf16.msra.mxu0 0
        %968 = vmatprep.subr.bf16.mxu0 0
        %969 = vmatpush1.bf16.msra.mxu0 0
        %970 = vmatprep.subr.bf16.mxu0 0
        %971 = vmatpush1.bf16.msra.mxu0 0
        %972 = vmatprep.subr.bf16.mxu0 0
        %973 = vmatpush1.bf16.msra.mxu0 0
        %974 = vmatprep.subr.bf16.mxu0 0
        %975 = vmatpush1.bf16.msra.mxu0 0
        %976 = vmatprep.subr.bf16.mxu0 0
        %977 = vmatpush1.bf16.msra.mxu0 0
        %978 = vmatprep.mubr.bf16.mxu0 0
        %979 = vmatmul.mubr.bf16.gmra.mrb[0].mxu0 %v941
        %v980 = vpop.f32.mrb[0].mxu0
        %v981 = vadd.f32 0.0, %v980
        %v982 = vpop.f32.mrb[0].mxu0
        %v983 = vpop.f32.mrb[0].mxu0
        %v984 = vpop.f32.mrb[0].mxu0
        %985 = vdwg.mxu0
        %v986 = vmul.f32 %v981, %v933
        %v987 = vpack.c.bf16 %v986, %v986
        %v989 = vunpack.c.l.b16 %v987
        %v990 = vpack.c.b16 %v989, %v989
        %991 = vrot.lane.b32.xlu0 %v990, 16
        %v992 = vpop.permute.xlu0 %991
        %vm994 = vcmask 191616
        %995 = vst.msk [vmem:[#allocation4] sm:$0xf] %vm994, %v992
        %v996 = vld [vmem:[#allocation2] sm:$0xf]
        %v997 = vld [vmem:[#allocation3] sm:$0xf]
        %998 = vrot.lane.b32.xlu0 %v629, 104
        %v999 = vpop.permute.xlu0 %998
        %v1001 = vunpack.c.l.b16 %v996
        %v1002 = vpack.c.b16 %v1001, %v1001
        %1003 = vrot.lane.b32.xlu0 %v1002, 104
        %v1004 = vpop.permute.xlu0 %1003
        %v1006 = vsel %vm632, %v999, 0
        %v1009 = vsel %vm632, %v1004, 0
        %1011 = vmatprep.subr.bf16.mxu0 0
        %1012 = vmatpush1.bf16.xpose.msra.mxu0 %v1009
        %1013 = vmatprep.subr.bf16.mxu0 0
        %1014 = vmatpush1.bf16.xpose.msra.mxu0 0
        %1015 = vmatprep.subr.bf16.mxu0 0
        %1016 = vmatpush1.bf16.xpose.msra.mxu0 0
        %1017 = vmatprep.subr.bf16.mxu0 0
        %1018 = vmatpush1.bf16.xpose.msra.mxu0 0
        %1019 = vmatprep.subr.bf16.mxu0 0
        %1020 = vmatpush1.bf16.xpose.msra.mxu0 0
        %1021 = vmatprep.subr.bf16.mxu0 0
        %1022 = vmatpush1.bf16.xpose.msra.mxu0 0
        %1023 = vmatprep.subr.bf16.mxu0 0
        %1024 = vmatpush1.bf16.xpose.msra.mxu0 0
        %1025 = vmatprep.subr.bf16.mxu0 0
        %1026 = vmatpush1.bf16.xpose.msra.mxu0 0
        %1027 = vmatprep.subr.bf16.mxu0 0
        %1028 = vmatpush1.bf16.xpose.msra.mxu0 0
        %1029 = vmatprep.subr.bf16.mxu0 0
        %1030 = vmatpush1.bf16.xpose.msra.mxu0 0
        %1031 = vmatprep.subr.bf16.mxu0 0
        %1032 = vmatpush1.bf16.xpose.msra.mxu0 0
        %1033 = vmatprep.subr.bf16.mxu0 0
        %1034 = vmatpush1.bf16.xpose.msra.mxu0 0
        %1035 = vmatprep.subr.bf16.mxu0 0
        %1036 = vmatpush1.bf16.xpose.msra.mxu0 0
        %1037 = vmatprep.subr.bf16.mxu0 0
        %1038 = vmatpush1.bf16.xpose.msra.mxu0 0
        %1039 = vmatprep.subr.bf16.mxu0 0
        %1040 = vmatpush1.bf16.xpose.msra.mxu0 0
        %1041 = vmatprep.subr.bf16.mxu0 0
        %1042 = vmatpush1.bf16.xpose.msra.mxu0 0
        %1043 = vmatprep.mubr.bf16.mxu0 0
        %1044 = vmatmul.mubr.bf16.gmra.mrb[0].mxu0 %v1006
        %v1045 = vpop.f32.mrb[0].mxu0
        %v1046 = vadd.f32 0.0, %v1045
        %v1047 = vpop.f32.mrb[0].mxu0
        %v1048 = vpop.f32.mrb[0].mxu0
        %v1049 = vpop.f32.mrb[0].mxu0
        %1050 = vdwg.mxu0
        %v1051 = vsel %vm632, %v1046, -inf
        %1052 = vmax.xlane.f32.xlu0 %v1051
        %v1053 = vpop.xlane.xlu0 %1052
        %v1054 = vsub.f32 %v1046, %v1053
        %v1055 = vmul.f32 %v1054, 1.442695
        %v1056 = vpow.pop %v1055
        %v1057 = vsel %vm632, %v1056, 0.0
        %1058 = vadd.xlane.f32.xlu0 %v1057
        %v1059 = vpop.xlane.xlu0 %1058
        %v1060 = vrcp.pop %v1059
        %v1061 = vpack.c.bf16 %v1056, %v1056
        %v1063 = vunpack.c.l.b16 %v997
        %v1064 = vpack.c.b16 %v1063, %v1063
        %1065 = vrot.lane.b32.xlu0 %v1064, 104
        %v1066 = vpop.permute.xlu0 %1065
        %v1068 = vsel %vm632, %v1061, 0
        %v1071 = vsel %vm693, %v1066, 0
        %1073 = vmatprep.subr.bf16.mxu0 0
        %1074 = vmatpush1.bf16.msra.mxu0 %v1071
        %1075 = vmatprep.subr.bf16.mxu0 0
        %1076 = vmatpush1.bf16.msra.mxu0 0
        %1077 = vmatprep.subr.bf16.mxu0 0
        %1078 = vmatpush1.bf16.msra.mxu0 0
        %1079 = vmatprep.subr.bf16.mxu0 0
        %1080 = vmatpush1.bf16.msra.mxu0 0
        %1081 = vmatprep.subr.bf16.mxu0 0
        %1082 = vmatpush1.bf16.msra.mxu0 0
        %1083 = vmatprep.subr.bf16.mxu0 0
        %1084 = vmatpush1.bf16.msra.mxu0 0
        %1085 = vmatprep.subr.bf16.mxu0 0
        %1086 = vmatpush1.bf16.msra.mxu0 0
        %1087 = vmatprep.subr.bf16.mxu0 0
        %1088 = vmatpush1.bf16.msra.mxu0 0
        %1089 = vmatprep.subr.bf16.mxu0 0
        %1090 = vmatpush1.bf16.msra.mxu0 0
        %1091 = vmatprep.subr.bf16.mxu0 0
        %1092 = vmatpush1.bf16.msra.mxu0 0
        %1093 = vmatprep.subr.bf16.mxu0 0
        %1094 = vmatpush1.bf16.msra.mxu0 0
        %1095 = vmatprep.subr.bf16.mxu0 0
        %1096 = vmatpush1.bf16.msra.mxu0 0
        %1097 = vmatprep.subr.bf16.mxu0 0
        %1098 = vmatpush1.bf16.msra.mxu0 0
        %1099 = vmatprep.subr.bf16.mxu0 0
        %1100 = vmatpush1.bf16.msra.mxu0 0
        %1101 = vmatprep.subr.bf16.mxu0 0
        %1102 = vmatpush1.bf16.msra.mxu0 0
        %1103 = vmatprep.subr.bf16.mxu0 0
        %1104 = vmatpush1.bf16.msra.mxu0 0
        %1105 = vmatprep.mubr.bf16.mxu0 0
        %1106 = vmatmul.mubr.bf16.gmra.mrb[0].mxu0 %v1068
        %v1107 = vpop.f32.mrb[0].mxu0
        %v1108 = vadd.f32 0.0, %v1107
        %v1109 = vpop.f32.mrb[0].mxu0
        %v1110 = vpop.f32.mrb[0].mxu0
        %v1111 = vpop.f32.mrb[0].mxu0
        %1112 = vdwg.mxu0
        %v1113 = vmul.f32 %v1108, %v1060
        %v1114 = vpack.c.bf16 %v1113, %v1113
        %v1116 = vunpack.c.l.b16 %v1114
        %v1117 = vpack.c.b16 %v1116, %v1116
        %1118 = vrot.lane.b32.xlu0 %v1117, 24
        %v1119 = vpop.permute.xlu0 %1118
        %vm1121 = vcmask 257216
        %1122 = vst.msk [vmem:[#allocation4] sm:$0xf] %vm1121, %v1119
        %v1123 = vld [vmem:[#allocation4] sm:$0xf]
        %v1124 = vld [vmem:[%s5] sm:$0xf]
        %v1125 = vld [vmem:[%s5 + $0x4] sm:$0xf]
        %v1126 = vld [vmem:[%s5 + $0x8] sm:$0xf]
        %v1127 = vld [vmem:[%s5 + $0xc] sm:$0xf]
        %v1128 = vld [vmem:[%s6] sm:$0x1]
        %v1130 = vlaneseq
        %v1131 = vshrl.u32 %v1130, 7
        %v1132 = vsub.s32 0, %v1131
        %v1133 = vrot.slane %v1128, %v1132
        %v1139 = vunpack.c.l.b16 %v1124
        %v1140 = vunpack.c.l.b16 %v1125
        %v1141 = vunpack.c.l.b16 %v1126
        %v1142 = vunpack.c.l.b16 %v1127
        %v1143 = vpack.c.b16 %v1140, %v1139
        %v1144 = vpack.c.b16 %v1142, %v1141
        %v1148 = vsel %vm584, %v1123, 0
        %1150 = vmatprep.subr.bf16.mxu0 0
        %1151 = vmatpush1.bf16.msra.mxu0 %v1143
        %1152 = vmatprep.subr.bf16.mxu0 0
        %1153 = vmatpush1.bf16.msra.mxu0 %v1144
        %1154 = vmatprep.subr.bf16.mxu0 0
        %1155 = vmatpush1.bf16.msra.mxu0 0
        %1156 = vmatprep.subr.bf16.mxu0 0
        %1157 = vmatpush1.bf16.msra.mxu0 0
        %1158 = vmatprep.subr.bf16.mxu0 0
        %1159 = vmatpush1.bf16.msra.mxu0 0
        %1160 = vmatprep.subr.bf16.mxu0 0
        %1161 = vmatpush1.bf16.msra.mxu0 0
        %1162 = vmatprep.subr.bf16.mxu0 0
        %1163 = vmatpush1.bf16.msra.mxu0 0
        %1164 = vmatprep.subr.bf16.mxu0 0
        %1165 = vmatpush1.bf16.msra.mxu0 0
        %1166 = vmatprep.subr.bf16.mxu0 0
        %1167 = vmatpush1.bf16.msra.mxu0 0
        %1168 = vmatprep.subr.bf16.mxu0 0
        %1169 = vmatpush1.bf16.msra.mxu0 0
        %1170 = vmatprep.subr.bf16.mxu0 0
        %1171 = vmatpush1.bf16.msra.mxu0 0
        %1172 = vmatprep.subr.bf16.mxu0 0
        %1173 = vmatpush1.bf16.msra.mxu0 0
        %1174 = vmatprep.subr.bf16.mxu0 0
        %1175 = vmatpush1.bf16.msra.mxu0 0
        %1176 = vmatprep.subr.bf16.mxu0 0
        %1177 = vmatpush1.bf16.msra.mxu0 0
        %1178 = vmatprep.subr.bf16.mxu0 0
        %1179 = vmatpush1.bf16.msra.mxu0 0
        %1180 = vmatprep.subr.bf16.mxu0 0
        %1181 = vmatpush1.bf16.msra.mxu0 0
        %1182 = vmatprep.mubr.bf16.mxu0 0
        %1183 = vmatmul.mubr.bf16.gmra.mrb[0].mxu0 %v1148
        %v1184 = vpop.f32.mrb[0].mxu0
        %v1185 = vadd.f32 %v1133, %v1184
        %v1186 = vpop.f32.mrb[0].mxu0
        %v1187 = vpop.f32.mrb[0].mxu0
        %v1188 = vpop.f32.mrb[0].mxu0
        %1189 = vdwg.mxu0
        %1190 = vst.msk [vmem:[%s410] sm:$0xff] %vm584, %v1185
        %s1191 = sand.u32 %s214, 1
        %s1192 = scalar_lea.sflag [#allocation7], %s1191
        %s1193 = sand.u32 %s214, 1
        %s1194 = smul.addr %s1193, 8
        %s1195 = scalar_lea.vmem [#allocation14], %s1194
        // Predicated region
        $region73: #{tpu_custom_call.1} parent=47 // pred_check
          %p1196 = pneg %p224
        $region74: #{tpu_custom_call.1} parent=47 // pred_check_branch
          %1198 = sbr.rel (%p1196) target = $region76
        $region75: #{tpu_custom_call.1} parent=47 // pred_region
          %s1200 = ssub.s32 128, 128
          %1201 = vsyncadd %s1192, %s1200
          %s1202 = sadd.s32 %s33, %s32
          %s1203 = smul.addr %s1202, 128
          %s1204 = scalar_lea.hbm %s7, %s1203
          %s1206 = sshll.u32 %s1195, 4
          %s1207 = int_to_ptr.vmem [resolvable:$true] %s1206
          %1209 = dma.vmem_to_hbm [thread:$0]  %s1207, 128, %s1204, %s1192
        $region76: #{tpu_custom_call.1} parent=47 // pred_fallthru
          _
      $region48: #{tpu_custom_call.1} parent=5 // pred_fallthru
        _
      %p1210 = scmp.le.s32.totalorder 2, %s23
      // Predicated region
      $region77: #{tpu_custom_call.1} parent=5 // pred_check
        %p1211 = pneg %p1210
      $region78: #{tpu_custom_call.1} parent=5 // pred_check_branch
        %1213 = sbr.rel (%p1211) target = $region80
      $region79: #{tpu_custom_call.1} parent=5 // pred_region
        %s1214 = ssub.s32 %s23, 2
        // Predicated region
        $region81: #{tpu_custom_call.1} parent=79 // pred_check
          %p1215 = pneg %p230
        $region82: #{tpu_custom_call.1} parent=79 // pred_check_branch
          %1217 = sbr.rel (%p1215) target = $region84
        $region83: #{tpu_custom_call.1} parent=79 // pred_region
          %s1218 = sand.u32 %s215, 1
          %s1219 = scalar_lea.sflag [#allocation7], %s1218
          %s1220 = sand.u32 %s215, 1
          %s1221 = smul.addr %s1220, 8
          %s1222 = scalar_lea.vmem [#allocation14], %s1221
          %1223 = dma.done %s1219, 128
        $region84: #{tpu_custom_call.1} parent=79 // pred_fallthru
          _
      $region80: #{tpu_custom_call.1} parent=5 // pred_fallthru
        _
    $region6: #{tpu_custom_call.1} parent=1 // loop_footer
      %s27 = sadd.s32 1, %s23
    $region7: #{tpu_custom_call.1} parent=1 // loop_footer_branch
      %22 = sbr.rel target = $region3
    $region8: #{tpu_custom_call.1} parent=1 // loop_exit
      _
    %1224 = vsyncpa [#allocation6], 1
    %s1225 = scalar_lea.sflag [#allocation6], 1
    %1226 = vsyncpa %s1225, 1
    %1227 = vsyncpa [#allocation9], 1
    %s1228 = scalar_lea.sflag [#allocation9], 1
    %1229 = vsyncpa %s1228, 1
    %1230 = vsyncpa [#allocation12], 1
    %1231 = vsyncpa [#allocation7], 1
    %s1232 = scalar_lea.sflag [#allocation7], 1
    %1233 = vsyncpa %s1232, 1

// kernel: tpu_custom_call.1
$region0: #{tpu_custom_call.1}
  #allocation0 [shape = 'u32[]', space=smem, size = 0x4, offset = 0x4, fixed_abs, tag = 'smem constant byte address 0x4 - core index']
  #allocation1 [shape = 'u32[144,128]{1,0:T(1,128)}', space=vmem, size = 0x12000, scoped, tag = 'internal scratch']
  #allocation2 [shape = 'bf16[8,32]{1,0:T(8,128)(2,1)}', space=vmem, size = 0x800, scoped, tag = 'scratch operand']
  #allocation3 [shape = 'bf16[8,32]{1,0:T(8,128)(2,1)}', space=vmem, size = 0x800, scoped, tag = 'scratch operand']
  #allocation4 [shape = 'bf16[8,32]{1,0:T(8,128)(2,1)}', space=vmem, size = 0x800, scoped, tag = 'scratch operand']
  %s0 = inlined_call_operand.hbm [shape: bf16[2,8,32], index: 0, kind: input, shape index: {}]
  %s1 = inlined_call_operand.hbm [shape: bf16[2,8,32], index: 1, kind: input, shape index: {}]
  %s2 = inlined_call_operand.hbm [shape: bf16[2,8,32], index: 2, kind: input, shape index: {}]
  %s3 = inlined_call_operand.hbm [shape: bf16[3,32,32], index: 3, kind: input, shape index: {}]
  %s4 = inlined_call_operand.hbm [shape: f32[3,1,32], index: 4, kind: input, shape index: {}]
  %s5 = inlined_call_operand.vmem [shape: bf16[32,32], index: 5, kind: input, shape index: {}]
  %s6 = inlined_call_operand.vmem [shape: f32[1,32], index: 6, kind: input, shape index: {}]
  %s7 = inlined_call_operand.hbm [shape: f32[2,8,32], index: 7, kind: output, shape index: {}]
  %s8 = sld [smem:[#allocation0]]
  $region85: #{tpu_custom_call.1} parent=0
    _
  %s10 = ssub.s32 1, %s8
  %s11 = scalar_select 0, %s10, %s8
  $region1: #{tpu_custom_call.1} parent=0
    #allocation5 [shape = 'u8[4096]{0}', space=vmem, size = 0x1000, scoped, tag = 'input window, operand 0']
    #allocation6 [shape = 's32[2]{0}', space=sflag, size = 0x8, scoped, tag = 'scoped memory for tpu_custom_call.1']
    #allocation7 [shape = 's32[2]{0}', space=sflag, size = 0x8, scoped, tag = 'scoped memory for tpu_custom_call.1']
    #allocation8 [shape = 'u8[4096]{0}', space=vmem, size = 0x1000, scoped, tag = 'input window, operand 1']
    #allocation9 [shape = 's32[2]{0}', space=sflag, size = 0x8, scoped, tag = 'scoped memory for tpu_custom_call.1']
    #allocation10 [shape = 'u8[4096]{0}', space=vmem, size = 0x1000, scoped, tag = 'input window, operand 2']
    #allocation11 [shape = 'u8[24576]{0}', space=vmem, size = 0x6000, scoped, tag = 'input window, operand 3, single buffered']
    #allocation12 [shape = 's32[1]{0}', space=sflag, size = 0x4, scoped, tag = 'scoped memory for tpu_custom_call.1']
    #allocation13 [shape = 'u8[1536]{0}', space=vmem, size = 0x800, scoped, tag = 'input window, operand 4, single buffered']
    #allocation14 [shape = 'u8[8192]{0}', space=vmem, size = 0x2000, scoped, tag = 'output window, operand 0']
    %12 = vsyncpa [#allocation6], 0
    %s13 = scalar_lea.sflag [#allocation6], 1
    %14 = vsyncpa %s13, 0
    %15 = vsyncpa [#allocation9], 0
    %s16 = scalar_lea.sflag [#allocation9], 1
    %17 = vsyncpa %s16, 0
    %18 = vsyncpa [#allocation12], 0
    %19 = vsyncpa [#allocation7], 0
    %s20 = scalar_lea.sflag [#allocation7], 1
    %21 = vsyncpa %s20, 0
    loop: start=0, step=1, limit=4
    $region2: #{tpu_custom_call.1} parent=1 // loop_pre_header
      _
    $region3: #{tpu_custom_call.1} parent=1 // loop_header
      %s23 = sphi 0, %s27
      %p24 = scmp.ge.s32.totalorder %s23, 4
      %s30 = sphi 0, %s42
      %s31 = sphi 0, %s38
      %s32 = sphi 0, %s30
      %s33 = sphi 0, %s31
      %s34 = sphi 0, %s32
      %s35 = sphi 0, %s33
      %s47 = sphi 0, %s49
      %s50 = sphi 0, %s47
      %s51 = sphi 0, %s50
      %s67 = sphi 0, %s51
      %s73 = sphi 0, %s75
      %s76 = sphi 0, %s73
      %s77 = sphi 0, %s76
      %s93 = sphi 0, %s77
      %s99 = sphi 0, %s101
      %s102 = sphi 0, %s99
      %s103 = sphi 0, %s102
      %s119 = sphi 0, %s103
      %s123 = sphi 0, %s123
      %s125 = sphi 0, %s123
      %s126 = sphi 0, %s125
      %s140 = sphi 0, %s126
      %s144 = sphi 0, %s144
      %s146 = sphi 0, %s144
      %s147 = sphi 0, %s146
      %s161 = sphi 0, %s147
      %s165 = sphi 0, %s165
      %s167 = sphi 0, %s165
      %s168 = sphi 0, %s167
      %s182 = sphi 0, %s168
      %s186 = sphi 0, %s186
      %s188 = sphi 0, %s186
      %s189 = sphi 0, %s188
      %s203 = sphi 0, %s189
      %s211 = sphi 0, %s213
      %s214 = sphi 0, %s211
      %s215 = sphi 0, %s214
      %s231 = sphi 0, %s215
    $region4: #{tpu_custom_call.1} parent=1 // loop_header_branch
      %26 = sbr.rel (%p24) target = $region8
    $region5: #{tpu_custom_call.1} parent=1 // loop_body
      %s28 = ssub.s32 %s23, 1
      %s29 = ssub.s32 %s23, 2
      %s36 = sadd.s32 1, %s31
      %p37 = scmp.ge.s32.totalorder %s36, 1
      %s38 = scalar_select %p37, 0, %s36
      %s39 = sadd.s32 1, %s30
      %s40 = scalar_select %p37, %s39, %s30
      %p41 = scmp.ge.s32.totalorder %s40, 2
      %s42 = scalar_select %p41, 0, %s40
      %s43 = ssub.s32 %s30, %s42
      %s44 = ssub.s32 %s31, %s38
      %s45 = sor.u32 %s43, %s44
      %p46 = scmp.eq.s32.totalorder %s45, 0
      %s48 = sadd.s32 %s47, 1
      %s49 = scalar_select %p46, %s47, %s48
      %p52 = pneg %p46
      %p53 = scmp.eq.s32.totalorder %s23, 1
      %p54 = por %p52, %p53
      %p55 = scmp.ne.s32.totalorder %s47, %s50
      %p56 = scmp.eq.s32.totalorder %s23, 0
      %p57 = por %p55, %p56
      %p58 = scmp.ne.s32.totalorder %s47, %s50
      %p59 = scmp.eq.s32.totalorder %s28, 1
      %p60 = por %p58, %p59
      %p61 = scmp.ne.s32.totalorder %s50, %s51
      %p62 = scmp.eq.s32.totalorder %s28, 0
      %p63 = por %p61, %p62
      %p64 = scmp.ne.s32.totalorder %s50, %s51
      %p65 = scmp.eq.s32.totalorder %s29, 1
      %p66 = por %p64, %p65
      %p68 = scmp.ne.s32.totalorder %s51, %s67
      %p69 = scmp.eq.s32.totalorder %s29, 0
      %p70 = por %p68, %p69
      %s71 = ssub.s32 %s30, %s42
      %p72 = scmp.eq.s32.totalorder %s71, 0
      %s74 = sadd.s32 %s73, 1
      %s75 = scalar_select %p72, %s73, %s74
      %p78 = pneg %p72
      %p79 = scmp.eq.s32.totalorder %s23, 1
      %p80 = por %p78, %p79
      %p81 = scmp.ne.s32.totalorder %s73, %s76
      %p82 = scmp.eq.s32.totalorder %s23, 0
      %p83 = por %p81, %p82
      %p84 = scmp.ne.s32.totalorder %s73, %s76
      %p85 = scmp.eq.s32.totalorder %s28, 1
      %p86 = por %p84, %p85
      %p87 = scmp.ne.s32.totalorder %s76, %s77
      %p88 = scmp.eq.s32.totalorder %s28, 0
      %p89 = por %p87, %p88
      %p90 = scmp.ne.s32.totalorder %s76, %s77
      %p91 = scmp.eq.s32.totalorder %s29, 1
      %p92 = por %p90, %p91
      %p94 = scmp.ne.s32.totalorder %s77, %s93
      %p95 = scmp.eq.s32.totalorder %s29, 0
      %p96 = por %p94, %p95
      %s97 = ssub.s32 %s30, %s42
      %p98 = scmp.eq.s32.totalorder %s97, 0
      %s100 = sadd.s32 %s99, 1
      %s101 = scalar_select %p98, %s99, %s100
      %p104 = pneg %p98
      %p105 = scmp.eq.s32.totalorder %s23, 1
      %p106 = por %p104, %p105
      %p107 = scmp.ne.s32.totalorder %s99, %s102
      %p108 = scmp.eq.s32.totalorder %s23, 0
      %p109 = por %p107, %p108
      %p110 = scmp.ne.s32.totalorder %s99, %s102
      %p111 = scmp.eq.s32.totalorder %s28, 1
      %p112 = por %p110, %p111
      %p113 = scmp.ne.s32.totalorder %s102, %s103
      %p114 = scmp.eq.s32.totalorder %s28, 0
      %p115 = por %p113, %p114
      %p116 = scmp.ne.s32.totalorder %s102, %s103
      %p117 = scmp.eq.s32.totalorder %s29, 1
      %p118 = por %p116, %p117
      %p120 = scmp.ne.s32.totalorder %s103, %s119
      %p121 = scmp.eq.s32.totalorder %s29, 0
      %p122 = por %p120, %p121
      %s124 = sadd.s32 %s123, 1
      %p127 = scmp.eq.s32.totalorder %s23, 1
      %p128 = scmp.ne.s32.totalorder %s123, %s125
      %p129 = scmp.eq.s32.totalorder %s23, 0
      %p130 = por %p128, %p129
      %p131 = scmp.ne.s32.totalorder %s123, %s125
      %p132 = scmp.eq.s32.totalorder %s28, 1
      %p133 = por %p131, %p132
      %p134 = scmp.ne.s32.totalorder %s125, %s126
      %p135 = scmp.eq.s32.totalorder %s28, 0
      %p136 = por %p134, %p135
      %p137 = scmp.ne.s32.totalorder %s125, %s126
      %p138 = scmp.eq.s32.totalorder %s29, 1
      %p139 = por %p137, %p138
      %p141 = scmp.ne.s32.totalorder %s126, %s140
      %p142 = scmp.eq.s32.totalorder %s29, 0
      %p143 = por %p141, %p142
      %s145 = sadd.s32 %s144, 1
      %p148 = scmp.eq.s32.totalorder %s23, 1
      %p149 = scmp.ne.s32.totalorder %s144, %s146
      %p150 = scmp.eq.s32.totalorder %s23, 0
      %p151 = por %p149, %p150
      %p152 = scmp.ne.s32.totalorder %s144, %s146
      %p153 = scmp.eq.s32.totalorder %s28, 1
      %p154 = por %p152, %p153
      %p155 = scmp.ne.s32.totalorder %s146, %s147
      %p156 = scmp.eq.s32.totalorder %s28, 0
      %p157 = por %p155, %p156
      %p158 = scmp.ne.s32.totalorder %s146, %s147
      %p159 = scmp.eq.s32.totalorder %s29, 1
      %p160 = por %p158, %p159
      %p162 = scmp.ne.s32.totalorder %s147, %s161
      %p163 = scmp.eq.s32.totalorder %s29, 0
      %p164 = por %p162, %p163
      %s166 = sadd.s32 %s165, 1
      %p169 = scmp.eq.s32.totalorder %s23, 1
      %p170 = scmp.ne.s32.totalorder %s165, %s167
      %p171 = scmp.eq.s32.totalorder %s23, 0
      %p172 = por %p170, %p171
      %p173 = scmp.ne.s32.totalorder %s165, %s167
      %p174 = scmp.eq.s32.totalorder %s28, 1
      %p175 = por %p173, %p174
      %p176 = scmp.ne.s32.totalorder %s167, %s168
      %p177 = scmp.eq.s32.totalorder %s28, 0
      %p178 = por %p176, %p177
      %p179 = scmp.ne.s32.totalorder %s167, %s168
      %p180 = scmp.eq.s32.totalorder %s29, 1
      %p181 = por %p179, %p180
      %p183 = scmp.ne.s32.totalorder %s168, %s182
      %p184 = scmp.eq.s32.totalorder %s29, 0
      %p185 = por %p183, %p184
      %s187 = sadd.s32 %s186, 1
      %p190 = scmp.eq.s32.totalorder %s23, 1
      %p191 = scmp.ne.s32.totalorder %s186, %s188
      %p192 = scmp.eq.s32.totalorder %s23, 0
      %p193 = por %p191, %p192
      %p194 = scmp.ne.s32.totalorder %s186, %s188
      %p195 = scmp.eq.s32.totalorder %s28, 1
      %p196 = por %p194, %p195
      %p197 = scmp.ne.s32.totalorder %s188, %s189
      %p198 = scmp.eq.s32.totalorder %s28, 0
      %p199 = por %p197, %p198
      %p200 = scmp.ne.s32.totalorder %s188, %s189
      %p201 = scmp.eq.s32.totalorder %s29, 1
      %p202 = por %p200, %p201
      %p204 = scmp.ne.s32.totalorder %s189, %s203
      %p205 = scmp.eq.s32.totalorder %s29, 0
      %p206 = por %p204, %p205
      %s207 = ssub.s32 %s30, %s42
      %s208 = ssub.s32 %s31, %s38
      %s209 = sor.u32 %s207, %s208
      %p210 = scmp.eq.s32.totalorder %s209, 0
      %s212 = sadd.s32 %s211, 1
      %s213 = scalar_select %p210, %s211, %s212
      %p216 = pneg %p210
      %p217 = scmp.eq.s32.totalorder %s23, 1
      %p218 = por %p216, %p217
      %p219 = scmp.ne.s32.totalorder %s211, %s214
      %p220 = scmp.eq.s32.totalorder %s23, 0
      %p221 = por %p219, %p220
      %p222 = scmp.ne.s32.totalorder %s211, %s214
      %p223 = scmp.eq.s32.totalorder %s28, 1
      %p224 = por %p222, %p223
      %p225 = scmp.ne.s32.totalorder %s214, %s215
      %p226 = scmp.eq.s32.totalorder %s28, 0
      %p227 = por %p225, %p226
      %p228 = scmp.ne.s32.totalorder %s214, %s215
      %p229 = scmp.eq.s32.totalorder %s29, 1
      %p230 = por %p228, %p229
      %p232 = scmp.ne.s32.totalorder %s215, %s231
      %p233 = scmp.eq.s32.totalorder %s29, 0
      %p234 = por %p232, %p233
      %p235 = scmp.le.s32.totalorder 1, %s23
      %p236 = scmp.lt.s32.totalorder %s23, 3
      %p237 = pnand %p235, %p236
      %p238 = pneg %p237
      // Predicated region
      $region9: #{tpu_custom_call.1} parent=5 // pred_check
        _
      $region10: #{tpu_custom_call.1} parent=5 // pred_check_branch
        %240 = sbr.rel (%p237) target = $region12
      $region11: #{tpu_custom_call.1} parent=5 // pred_region
        %s241 = ssub.s32 %s23, 1
        // Predicated region
        $region13: #{tpu_custom_call.1} parent=11 // pred_check
          %p242 = pneg %p136
        $region14: #{tpu_custom_call.1} parent=11 // pred_check_branch
          %244 = sbr.rel (%p242) target = $region16
        $region15: #{tpu_custom_call.1} parent=11 // pred_region
          %s246 = ssub.s32 768, 768
          %247 = vsyncadd [#allocation12], %s246
          %s248 = sshll.u32 [#allocation11], 4
          %s249 = int_to_ptr.vmem [resolvable:$true] %s248
          %254 = dma.hbm_to_vmem [thread:$0]  %s3, 768, %s249, [#allocation12], 64, 64, 4
        $region16: #{tpu_custom_call.1} parent=11 // pred_fallthru
          _
        // Predicated region
        $region17: #{tpu_custom_call.1} parent=11 // pred_check
          %p255 = pneg %p157
        $region18: #{tpu_custom_call.1} parent=11 // pred_check_branch
          %257 = sbr.rel (%p255) target = $region20
        $region19: #{tpu_custom_call.1} parent=11 // pred_region
          %s259 = ssub.s32 48, 48
          %260 = vsyncadd [#allocation12], %s259
          %s261 = sshll.u32 [#allocation13], 4
          %s262 = int_to_ptr.vmem [resolvable:$true] %s261
          %267 = dma.hbm_to_vmem [thread:$0]  %s4, 48, %s262, [#allocation12], 16, 16, 1
        $region20: #{tpu_custom_call.1} parent=11 // pred_fallthru
          _
        // Predicated region
        $region21: #{tpu_custom_call.1} parent=11 // pred_check
          %p268 = pneg %p178
        $region22: #{tpu_custom_call.1} parent=11 // pred_check_branch
          %270 = sbr.rel (%p268) target = $region24
        $region23: #{tpu_custom_call.1} parent=11 // pred_region
          _
        $region24: #{tpu_custom_call.1} parent=11 // pred_fallthru
          _
        // Predicated region
        $region25: #{tpu_custom_call.1} parent=11 // pred_check
          %p271 = pneg %p199
        $region26: #{tpu_custom_call.1} parent=11 // pred_check_branch
          %273 = sbr.rel (%p271) target = $region28
        $region27: #{tpu_custom_call.1} parent=11 // pred_region
          _
        $region28: #{tpu_custom_call.1} parent=11 // pred_fallthru
          _
      $region12: #{tpu_custom_call.1} parent=5 // pred_fallthru
        _
      %p274 = scmp.lt.s32.totalorder %s23, 2
      // Predicated region
      $region29: #{tpu_custom_call.1} parent=5 // pred_check
        %p275 = pneg %p274
      $region30: #{tpu_custom_call.1} parent=5 // pred_check_branch
        %277 = sbr.rel (%p275) target = $region32
      $region31: #{tpu_custom_call.1} parent=5 // pred_region
        // Predicated region
        $region33: #{tpu_custom_call.1} parent=31 // pred_check
          %p278 = pneg %p57
        $region34: #{tpu_custom_call.1} parent=31 // pred_check_branch
          %280 = sbr.rel (%p278) target = $region36
        $region35: #{tpu_custom_call.1} parent=31 // pred_region
          %s281 = sand.u32 %s47, 1
          %s282 = scalar_lea.sflag [#allocation6], %s281
          %s283 = sand.u32 %s47, 1
          %s284 = smul.addr %s283, 4
          %s285 = scalar_lea.vmem [#allocation5], %s284
          %s287 = ssub.s32 64, 64
          %288 = vsyncadd %s282, %s287
          %s289 = sadd.s32 %s31, %s30
          %s290 = smul.addr %s289, 64
          %s291 = scalar_lea.hbm %s0, %s290
          %s293 = sshll.u32 %s285, 4
          %s294 = int_to_ptr.vmem [resolvable:$true] %s293
          %296 = dma.hbm_to_vmem [thread:$0]  %s291, 64, %s294, %s282
        $region36: #{tpu_custom_call.1} parent=31 // pred_fallthru
          _
        // Predicated region
        $region37: #{tpu_custom_call.1} parent=31 // pred_check
          %p297 = pneg %p83
        $region38: #{tpu_custom_call.1} parent=31 // pred_check_branch
          %299 = sbr.rel (%p297) target = $region40
        $region39: #{tpu_custom_call.1} parent=31 // pred_region
          %s300 = sand.u32 %s23, 1
          %s301 = scalar_lea.sflag [#allocation9], %s300
          %s302 = sand.u32 %s73, 1
          %s303 = smul.addr %s302, 4
          %s304 = scalar_lea.vmem [#allocation8], %s303
          %s306 = ssub.s32 64, 64
          %307 = vsyncadd %s301, %s306
          %s308 = smul.addr %s30, 64
          %s309 = scalar_lea.hbm %s1, %s308
          %s311 = sshll.u32 %s304, 4
          %s312 = int_to_ptr.vmem [resolvable:$true] %s311
          %314 = dma.hbm_to_vmem [thread:$0]  %s309, 64, %s312, %s301
        $region40: #{tpu_custom_call.1} parent=31 // pred_fallthru
          _
        // Predicated region
        $region41: #{tpu_custom_call.1} parent=31 // pred_check
          %p315 = pneg %p109
        $region42: #{tpu_custom_call.1} parent=31 // pred_check_branch
          %317 = sbr.rel (%p315) target = $region44
        $region43: #{tpu_custom_call.1} parent=31 // pred_region
          %s318 = sand.u32 %s23, 1
          %s319 = scalar_lea.sflag [#allocation9], %s318
          %s320 = sand.u32 %s99, 1
          %s321 = smul.addr %s320, 4
          %s322 = scalar_lea.vmem [#allocation10], %s321
          %s324 = ssub.s32 64, 64
          %325 = vsyncadd %s319, %s324
          %s326 = smul.addr %s30, 64
          %s327 = scalar_lea.hbm %s2, %s326
          %s329 = sshll.u32 %s322, 4
          %s330 = int_to_ptr.vmem [resolvable:$true] %s329
          %332 = dma.hbm_to_vmem [thread:$0]  %s327, 64, %s330, %s319
        $region44: #{tpu_custom_call.1} parent=31 // pred_fallthru
          _
      $region32: #{tpu_custom_call.1} parent=5 // pred_fallthru
        _
      %p333 = scmp.le.s32.totalorder 1, %s23
      %p334 = scmp.lt.s32.totalorder %s23, 3
      %p335 = pnand %p333, %p334
      %p336 = pneg %p335
      // Predicated region
      $region45: #{tpu_custom_call.1} parent=5 // pred_check
        _
      $region46: #{tpu_custom_call.1} parent=5 // pred_check_branch
        %338 = sbr.rel (%p335) target = $region48
      $region47: #{tpu_custom_call.1} parent=5 // pred_region
        %s339 = ssub.s32 %s23, 1
        %s340 = sand.u32 %s50, 1
        %s341 = scalar_lea.sflag [#allocation6], %s340
        %s342 = sand.u32 %s50, 1
        %s343 = smul.addr %s342, 4
        %s344 = scalar_lea.vmem [#allocation5], %s343
        // Predicated region
        $region49: #{tpu_custom_call.1} parent=47 // pred_check
          %p345 = pneg %p63
        $region50: #{tpu_custom_call.1} parent=47 // pred_check_branch
          %347 = sbr.rel (%p345) target = $region52
        $region51: #{tpu_custom_call.1} parent=47 // pred_region
          %348 = dma.done %s341, 64
        $region52: #{tpu_custom_call.1} parent=47 // pred_fallthru
          _
        %s349 = sand.u32 %s28, 1
        %s350 = scalar_lea.sflag [#allocation9], %s349
        %s351 = sand.u32 %s76, 1
        %s352 = smul.addr %s351, 4
        %s353 = scalar_lea.vmem [#allocation8], %s352
        // Predicated region
        $region53: #{tpu_custom_call.1} parent=47 // pred_check
          %p354 = pneg %p89
        $region54: #{tpu_custom_call.1} parent=47 // pred_check_branch
          %356 = sbr.rel (%p354) target = $region56
        $region55: #{tpu_custom_call.1} parent=47 // pred_region
          %357 = dma.done %s350, 64
        $region56: #{tpu_custom_call.1} parent=47 // pred_fallthru
          _
        %s358 = sand.u32 %s28, 1
        %s359 = scalar_lea.sflag [#allocation9], %s358
        %s360 = sand.u32 %s102, 1
        %s361 = smul.addr %s360, 4
        %s362 = scalar_lea.vmem [#allocation10], %s361
        // Predicated region
        $region57: #{tpu_custom_call.1} parent=47 // pred_check
          %p363 = pneg %p115
        $region58: #{tpu_custom_call.1} parent=47 // pred_check_branch
          %365 = sbr.rel (%p363) target = $region60
        $region59: #{tpu_custom_call.1} parent=47 // pred_region
          %366 = dma.done %s359, 64
        $region60: #{tpu_custom_call.1} parent=47 // pred_fallthru
          _
        // Predicated region
        $region61: #{tpu_custom_call.1} parent=47 // pred_check
          %p367 = pneg %p136
        $region62: #{tpu_custom_call.1} parent=47 // pred_check_branch
          %369 = sbr.rel (%p367) target = $region64
        $region63: #{tpu_custom_call.1} parent=47 // pred_region
          %370 = dma.done [#allocation12], 768
        $region64: #{tpu_custom_call.1} parent=47 // pred_fallthru
          _
        // Predicated region
        $region65: #{tpu_custom_call.1} parent=47 // pred_check
          %p371 = pneg %p157
        $region66: #{tpu_custom_call.1} parent=47 // pred_check_branch
          %373 = sbr.rel (%p371) target = $region68
        $region67: #{tpu_custom_call.1} parent=47 // pred_region
          %374 = dma.done [#allocation12], 48
        $region68: #{tpu_custom_call.1} parent=47 // pred_fallthru
          _
        %s375 = sand.u32 %s50, 1
        %s376 = scalar_lea.sflag [#allocation6], %s375
        %s377 = sand.u32 %s50, 1
        %s378 = smul.addr %s377, 4
        %s379 = scalar_lea.vmem [#allocation5], %s378
        %p380 = pneg %p63
        %p381 = pneg %p60
        %s382 = sand.u32 %s28, 1
        %s383 = scalar_lea.sflag [#allocation9], %s382
        %s384 = sand.u32 %s76, 1
        %s385 = smul.addr %s384, 4
        %s386 = scalar_lea.vmem [#allocation8], %s385
        %p387 = pneg %p89
        %p388 = pneg %p86
        %s389 = sand.u32 %s28, 1
        %s390 = scalar_lea.sflag [#allocation9], %s389
        %s391 = sand.u32 %s102, 1
        %s392 = smul.addr %s391, 4
        %s393 = scalar_lea.vmem [#allocation10], %s392
        %p394 = pneg %p115
        %p395 = pneg %p112
        %p396 = pneg %p136
        %p397 = pneg %p133
        %p398 = pneg %p157
        %p399 = pneg %p154
        %p400 = pneg %p178
        %p401 = pneg %p175
        %p402 = pneg %p199
        %p403 = pneg %p196
        %p404 = pneg %p227
        %p405 = pneg %p224
        %s406 = sand.u32 %s214, 1
        %s407 = scalar_lea.sflag [#allocation7], %s406
        %s408 = sand.u32 %s214, 1
        %s409 = smul.addr %s408, 8
        %s410 = scalar_lea.vmem [#allocation14], %s409
        %p412 = scmp.eq.s32.totalorder %s33, 0
        // Predicated region
        $region69: #{tpu_custom_call.1} parent=47 // pred_check
          %p413 = pneg %p412
        $region70: #{tpu_custom_call.1} parent=47 // pred_check_branch
          %415 = sbr.rel (%p413) target = $region72
        $region71: #{tpu_custom_call.1} parent=47 // pred_region
          %v416 = vld [vmem:[%s353] sm:$0xf]
          %s417 = scalar_lea.vmem [#allocation11], 16
          %v418 = vld [vmem:[%s417] sm:$0xf]
          %v419 = vld [vmem:[%s417 + $0x4] sm:$0xf]
          %v420 = vld [vmem:[%s417 + $0x8] sm:$0xf]
          %v421 = vld [vmem:[%s417 + $0xc] sm:$0xf]
          %s422 = scalar_lea.vmem [#allocation13], 1
          %v423 = vld [vmem:[%s422] sm:$0x1]
          %v425 = vlaneseq
          %v426 = vshrl.u32 %v425, 7
          %v427 = vsub.s32 0, %v426
          %v428 = vrot.slane %v423, %v427
          %v434 = vunpack.c.l.b16 %v418
          %v435 = vunpack.c.l.b16 %v419
          %v436 = vunpack.c.l.b16 %v420
          %v437 = vunpack.c.l.b16 %v421
          %v438 = vpack.c.b16 %v435, %v434
          %v439 = vpack.c.b16 %v437, %v436
          %vm442 = vcmask 261120
          %v444 = vsel %vm442, %v416, 0
          %446 = vmatprep.subr.bf16.mxu0 0
          %447 = vmatpush1.bf16.msra.mxu0 %v438
          %448 = vmatprep.subr.bf16.mxu0 0
          %449 = vmatpush1.bf16.msra.mxu0 %v439
          %450 = vmatprep.subr.bf16.mxu0 0
          %451 = vmatpush1.bf16.msra.mxu0 0
          %452 = vmatprep.subr.bf16.mxu0 0
          %453 = vmatpush1.bf16.msra.mxu0 0
          %454 = vmatprep.subr.bf16.mxu0 0
          %455 = vmatpush1.bf16.msra.mxu0 0
          %456 = vmatprep.subr.bf16.mxu0 0
          %457 = vmatpush1.bf16.msra.mxu0 0
          %458 = vmatprep.subr.bf16.mxu0 0
          %459 = vmatpush1.bf16.msra.mxu0 0
          %460 = vmatprep.subr.bf16.mxu0 0
          %461 = vmatpush1.bf16.msra.mxu0 0
          %462 = vmatprep.subr.bf16.mxu0 0
          %463 = vmatpush1.bf16.msra.mxu0 0
          %464 = vmatprep.subr.bf16.mxu0 0
          %465 = vmatpush1.bf16.msra.mxu0 0
          %466 = vmatprep.subr.bf16.mxu0 0
          %467 = vmatpush1.bf16.msra.mxu0 0
          %468 = vmatprep.subr.bf16.mxu0 0
          %469 = vmatpush1.bf16.msra.mxu0 0
          %470 = vmatprep.subr.bf16.mxu0 0
          %471 = vmatpush1.bf16.msra.mxu0 0
          %472 = vmatprep.subr.bf16.mxu0 0
          %473 = vmatpush1.bf16.msra.mxu0 0
          %474 = vmatprep.subr.bf16.mxu0 0
          %475 = vmatpush1.bf16.msra.mxu0 0
          %476 = vmatprep.subr.bf16.mxu0 0
          %477 = vmatpush1.bf16.msra.mxu0 0
          %478 = vmatprep.mubr.bf16.mxu0 0
          %479 = vmatmul.mubr.bf16.gmra.mrb[0].mxu0 %v444
          %v480 = vpop.f32.mrb[0].mxu0
          %v481 = vadd.f32 %v428, %v480
          %v482 = vpop.f32.mrb[0].mxu0
          %v483 = vpop.f32.mrb[0].mxu0
          %v484 = vpop.f32.mrb[0].mxu0
          %485 = vdwg.mxu0
          %v486 = vld [vmem:[%s362] sm:$0xf]
          %s487 = scalar_lea.vmem [#allocation11], 32
          %v488 = vld [vmem:[%s487] sm:$0xf]
          %v489 = vld [vmem:[%s487 + $0x4] sm:$0xf]
          %v490 = vld [vmem:[%s487 + $0x8] sm:$0xf]
          %v491 = vld [vmem:[%s487 + $0xc] sm:$0xf]
          %s492 = scalar_lea.vmem [#allocation13], 2
          %v493 = vld [vmem:[%s492] sm:$0x1]
          %v495 = vlaneseq
          %v496 = vshrl.u32 %v495, 7
          %v497 = vsub.s32 0, %v496
          %v498 = vrot.slane %v493, %v497
          %v504 = vunpack.c.l.b16 %v488
          %v505 = vunpack.c.l.b16 %v489
          %v506 = vunpack.c.l.b16 %v490
          %v507 = vunpack.c.l.b16 %v491
          %v508 = vpack.c.b16 %v505, %v504
          %v509 = vpack.c.b16 %v507, %v506
          %v513 = vsel %vm442, %v486, 0
          %515 = vmatprep.subr.bf16.mxu0 0
          %516 = vmatpush1.bf16.msra.mxu0 %v508
          %517 = vmatprep.subr.bf16.mxu0 0
          %518 = vmatpush1.bf16.msra.mxu0 %v509
          %519 = vmatprep.subr.bf16.mxu0 0
          %520 = vmatpush1.bf16.msra.mxu0 0
          %521 = vmatprep.subr.bf16.mxu0 0
          %522 = vmatpush1.bf16.msra.mxu0 0
          %523 = vmatprep.subr.bf16.mxu0 0
          %524 = vmatpush1.bf16.msra.mxu0 0
          %525 = vmatprep.subr.bf16.mxu0 0
          %526 = vmatpush1.bf16.msra.mxu0 0
          %527 = vmatprep.subr.bf16.mxu0 0
          %528 = vmatpush1.bf16.msra.mxu0 0
          %529 = vmatprep.subr.bf16.mxu0 0
          %530 = vmatpush1.bf16.msra.mxu0 0
          %531 = vmatprep.subr.bf16.mxu0 0
          %532 = vmatpush1.bf16.msra.mxu0 0
          %533 = vmatprep.subr.bf16.mxu0 0
          %534 = vmatpush1.bf16.msra.mxu0 0
          %535 = vmatprep.subr.bf16.mxu0 0
          %536 = vmatpush1.bf16.msra.mxu0 0
          %537 = vmatprep.subr.bf16.mxu0 0
          %538 = vmatpush1.bf16.msra.mxu0 0
          %539 = vmatprep.subr.bf16.mxu0 0
          %540 = vmatpush1.bf16.msra.mxu0 0
          %541 = vmatprep.subr.bf16.mxu0 0
          %542 = vmatpush1.bf16.msra.mxu0 0
          %543 = vmatprep.subr.bf16.mxu0 0
          %544 = vmatpush1.bf16.msra.mxu0 0
          %545 = vmatprep.subr.bf16.mxu0 0
          %546 = vmatpush1.bf16.msra.mxu0 0
          %547 = vmatprep.mubr.bf16.mxu0 0
          %548 = vmatmul.mubr.bf16.gmra.mrb[0].mxu0 %v513
          %v549 = vpop.f32.mrb[0].mxu0
          %v550 = vadd.f32 %v498, %v549
          %v551 = vpop.f32.mrb[0].mxu0
          %v552 = vpop.f32.mrb[0].mxu0
          %v553 = vpop.f32.mrb[0].mxu0
          %554 = vdwg.mxu0
          %v555 = vpack.c.bf16 %v481, %v481
          %vm556 = vcmask 257024
          %557 = vst.msk [vmem:[#allocation2] sm:$0xf] %vm556, %v555
          %v558 = vpack.c.bf16 %v550, %v550
          %559 = vst.msk [vmem:[#allocation3] sm:$0xf] %vm556, %v558
        $region72: #{tpu_custom_call.1} parent=47 // pred_fallthru
          _
        %v560 = vld [vmem:[%s344] sm:$0xf]
        %v561 = vld [vmem:[#allocation11] sm:$0xf]
        %v562 = vld [vmem:[#allocation11 + $0x4] sm:$0xf]
        %v563 = vld [vmem:[#allocation11 + $0x8] sm:$0xf]
        %v564 = vld [vmem:[#allocation11 + $0xc] sm:$0xf]
        %v565 = vld [vmem:[#allocation13] sm:$0x1]
        %v567 = vlaneseq
        %v568 = vshrl.u32 %v567, 7
        %v569 = vsub.s32 0, %v568
        %v570 = vrot.slane %v565, %v569
        %v576 = vunpack.c.l.b16 %v561
        %v577 = vunpack.c.l.b16 %v562
        %v578 = vunpack.c.l.b16 %v563
        %v579 = vunpack.c.l.b16 %v564
        %v580 = vpack.c.b16 %v577, %v576
        %v581 = vpack.c.b16 %v579, %v578
        %vm584 = vcmask 261120
        %v586 = vsel %vm584, %v560, 0
        %588 = vmatprep.subr.bf16.mxu0 0
        %589 = vmatpush1.bf16.msra.mxu0 %v580
        %590 = vmatprep.subr.bf16.mxu0 0
        %591 = vmatpush1.bf16.msra.mxu0 %v581
        %592 = vmatprep.subr.bf16.mxu0 0
        %593 = vmatpush1.bf16.msra.mxu0 0
        %594 = vmatprep.subr.bf16.mxu0 0
        %595 = vmatpush1.bf16.msra.mxu0 0
        %596 = vmatprep.subr.bf16.mxu0 0
        %597 = vmatpush1.bf16.msra.mxu0 0
        %598 = vmatprep.subr.bf16.mxu0 0
        %599 = vmatpush1.bf16.msra.mxu0 0
        %600 = vmatprep.subr.bf16.mxu0 0
        %601 = vmatpush1.bf16.msra.mxu0 0
        %602 = vmatprep.subr.bf16.mxu0 0
        %603 = vmatpush1.bf16.msra.mxu0 0
        %604 = vmatprep.subr.bf16.mxu0 0
        %605 = vmatpush1.bf16.msra.mxu0 0
        %606 = vmatprep.subr.bf16.mxu0 0
        %607 = vmatpush1.bf16.msra.mxu0 0
        %608 = vmatprep.subr.bf16.mxu0 0
        %609 = vmatpush1.bf16.msra.mxu0 0
        %610 = vmatprep.subr.bf16.mxu0 0
        %611 = vmatpush1.bf16.msra.mxu0 0
        %612 = vmatprep.subr.bf16.mxu0 0
        %613 = vmatpush1.bf16.msra.mxu0 0
        %614 = vmatprep.subr.bf16.mxu0 0
        %615 = vmatpush1.bf16.msra.mxu0 0
        %616 = vmatprep.subr.bf16.mxu0 0
        %617 = vmatpush1.bf16.msra.mxu0 0
        %618 = vmatprep.subr.bf16.mxu0 0
        %619 = vmatpush1.bf16.msra.mxu0 0
        %620 = vmatprep.mubr.bf16.mxu0 0
        %621 = vmatmul.mubr.bf16.gmra.mrb[0].mxu0 %v586
        %v622 = vpop.f32.mrb[0].mxu0
        %v623 = vadd.f32 %v570, %v622
        %v624 = vpop.f32.mrb[0].mxu0
        %v625 = vpop.f32.mrb[0].mxu0
        %v626 = vpop.f32.mrb[0].mxu0
        %627 = vdwg.mxu0
        %v628 = vmul.f32 %v623, 0.35355338
        %v629 = vpack.c.bf16 %v628, %v628
        %v630 = vld [vmem:[#allocation2] sm:$0xf]
        %v631 = vld [vmem:[#allocation3] sm:$0xf]
        %vm632 = vcmask 64512
        %v634 = vsel %vm632, %v629, 0
        %v637 = vsel %vm632, %v630, 0
        %639 = vmatprep.subr.bf16.mxu0 0
        %640 = vmatpush1.bf16.xpose.msra.mxu0 %v637
        %641 = vmatprep.subr.bf16.mxu0 0
        %642 = vmatpush1.bf16.xpose.msra.mxu0 0
        %643 = vmatprep.subr.bf16.mxu0 0
        %644 = vmatpush1.bf16.xpose.msra.mxu0 0
        %645 = vmatprep.subr.bf16.mxu0 0
        %646 = vmatpush1.bf16.xpose.msra.mxu0 0
        %647 = vmatprep.subr.bf16.mxu0 0
        %648 = vmatpush1.bf16.xpose.msra.mxu0 0
        %649 = vmatprep.subr.bf16.mxu0 0
        %650 = vmatpush1.bf16.xpose.msra.mxu0 0
        %651 = vmatprep.subr.bf16.mxu0 0
        %652 = vmatpush1.bf16.xpose.msra.mxu0 0
        %653 = vmatprep.subr.bf16.mxu0 0
        %654 = vmatpush1.bf16.xpose.msra.mxu0 0
        %655 = vmatprep.subr.bf16.mxu0 0
        %656 = vmatpush1.bf16.xpose.msra.mxu0 0
        %657 = vmatprep.subr.bf16.mxu0 0
        %658 = vmatpush1.bf16.xpose.msra.mxu0 0
        %659 = vmatprep.subr.bf16.mxu0 0
        %660 = vmatpush1.bf16.xpose.msra.mxu0 0
        %661 = vmatprep.subr.bf16.mxu0 0
        %662 = vmatpush1.bf16.xpose.msra.mxu0 0
        %663 = vmatprep.subr.bf16.mxu0 0
        %664 = vmatpush1.bf16.xpose.msra.mxu0 0
        %665 = vmatprep.subr.bf16.mxu0 0
        %666 = vmatpush1.bf16.xpose.msra.mxu0 0
        %667 = vmatprep.subr.bf16.mxu0 0
        %668 = vmatpush1.bf16.xpose.msra.mxu0 0
        %669 = vmatprep.subr.bf16.mxu0 0
        %670 = vmatpush1.bf16.xpose.msra.mxu0 0
        %671 = vmatprep.mubr.bf16.mxu0 0
        %672 = vmatmul.mubr.bf16.gmra.mrb[0].mxu0 %v634
        %v673 = vpop.f32.mrb[0].mxu0
        %v674 = vadd.f32 0.0, %v673
        %v675 = vpop.f32.mrb[0].mxu0
        %v676 = vpop.f32.mrb[0].mxu0
        %v677 = vpop.f32.mrb[0].mxu0
        %678 = vdwg.mxu0
        %v679 = vsel %vm632, %v674, -inf
        %680 = vmax.xlane.f32.xlu0 %v679
        %v681 = vpop.xlane.xlu0 %680
        %v682 = vsub.f32 %v674, %v681
        %v683 = vmul.f32 %v682, 1.442695
        %v684 = vpow.pop %v683
        %v685 = vsel %vm632, %v684, 0.0
        %686 = vadd.xlane.f32.xlu0 %v685
        %v687 = vpop.xlane.xlu0 %686
        %v688 = vrcp.pop %v687
        %v689 = vpack.c.bf16 %v684, %v684
        %v691 = vsel %vm632, %v689, 0
        %vm693 = vcmask 1043456
        %v695 = vsel %vm693, %v631, 0
        %697 = vmatprep.subr.bf16.mxu0 0
        %698 = vmatpush1.bf16.msra.mxu0 %v695
        %699 = vmatprep.subr.bf16.mxu0 0
        %700 = vmatpush1.bf16.msra.mxu0 0
        %701 = vmatprep.subr.bf16.mxu0 0
        %702 = vmatpush1.bf16.msra.mxu0 0
        %703 = vmatprep.subr.bf16.mxu0 0
        %704 = vmatpush1.bf16.msra.mxu0 0
        %705 = vmatprep.subr.bf16.mxu0 0
        %706 = vmatpush1.bf16.msra.mxu0 0
        %707 = vmatprep.subr.bf16.mxu0 0
        %708 = vmatpush1.bf16.msra.mxu0 0
        %709 = vmatprep.subr.bf16.mxu0 0
        %710 = vmatpush1.bf16.msra.mxu0 0
        %711 = vmatprep.subr.bf16.mxu0 0
        %712 = vmatpush1.bf16.msra.mxu0 0
        %713 = vmatprep.subr.bf16.mxu0 0
        %714 = vmatpush1.bf16.msra.mxu0 0
        %715 = vmatprep.subr.bf16.mxu0 0
        %716 = vmatpush1.bf16.msra.mxu0 0
        %717 = vmatprep.subr.bf16.mxu0 0
        %718 = vmatpush1.bf16.msra.mxu0 0
        %719 = vmatprep.subr.bf16.mxu0 0
        %720 = vmatpush1.bf16.msra.mxu0 0
        %721 = vmatprep.subr.bf16.mxu0 0
        %722 = vmatpush1.bf16.msra.mxu0 0
        %723 = vmatprep.subr.bf16.mxu0 0
        %724 = vmatpush1.bf16.msra.mxu0 0
        %725 = vmatprep.subr.bf16.mxu0 0
        %726 = vmatpush1.bf16.msra.mxu0 0
        %727 = vmatprep.subr.bf16.mxu0 0
        %728 = vmatpush1.bf16.msra.mxu0 0
        %729 = vmatprep.mubr.bf16.mxu0 0
        %730 = vmatmul.mubr.bf16.gmra.mrb[0].mxu0 %v691
        %v731 = vpop.f32.mrb[0].mxu0
        %v732 = vadd.f32 0.0, %v731
        %v733 = vpop.f32.mrb[0].mxu0
        %v734 = vpop.f32.mrb[0].mxu0
        %v735 = vpop.f32.mrb[0].mxu0
        %736 = vdwg.mxu0
        %v737 = vmul.f32 %v732, %v688
        %v738 = vpack.c.bf16 %v737, %v737
        %vm739 = vcmask 60416
        %740 = vst.msk [vmem:[#allocation4] sm:$0xf] %vm739, %v738
        %v741 = vld [vmem:[#allocation2] sm:$0xf]
        %v742 = vld [vmem:[#allocation3] sm:$0xf]
        %744 = vrot.lane.b32.xlu0 %v629, 120
        %v745 = vpop.permute.xlu0 %744
        %v747 = vunpack.c.l.b16 %v741
        %v748 = vpack.c.b16 %v747, %v747
        %749 = vrot.lane.b32.xlu0 %v748, 120
        %v750 = vpop.permute.xlu0 %749
        %v752 = vsel %vm632, %v745, 0
        %v755 = vsel %vm632, %v750, 0
        %757 = vmatprep.subr.bf16.mxu0 0
        %758 = vmatpush1.bf16.xpose.msra.mxu0 %v755
        %759 = vmatprep.subr.bf16.mxu0 0
        %760 = vmatpush1.bf16.xpose.msra.mxu0 0
        %761 = vmatprep.subr.bf16.mxu0 0
        %762 = vmatpush1.bf16.xpose.msra.mxu0 0
        %763 = vmatprep.subr.bf16.mxu0 0
        %764 = vmatpush1.bf16.xpose.msra.mxu0 0
        %765 = vmatprep.subr.bf16.mxu0 0
        %766 = vmatpush1.bf16.xpose.msra.mxu0 0
        %767 = vmatprep.subr.bf16.mxu0 0
        %768 = vmatpush1.bf16.xpose.msra.mxu0 0
        %769 = vmatprep.subr.bf16.mxu0 0
        %770 = vmatpush1.bf16.xpose.msra.mxu0 0
        %771 = vmatprep.subr.bf16.mxu0 0
        %772 = vmatpush1.bf16.xpose.msra.mxu0 0
        %773 = vmatprep.subr.bf16.mxu0 0
        %774 = vmatpush1.bf16.xpose.msra.mxu0 0
        %775 = vmatprep.subr.bf16.mxu0 0
        %776 = vmatpush1.bf16.xpose.msra.mxu0 0
        %777 = vmatprep.subr.bf16.mxu0 0
        %778 = vmatpush1.bf16.xpose.msra.mxu0 0
        %779 = vmatprep.subr.bf16.mxu0 0
        %780 = vmatpush1.bf16.xpose.msra.mxu0 0
        %781 = vmatprep.subr.bf16.mxu0 0
        %782 = vmatpush1.bf16.xpose.msra.mxu0 0
        %783 = vmatprep.subr.bf16.mxu0 0
        %784 = vmatpush1.bf16.xpose.msra.mxu0 0
        %785 = vmatprep.subr.bf16.mxu0 0
        %786 = vmatpush1.bf16.xpose.msra.mxu0 0
        %787 = vmatprep.subr.bf16.mxu0 0
        %788 = vmatpush1.bf16.xpose.msra.mxu0 0
        %789 = vmatprep.mubr.bf16.mxu0 0
        %790 = vmatmul.mubr.bf16.gmra.mrb[0].mxu0 %v752
        %v791 = vpop.f32.mrb[0].mxu0
        %v792 = vadd.f32 0.0, %v791
        %v793 = vpop.f32.mrb[0].mxu0
        %v794 = vpop.f32.mrb[0].mxu0
        %v795 = vpop.f32.mrb[0].mxu0
        %796 = vdwg.mxu0
        %v797 = vsel %vm632, %v792, -inf
        %798 = vmax.xlane.f32.xlu0 %v797
        %v799 = vpop.xlane.xlu0 %798
        %v800 = vsub.f32 %v792, %v799
        %v801 = vmul.f32 %v800, 1.442695
        %v802 = vpow.pop %v801
        %v803 = vsel %vm632, %v802, 0.0
        %804 = vadd.xlane.f32.xlu0 %v803
        %v805 = vpop.xlane.xlu0 %804
        %v806 = vrcp.pop %v805
        %v807 = vpack.c.bf16 %v802, %v802
        %v809 = vunpack.c.l.b16 %v742
        %v810 = vpack.c.b16 %v809, %v809
        %811 = vrot.lane.b32.xlu0 %v810, 120
        %v812 = vpop.permute.xlu0 %811
        %v814 = vsel %vm632, %v807, 0
        %v817 = vsel %vm693, %v812, 0
        %819 = vmatprep.subr.bf16.mxu0 0
        %820 = vmatpush1.bf16.msra.mxu0 %v817
        %821 = vmatprep.subr.bf16.mxu0 0
        %822 = vmatpush1.bf16.msra.mxu0 0
        %823 = vmatprep.subr.bf16.mxu0 0
        %824 = vmatpush1.bf16.msra.mxu0 0
        %825 = vmatprep.subr.bf16.mxu0 0
        %826 = vmatpush1.bf16.msra.mxu0 0
        %827 = vmatprep.subr.bf16.mxu0 0
        %828 = vmatpush1.bf16.msra.mxu0 0
        %829 = vmatprep.subr.bf16.mxu0 0
        %830 = vmatpush1.bf16.msra.mxu0 0
        %831 = vmatprep.subr.bf16.mxu0 0
        %832 = vmatpush1.bf16.msra.mxu0 0
        %833 = vmatprep.subr.bf16.mxu0 0
        %834 = vmatpush1.bf16.msra.mxu0 0
        %835 = vmatprep.subr.bf16.mxu0 0
        %836 = vmatpush1.bf16.msra.mxu0 0
        %837 = vmatprep.subr.bf16.mxu0 0
        %838 = vmatpush1.bf16.msra.mxu0 0
        %839 = vmatprep.subr.bf16.mxu0 0
        %840 = vmatpush1.bf16.msra.mxu0 0
        %841 = vmatprep.subr.bf16.mxu0 0
        %842 = vmatpush1.bf16.msra.mxu0 0
        %843 = vmatprep.subr.bf16.mxu0 0
        %844 = vmatpush1.bf16.msra.mxu0 0
        %845 = vmatprep.subr.bf16.mxu0 0
        %846 = vmatpush1.bf16.msra.mxu0 0
        %847 = vmatprep.subr.bf16.mxu0 0
        %848 = vmatpush1.bf16.msra.mxu0 0
        %849 = vmatprep.subr.bf16.mxu0 0
        %850 = vmatpush1.bf16.msra.mxu0 0
        %851 = vmatprep.mubr.bf16.mxu0 0
        %852 = vmatmul.mubr.bf16.gmra.mrb[0].mxu0 %v814
        %v853 = vpop.f32.mrb[0].mxu0
        %v854 = vadd.f32 0.0, %v853
        %v855 = vpop.f32.mrb[0].mxu0
        %v856 = vpop.f32.mrb[0].mxu0
        %v857 = vpop.f32.mrb[0].mxu0
        %858 = vdwg.mxu0
        %v859 = vmul.f32 %v854, %v806
        %v860 = vpack.c.bf16 %v859, %v859
        %v862 = vunpack.c.l.b16 %v860
        %v863 = vpack.c.b16 %v862, %v862
        %864 = vrot.lane.b32.xlu0 %v863, 8
        %v865 = vpop.permute.xlu0 %864
        %vm867 = vcmask 126016
        %868 = vst.msk [vmem:[#allocation4] sm:$0xf] %vm867, %v865
        %v869 = vld [vmem:[#allocation2] sm:$0xf]
        %v870 = vld [vmem:[#allocation3] sm:$0xf]
        %871 = vrot.lane.b32.xlu0 %v629, 112
        %v872 = vpop.permute.xlu0 %871
        %v874 = vunpack.c.l.b16 %v869
        %v875 = vpack.c.b16 %v874, %v874
        %876 = vrot.lane.b32.xlu0 %v875, 112
        %v877 = vpop.permute.xlu0 %876
        %v879 = vsel %vm632, %v872, 0
        %v882 = vsel %vm632, %v877, 0
        %884 = vmatprep.subr.bf16.mxu0 0
        %885 = vmatpush1.bf16.xpose.msra.mxu0 %v882
        %886 = vmatprep.subr.bf16.mxu0 0
        %887 = vmatpush1.bf16.xpose.msra.mxu0 0
        %888 = vmatprep.subr.bf16.mxu0 0
        %889 = vmatpush1.bf16.xpose.msra.mxu0 0
        %890 = vmatprep.subr.bf16.mxu0 0
        %891 = vmatpush1.bf16.xpose.msra.mxu0 0
        %892 = vmatprep.subr.bf16.mxu0 0
        %893 = vmatpush1.bf16.xpose.msra.mxu0 0
        %894 = vmatprep.subr.bf16.mxu0 0
        %895 = vmatpush1.bf16.xpose.msra.mxu0 0
        %896 = vmatprep.subr.bf16.mxu0 0
        %897 = vmatpush1.bf16.xpose.msra.mxu0 0
        %898 = vmatprep.subr.bf16.mxu0 0
        %899 = vmatpush1.bf16.xpose.msra.mxu0 0
        %900 = vmatprep.subr.bf16.mxu0 0
        %901 = vmatpush1.bf16.xpose.msra.mxu0 0
        %902 = vmatprep.subr.bf16.mxu0 0
        %903 = vmatpush1.bf16.xpose.msra.mxu0 0
        %904 = vmatprep.subr.bf16.mxu0 0
        %905 = vmatpush1.bf16.xpose.msra.mxu0 0
        %906 = vmatprep.subr.bf16.mxu0 0
        %907 = vmatpush1.bf16.xpose.msra.mxu0 0
        %908 = vmatprep.subr.bf16.mxu0 0
        %909 = vmatpush1.bf16.xpose.msra.mxu0 0
        %910 = vmatprep.subr.bf16.mxu0 0
        %911 = vmatpush1.bf16.xpose.msra.mxu0 0
        %912 = vmatprep.subr.bf16.mxu0 0
        %913 = vmatpush1.bf16.xpose.msra.mxu0 0
        %914 = vmatprep.subr.bf16.mxu0 0
        %915 = vmatpush1.bf16.xpose.msra.mxu0 0
        %916 = vmatprep.mubr.bf16.mxu0 0
        %917 = vmatmul.mubr.bf16.gmra.mrb[0].mxu0 %v879
        %v918 = vpop.f32.mrb[0].mxu0
        %v919 = vadd.f32 0.0, %v918
        %v920 = vpop.f32.mrb[0].mxu0
        %v921 = vpop.f32.mrb[0].mxu0
        %v922 = vpop.f32.mrb[0].mxu0
        %923 = vdwg.mxu0
        %v924 = vsel %vm632, %v919, -inf
        %925 = vmax.xlane.f32.xlu0 %v924
        %v926 = vpop.xlane.xlu0 %925
        %v927 = vsub.f32 %v919, %v926
        %v928 = vmul.f32 %v927, 1.442695
        %v929 = vpow.pop %v928
        %v930 = vsel %vm632, %v929, 0.0
        %931 = vadd.xlane.f32.xlu0 %v930
        %v932 = vpop.xlane.xlu0 %931
        %v933 = vrcp.pop %v932
        %v934 = vpack.c.bf16 %v929, %v929
        %v936 = vunpack.c.l.b16 %v870
        %v937 = vpack.c.b16 %v936, %v936
        %938 = vrot.lane.b32.xlu0 %v937, 112
        %v939 = vpop.permute.xlu0 %938
        %v941 = vsel %vm632, %v934, 0
        %v944 = vsel %vm693, %v939, 0
        %946 = vmatprep.subr.bf16.mxu0 0
        %947 = vmatpush1.bf16.msra.mxu0 %v944
        %948 = vmatprep.subr.bf16.mxu0 0
        %949 = vmatpush1.bf16.msra.mxu0 0
        %950 = vmatprep.subr.bf16.mxu0 0
        %951 = vmatpush1.bf16.msra.mxu0 0
        %952 = vmatprep.subr.bf16.mxu0 0
        %953 = vmatpush1.bf16.msra.mxu0 0
        %954 = vmatprep.subr.bf16.mxu0 0
        %955 = vmatpush1.bf16.msra.mxu0 0
        %956 = vmatprep.subr.bf16.mxu0 0
        %957 = vmatpush1.bf16.msra.mxu0 0
        %958 = vmatprep.subr.bf16.mxu0 0
        %959 = vmatpush1.bf16.msra.mxu0 0
        %960 = vmatprep.subr.bf16.mxu0 0
        %961 = vmatpush1.bf16.msra.mxu0 0
        %962 = vmatprep.subr.bf16.mxu0 0
        %963 = vmatpush1.bf16.msra.mxu0 0
        %964 = vmatprep.subr.bf16.mxu0 0
        %965 = vmatpush1.bf16.msra.mxu0 0
        %966 = vmatprep.subr.bf16.mxu0 0
        %967 = vmatpush1.bf16.msra.mxu0 0
        %968 = vmatprep.subr.bf16.mxu0 0
        %969 = vmatpush1.bf16.msra.mxu0 0
        %970 = vmatprep.subr.bf16.mxu0 0
        %971 = vmatpush1.bf16.msra.mxu0 0
        %972 = vmatprep.subr.bf16.mxu0 0
        %973 = vmatpush1.bf16.msra.mxu0 0
        %974 = vmatprep.subr.bf16.mxu0 0
        %975 = vmatpush1.bf16.msra.mxu0 0
        %976 = vmatprep.subr.bf16.mxu0 0
        %977 = vmatpush1.bf16.msra.mxu0 0
        %978 = vmatprep.mubr.bf16.mxu0 0
        %979 = vmatmul.mubr.bf16.gmra.mrb[0].mxu0 %v941
        %v980 = vpop.f32.mrb[0].mxu0
        %v981 = vadd.f32 0.0, %v980
        %v982 = vpop.f32.mrb[0].mxu0
        %v983 = vpop.f32.mrb[0].mxu0
        %v984 = vpop.f32.mrb[0].mxu0
        %985 = vdwg.mxu0
        %v986 = vmul.f32 %v981, %v933
        %v987 = vpack.c.bf16 %v986, %v986
        %v989 = vunpack.c.l.b16 %v987
        %v990 = vpack.c.b16 %v989, %v989
        %991 = vrot.lane.b32.xlu0 %v990, 16
        %v992 = vpop.permute.xlu0 %991
        %vm994 = vcmask 191616
        %995 = vst.msk [vmem:[#allocation4] sm:$0xf] %vm994, %v992
        %v996 = vld [vmem:[#allocation2] sm:$0xf]
        %v997 = vld [vmem:[#allocation3] sm:$0xf]
        %998 = vrot.lane.b32.xlu0 %v629, 104
        %v999 = vpop.permute.xlu0 %998
        %v1001 = vunpack.c.l.b16 %v996
        %v1002 = vpack.c.b16 %v1001, %v1001
        %1003 = vrot.lane.b32.xlu0 %v1002, 104
        %v1004 = vpop.permute.xlu0 %1003
        %v1006 = vsel %vm632, %v999, 0
        %v1009 = vsel %vm632, %v1004, 0
        %1011 = vmatprep.subr.bf16.mxu0 0
        %1012 = vmatpush1.bf16.xpose.msra.mxu0 %v1009
        %1013 = vmatprep.subr.bf16.mxu0 0
        %1014 = vmatpush1.bf16.xpose.msra.mxu0 0
        %1015 = vmatprep.subr.bf16.mxu0 0
        %1016 = vmatpush1.bf16.xpose.msra.mxu0 0
        %1017 = vmatprep.subr.bf16.mxu0 0
        %1018 = vmatpush1.bf16.xpose.msra.mxu0 0
        %1019 = vmatprep.subr.bf16.mxu0 0
        %1020 = vmatpush1.bf16.xpose.msra.mxu0 0
        %1021 = vmatprep.subr.bf16.mxu0 0
        %1022 = vmatpush1.bf16.xpose.msra.mxu0 0
        %1023 = vmatprep.subr.bf16.mxu0 0
        %1024 = vmatpush1.bf16.xpose.msra.mxu0 0
        %1025 = vmatprep.subr.bf16.mxu0 0
        %1026 = vmatpush1.bf16.xpose.msra.mxu0 0
        %1027 = vmatprep.subr.bf16.mxu0 0
        %1028 = vmatpush1.bf16.xpose.msra.mxu0 0
        %1029 = vmatprep.subr.bf16.mxu0 0
        %1030 = vmatpush1.bf16.xpose.msra.mxu0 0
        %1031 = vmatprep.subr.bf16.mxu0 0
        %1032 = vmatpush1.bf16.xpose.msra.mxu0 0
        %1033 = vmatprep.subr.bf16.mxu0 0
        %1034 = vmatpush1.bf16.xpose.msra.mxu0 0
        %1035 = vmatprep.subr.bf16.mxu0 0
        %1036 = vmatpush1.bf16.xpose.msra.mxu0 0
        %1037 = vmatprep.subr.bf16.mxu0 0
        %1038 = vmatpush1.bf16.xpose.msra.mxu0 0
        %1039 = vmatprep.subr.bf16.mxu0 0
        %1040 = vmatpush1.bf16.xpose.msra.mxu0 0
        %1041 = vmatprep.subr.bf16.mxu0 0
        %1042 = vmatpush1.bf16.xpose.msra.mxu0 0
        %1043 = vmatprep.mubr.bf16.mxu0 0
        %1044 = vmatmul.mubr.bf16.gmra.mrb[0].mxu0 %v1006
        %v1045 = vpop.f32.mrb[0].mxu0
        %v1046 = vadd.f32 0.0, %v1045
        %v1047 = vpop.f32.mrb[0].mxu0
        %v1048 = vpop.f32.mrb[0].mxu0
        %v1049 = vpop.f32.mrb[0].mxu0
        %1050 = vdwg.mxu0
        %v1051 = vsel %vm632, %v1046, -inf
        %1052 = vmax.xlane.f32.xlu0 %v1051
        %v1053 = vpop.xlane.xlu0 %1052
        %v1054 = vsub.f32 %v1046, %v1053
        %v1055 = vmul.f32 %v1054, 1.442695
        %v1056 = vpow.pop %v1055
        %v1057 = vsel %vm632, %v1056, 0.0
        %1058 = vadd.xlane.f32.xlu0 %v1057
        %v1059 = vpop.xlane.xlu0 %1058
        %v1060 = vrcp.pop %v1059
        %v1061 = vpack.c.bf16 %v1056, %v1056
        %v1063 = vunpack.c.l.b16 %v997
        %v1064 = vpack.c.b16 %v1063, %v1063
        %1065 = vrot.lane.b32.xlu0 %v1064, 104
        %v1066 = vpop.permute.xlu0 %1065
        %v1068 = vsel %vm632, %v1061, 0
        %v1071 = vsel %vm693, %v1066, 0
        %1073 = vmatprep.subr.bf16.mxu0 0
        %1074 = vmatpush1.bf16.msra.mxu0 %v1071
        %1075 = vmatprep.subr.bf16.mxu0 0
        %1076 = vmatpush1.bf16.msra.mxu0 0
        %1077 = vmatprep.subr.bf16.mxu0 0
        %1078 = vmatpush1.bf16.msra.mxu0 0
        %1079 = vmatprep.subr.bf16.mxu0 0
        %1080 = vmatpush1.bf16.msra.mxu0 0
        %1081 = vmatprep.subr.bf16.mxu0 0
        %1082 = vmatpush1.bf16.msra.mxu0 0
        %1083 = vmatprep.subr.bf16.mxu0 0
        %1084 = vmatpush1.bf16.msra.mxu0 0
        %1085 = vmatprep.subr.bf16.mxu0 0
        %1086 = vmatpush1.bf16.msra.mxu0 0
        %1087 = vmatprep.subr.bf16.mxu0 0
        %1088 = vmatpush1.bf16.msra.mxu0 0
        %1089 = vmatprep.subr.bf16.mxu0 0
        %1090 = vmatpush1.bf16.msra.mxu0 0
        %1091 = vmatprep.subr.bf16.mxu0 0
        %1092 = vmatpush1.bf16.msra.mxu0 0
        %1093 = vmatprep.subr.bf16.mxu0 0
        %1094 = vmatpush1.bf16.msra.mxu0 0
        %1095 = vmatprep.subr.bf16.mxu0 0
        %1096 = vmatpush1.bf16.msra.mxu0 0
        %1097 = vmatprep.subr.bf16.mxu0 0
        %1098 = vmatpush1.bf16.msra.mxu0 0
        %1099 = vmatprep.subr.bf16.mxu0 0
        %1100 = vmatpush1.bf16.msra.mxu0 0
        %1101 = vmatprep.subr.bf16.mxu0 0
        %1102 = vmatpush1.bf16.msra.mxu0 0
        %1103 = vmatprep.subr.bf16.mxu0 0
        %1104 = vmatpush1.bf16.msra.mxu0 0
        %1105 = vmatprep.mubr.bf16.mxu0 0
        %1106 = vmatmul.mubr.bf16.gmra.mrb[0].mxu0 %v1068
        %v1107 = vpop.f32.mrb[0].mxu0
        %v1108 = vadd.f32 0.0, %v1107
        %v1109 = vpop.f32.mrb[0].mxu0
        %v1110 = vpop.f32.mrb[0].mxu0
        %v1111 = vpop.f32.mrb[0].mxu0
        %1112 = vdwg.mxu0
        %v1113 = vmul.f32 %v1108, %v1060
        %v1114 = vpack.c.bf16 %v1113, %v1113
        %v1116 = vunpack.c.l.b16 %v1114
        %v1117 = vpack.c.b16 %v1116, %v1116
        %1118 = vrot.lane.b32.xlu0 %v1117, 24
        %v1119 = vpop.permute.xlu0 %1118
        %vm1121 = vcmask 257216
        %1122 = vst.msk [vmem:[#allocation4] sm:$0xf] %vm1121, %v1119
        %v1123 = vld [vmem:[#allocation4] sm:$0xf]
        %v1124 = vld [vmem:[%s5] sm:$0xf]
        %v1125 = vld [vmem:[%s5 + $0x4] sm:$0xf]
        %v1126 = vld [vmem:[%s5 + $0x8] sm:$0xf]
        %v1127 = vld [vmem:[%s5 + $0xc] sm:$0xf]
        %v1128 = vld [vmem:[%s6] sm:$0x1]
        %v1130 = vlaneseq
        %v1131 = vshrl.u32 %v1130, 7
        %v1132 = vsub.s32 0, %v1131
        %v1133 = vrot.slane %v1128, %v1132
        %v1139 = vunpack.c.l.b16 %v1124
        %v1140 = vunpack.c.l.b16 %v1125
        %v1141 = vunpack.c.l.b16 %v1126
        %v1142 = vunpack.c.l.b16 %v1127
        %v1143 = vpack.c.b16 %v1140, %v1139
        %v1144 = vpack.c.b16 %v1142, %v1141
        %v1148 = vsel %vm584, %v1123, 0
        %1150 = vmatprep.subr.bf16.mxu0 0
        %1151 = vmatpush1.bf16.msra.mxu0 %v1143
        %1152 = vmatprep.subr.bf16.mxu0 0
        %1153 = vmatpush1.bf16.msra.mxu0 %v1144
        %1154 = vmatprep.subr.bf16.mxu0 0
        %1155 = vmatpush1.bf16.msra.mxu0 0
        %1156 = vmatprep.subr.bf16.mxu0 0
        %1157 = vmatpush1.bf16.msra.mxu0 0
        %1158 = vmatprep.subr.bf16.mxu0 0
        %1159 = vmatpush1.bf16.msra.mxu0 0
        %1160 = vmatprep.subr.bf16.mxu0 0
        %1161 = vmatpush1.bf16.msra.mxu0 0
        %1162 = vmatprep.subr.bf16.mxu0 0
        %1163 = vmatpush1.bf16.msra.mxu0 0
        %1164 = vmatprep.subr.bf16.mxu0 0
        %1165 = vmatpush1.bf16.msra.mxu0 0
        %1166 = vmatprep.subr.bf16.mxu0 0
        %1167 = vmatpush1.bf16.msra.mxu0 0
        %1168 = vmatprep.subr.bf16.mxu0 0
        %1169 = vmatpush1.bf16.msra.mxu0 0
        %1170 = vmatprep.subr.bf16.mxu0 0
        %1171 = vmatpush1.bf16.msra.mxu0 0
        %1172 = vmatprep.subr.bf16.mxu0 0
        %1173 = vmatpush1.bf16.msra.mxu0 0
        %1174 = vmatprep.subr.bf16.mxu0 0
        %1175 = vmatpush1.bf16.msra.mxu0 0
        %1176 = vmatprep.subr.bf16.mxu0 0
        %1177 = vmatpush1.bf16.msra.mxu0 0
        %1178 = vmatprep.subr.bf16.mxu0 0
        %1179 = vmatpush1.bf16.msra.mxu0 0
        %1180 = vmatprep.subr.bf16.mxu0 0
        %1181 = vmatpush1.bf16.msra.mxu0 0
        %1182 = vmatprep.mubr.bf16.mxu0 0
        %1183 = vmatmul.mubr.bf16.gmra.mrb[0].mxu0 %v1148
        %v1184 = vpop.f32.mrb[0].mxu0
        %v1185 = vadd.f32 %v1133, %v1184
        %v1186 = vpop.f32.mrb[0].mxu0
        %v1187 = vpop.f32.mrb[0].mxu0
        %v1188 = vpop.f32.mrb[0].mxu0
        %1189 = vdwg.mxu0
        %1190 = vst.msk [vmem:[%s410] sm:$0xff] %vm584, %v1185
        %s1191 = sand.u32 %s214, 1
        %s1192 = scalar_lea.sflag [#allocation7], %s1191
        %s1193 = sand.u32 %s214, 1
        %s1194 = smul.addr %s1193, 8
        %s1195 = scalar_lea.vmem [#allocation14], %s1194
        // Predicated region
        $region73: #{tpu_custom_call.1} parent=47 // pred_check
          %p1196 = pneg %p224
        $region74: #{tpu_custom_call.1} parent=47 // pred_check_branch
          %1198 = sbr.rel (%p1196) target = $region76
        $region75: #{tpu_custom_call.1} parent=47 // pred_region
          %s1200 = ssub.s32 128, 128
          %1201 = vsyncadd %s1192, %s1200
          %s1202 = sadd.s32 %s33, %s32
          %s1203 = smul.addr %s1202, 128
          %s1204 = scalar_lea.hbm %s7, %s1203
          %s1206 = sshll.u32 %s1195, 4
          %s1207 = int_to_ptr.vmem [resolvable:$true] %s1206
          %1209 = dma.vmem_to_hbm [thread:$0]  %s1207, 128, %s1204, %s1192
        $region76: #{tpu_custom_call.1} parent=47 // pred_fallthru
          _
      $region48: #{tpu_custom_call.1} parent=5 // pred_fallthru
        _
      %p1210 = scmp.le.s32.totalorder 2, %s23
      // Predicated region
      $region77: #{tpu_custom_call.1} parent=5 // pred_check
        %p1211 = pneg %p1210
      $region78: #{tpu_custom_call.1} parent=5 // pred_check_branch
        %1213 = sbr.rel (%p1211) target = $region80
      $region79: #{tpu_custom_call.1} parent=5 // pred_region
        %s1214 = ssub.s32 %s23, 2
        // Predicated region
        $region81: #{tpu_custom_call.1} parent=79 // pred_check
          %p1215 = pneg %p230
        $region82: #{tpu_custom_call.1} parent=79 // pred_check_branch
          %1217 = sbr.rel (%p1215) target = $region84
        $region83: #{tpu_custom_call.1} parent=79 // pred_region
          %s1218 = sand.u32 %s215, 1
          %s1219 = scalar_lea.sflag [#allocation7], %s1218
          %s1220 = sand.u32 %s215, 1
          %s1221 = smul.addr %s1220, 8
          %s1222 = scalar_lea.vmem [#allocation14], %s1221
          %1223 = dma.done %s1219, 128
        $region84: #{tpu_custom_call.1} parent=79 // pred_fallthru
          _
      $region80: #{tpu_custom_call.1} parent=5 // pred_fallthru
        _
    $region6: #{tpu_custom_call.1} parent=1 // loop_footer
      %s27 = sadd.s32 1, %s23
    $region7: #{tpu_custom_call.1} parent=1 // loop_footer_branch
      %22 = sbr.rel target = $region3
    $region8: #{tpu_custom_call.1} parent=1 // loop_exit
      _
    %1224 = vsyncpa [#allocation6], 1
    %s1225 = scalar_lea.sflag [#allocation6], 1
    %1226 = vsyncpa %s1225, 1
    %1227 = vsyncpa [#allocation9], 1
    %s1228 = scalar_lea.sflag [#allocation9], 1
    %1229 = vsyncpa %s1228, 1
    %1230 = vsyncpa [#allocation12], 1
    %1231 = vsyncpa [#allocation7], 1
    %s1232 = scalar_lea.sflag [#allocation7], 1
    %1233 = vsyncpa %s1232, 1

</llo_original>
